<compile_context>
chip_gen: v5e
topology: v5e:2x2
jax: 0.10.0
libtpu: 0.0.40
codegen_flags: <defaults>
</compile_context>

<pallas_src>
import functools

import jax
import jax.numpy as jnp
from jax import lax
from jax.experimental import pallas as pl
from jax.experimental.pallas import tpu as pltpu

# Fixed hyper-parameters of QNetworkPixels.
CONV1_OUT, CONV1_K, CONV1_S = 16, (1, 8, 8), (1, 4, 4)
CONV2_OUT, CONV2_K, CONV2_S = 32, (4, 4, 4), (1, 2, 2)
FC1_UNITS = 256
LANE = 128


def _round_up(x, m):
    return ((x + m - 1) // m) * m


def _conv_out(n, k, s):
    return (n - k) // s + 1


def _pick_row_tile(n_rows, max_tile=512, align=16):
    """Row tile: multiple of `align`, >=2 grid steps when the row count allows it
    (keeps both v7x TensorCores busy), capped to bound VMEM."""
    if n_rows <= align:
        return n_rows
    half = _round_up(pl.cdiv(n_rows, 2), align)
    if half >= n_rows:
        return n_rows
    return min(max_tile, half)


def _pick_batch_tile(b, max_tile=512):
    """Batch tile for kernel 2. Block legality: the sublane dim of a (bt, lanes) block
    must be a multiple of 8 or equal the full batch, so tiny batches take one step."""
    if b < 16:
        return b
    return min(max_tile, _round_up(pl.cdiv(b, 2), 8))


# --------------------------------------------------------------------------- kernels
def conv1_patch_gemm_kernel(p_ref, w_ref, b_ref, o_ref):
    """relu(patches @ W1_blockdiag + b1) for one row tile.

    Each input row carries fold(=8) conv1 patches; the block-diagonal weight maps them
    to 8*16 = 128 output lanes -> unmasked, lane-dense stores and no in-kernel reshape.
    bf16 operands, f32 MXU accumulation, f32 bias/ReLU epilogue (v5e-friendly).
    """
    acc = jnp.dot(p_ref[...], w_ref[...], preferred_element_type=jnp.float32)
    o_ref[...] = jnp.maximum(acc + b_ref[...], 0.0).astype(o_ref.dtype)


def conv2_fc_fused_kernel(p2_ref, w2_ref, b2_ref, wfc1_ref, bfc1_ref, wfc2_ref,
                          bfc2_ref, o_ref, h2_scr):
    """Fused conv2 + fc1 + ReLU + fc2 for one batch tile.

    p2_ref:   (bt, NPOS*K2)   conv2 patches (kernel 1's lane-dense output), bf16
    w2_ref:   (K2, C2)        conv2 weight as GEMM, bf16
    wfc1_ref: (NPOS*C2, F1)   fc1 weight, rows match the (pos, c2) scratch layout, bf16
    wfc2_ref: (F1, A_pad)     fc2 weight zero-padded to a lane-dense width, bf16
    h2_scr:   (bt, NPOS*C2)   VMEM scratch holding the lane-dense conv2 activations
    """
    k2, c2 = w2_ref.shape
    npos = p2_ref.shape[1] // k2

    # conv2: NPOS dots with full contraction depth K2, packed lane-dense into the
    # scratch so fc1 below is ONE K = NPOS*C2 (=128) dot instead of NPOS K=32 dots.
    for pos in range(npos):  # static unroll (npos is small, e.g. 4)
        h2 = jnp.dot(p2_ref[:, pos * k2:(pos + 1) * k2], w2_ref[...],
                     preferred_element_type=jnp.float32)
        h2_scr[:, pos * c2:(pos + 1) * c2] = jnp.maximum(
            h2 + b2_ref[...], 0.0).astype(h2_scr.dtype)

    h3 = jnp.dot(h2_scr[...], wfc1_ref[...], preferred_element_type=jnp.float32)
    h3 = jnp.maximum(h3 + bfc1_ref[...], 0.0)                           # fc1 bias+ReLU
    q = jnp.dot(h3.astype(wfc2_ref.dtype), wfc2_ref[...],
                preferred_element_type=jnp.float32) + bfc2_ref[...]
    o_ref[...] = q.astype(o_ref.dtype)


# ----------------------------------------------------------------------- param setup
def init_qnetwork_pixels_params(key, state_shape, action_size):
    """PyTorch-default init U(-1/sqrt(fan_in), +1/sqrt(fan_in)).
    Conv weights stored (O, I, kD, kH, kW); fc weights stored (in_features, out_features),
    fc1 rows follow the PyTorch flatten order (channel, d, h, w)."""
    C, D, H, W = state_shape
    D1 = _conv_out(D, CONV1_K[0], CONV1_S[0])
    OH1 = _conv_out(H, CONV1_K[1], CONV1_S[1])
    OW1 = _conv_out(W, CONV1_K[2], CONV1_S[2])
    D2 = _conv_out(D1, CONV2_K[0], CONV2_S[0])
    OH2 = _conv_out(OH1, CONV2_K[1], CONV2_S[1])
    OW2 = _conv_out(OW1, CONV2_K[2], CONV2_S[2])
    conv2_out_size = CONV2_OUT * D2 * OH2 * OW2

    def uinit(k, shape, fan_in):
        bound = 1.0 / jnp.sqrt(jnp.float32(fan_in))
        return jax.random.uniform(k, shape, jnp.float32, -bound, bound)

    keys = jax.random.split(key, 8)
    fan1 = C * CONV1_K[0] * CONV1_K[1] * CONV1_K[2]
    fan2 = CONV1_OUT * CONV2_K[0] * CONV2_K[1] * CONV2_K[2]
    return {
        "conv1_w": uinit(keys[0], (CONV1_OUT, C) + CONV1_K, fan1),
        "conv1_b": uinit(keys[1], (CONV1_OUT,), fan1),
        "conv2_w": uinit(keys[2], (CONV2_OUT, CONV1_OUT) + CONV2_K, fan2),
        "conv2_b": uinit(keys[3], (CONV2_OUT,), fan2),
        "fc1_w": uinit(keys[4], (conv2_out_size, FC1_UNITS), conv2_out_size),
        "fc1_b": uinit(keys[5], (FC1_UNITS,), conv2_out_size),
        "fc2_w": uinit(keys[6], (FC1_UNITS, action_size), FC1_UNITS),
        "fc2_b": uinit(keys[7], (action_size,), FC1_UNITS),
    }


def prepare_params(params):
    """One-time (hoisted) cast + relayout of weights into kernel-ready bf16 form."""
    c1 = params["conv1_w"].shape[0]
    c2 = params["conv2_w"].shape[0]
    f1 = params["fc1_w"].shape[1]
    a = params["fc2_w"].shape[1]
    a_pad = _round_up(a, LANE)
    npos = params["fc1_w"].shape[0] // c2

    # conv1 weight -> GEMM (K1, 16): rows ordered (ci, kd1, kh1, kw1) to match patches.
    w1r = params["conv1_w"].reshape(c1, -1).T
    k1 = w1r.shape[0]
    assert LANE % c1 == 0
    fold = LANE // c1  # 8 conv1 patches per folded GEMM row -> 128-lane output
    # Block-diagonal replication: one (fold*K1, 128) weight so the conv1 GEMM writes a
    # lane-dense (128-wide) output with no in-kernel reshape (review: lane-dense store).
    w1_blk = jnp.zeros((fold * k1, LANE), jnp.float32)
    for j in range(fold):
        w1_blk = w1_blk.at[j * k1:(j + 1) * k1, j * c1:(j + 1) * c1].set(w1r)
    b1_blk = jnp.tile(params["conv1_b"], fold).reshape(1, LANE)

    # conv2 weight -> GEMM (K2, 32): rows ordered (kd, kh, kw, ci) to match patches.
    w2r = params["conv2_w"].transpose(2, 3, 4, 1, 0).reshape(-1, c2)
    # fc1 weight regrouped so its rows match the (pos, c2) column order of the in-kernel
    # lane-dense conv2 activation scratch -> a single K = npos*c2 fc1 dot.
    wfc1 = params["fc1_w"].reshape(c2, npos, f1).transpose(1, 0, 2).reshape(npos * c2, f1)
    # Zero-pad fc2 to a lane-dense (128-wide) output; sliced back in the wrapper.
    wfc2_pad = jnp.zeros((f1, a_pad), jnp.float32).at[:, :a].set(params["fc2_w"])
    bfc2_pad = jnp.zeros((1, a_pad), jnp.float32).at[:, :a].set(params["fc2_b"][None, :])

    return {
        "w1_blk": w1_blk.astype(jnp.bfloat16),
        "b1_blk": b1_blk.astype(jnp.float32),
        "w2r": w2r.astype(jnp.bfloat16),
        "b2": params["conv2_b"].reshape(1, -1).astype(jnp.float32),
        "wfc1": wfc1.astype(jnp.bfloat16),
        "bfc1": params["fc1_b"].reshape(1, -1).astype(jnp.float32),
        "wfc2_pad": wfc2_pad.astype(jnp.bfloat16),
        "bfc2_pad": bfc2_pad,  # f32
    }


# --------------------------------------------------------------------------- forward
@functools.partial(jax.jit, static_argnames=("action_size", "row_tile", "batch_tile"))
def qnetwork_pixels_forward(state, prep, *, action_size, row_tile=None, batch_tile=None):
    """state: (B, 3, D, H, W) float32. prep: output of prepare_params()."""
    B, C, D, H, W = state.shape
    KD1, KH1, KW1 = CONV1_K
    SD1, SH1, SW1 = CONV1_S
    KD2, KH2, KW2 = CONV2_K
    SD2, SH2, SW2 = CONV2_S
    assert KD1 == 1 and SD1 == 1  # QNetworkPixels conv1 has a unit depth kernel/stride

    D1 = _conv_out(D, KD1, SD1)
    OH1 = _conv_out(H, KH1, SH1)
    OW1 = _conv_out(W, KW1, SW1)
    D2 = _conv_out(D1, KD2, SD2)
    OH2 = _conv_out(OH1, KH2, SH2)
    OW2 = _conv_out(OW1, KW2, SW2)
    NPOS = D2 * OH2 * OW2          # conv2 output positions
    NTAP = KD2 * KH2 * KW2         # conv2 kernel taps

    w1_blk, b1_blk = prep["w1_blk"], prep["b1_blk"]
    w2r, b2 = prep["w2r"], prep["b2"]
    wfc1, bfc1 = prep["wfc1"], prep["bfc1"]
    wfc2, bfc2 = prep["wfc2_pad"], prep["bfc2_pad"]

    c1 = CONV1_OUT                 # 16
    c2 = w2r.shape[1]              # 32
    f1 = bfc1.shape[1]             # 256
    a_pad = wfc2.shape[1]          # 128
    fold = LANE // c1              # 8 conv1 patches per folded GEMM row
    k1 = C * KD1 * KH1 * KW1       # 192
    k1_blk = fold * k1             # 1536
    k2 = NTAP * c1                 # 1024
    assert wfc1.shape[0] == NPOS * c2, "fc1 in-features inconsistent with conv geometry"
    assert (NPOS * NTAP) % fold == 0

    x = state.astype(jnp.bfloat16)  # bf16 activations (MXU-native, half the DMA bytes)

    # ---- single im2col pass: conv1 patches gathered directly in conv2-patch row order
    # Rows ordered (b, d2, oh2, ow2, kd, kh, kw); columns (ci, kh1, kw1) = conv1 patch.
    # Pure layout plumbing; all FLOP-carrying work stays in the Pallas kernels.
    d1_idx = (jnp.arange(D2) * SD2)[:, None] + jnp.arange(KD2)[None, :]      # (D2, KD2)
    oh1_idx = (jnp.arange(OH2) * SH2)[:, None] + jnp.arange(KH2)[None, :]    # (OH2, KH2)
    ow1_idx = (jnp.arange(OW2) * SW2)[:, None] + jnp.arange(KW2)[None, :]    # (OW2, KW2)
    h_idx = oh1_idx[..., None] * SH1 + jnp.arange(KH1)                        # (OH2,KH2,KH1)
    w_idx = ow1_idx[..., None] * SW1 + jnp.arange(KW1)                        # (OW2,KW2,KW1)
    g = x[:, :, d1_idx]                    # (B, C, D2, KD2, H, W)
    g = g[:, :, :, :, h_idx]               # (B, C, D2, KD2, OH2, KH2, KH1, W)
    g = g[..., w_idx]                      # (B, C, D2, KD2, OH2, KH2, KH1, OW2, KW2, KW1)
    g = g.transpose(0, 2, 4, 7, 3, 5, 8, 1, 6, 9)  # (B,D2,OH2,OW2,KD2,KH2,KW2,C,KH1,KW1)
    p1d = g.reshape(B * NPOS * NTAP // fold, k1_blk)   # fold patches -> 128-lane output rows
    R1 = p1d.shape[0]

    # ---- kernel 1: conv1 as a lane-dense block-diagonal GEMM + bias + ReLU ---------
    if row_tile is None:
        row_tile = _pick_row_tile(R1, max_tile=512, align=16)  # (512,1536)bf16 = 1.5 MB/buf
    cost1 = pl.CostEstimate(
        flops=2 * R1 * k1_blk * LANE,
        transcendentals=0,
        bytes_accessed=(R1 * k1_blk + k1_blk * LANE + R1 * LANE) * 2 + LANE * 4,
    )
    p2_flat = pl.pallas_call(
        conv1_patch_gemm_kernel,
        out_shape=jax.ShapeDtypeStruct((R1, LANE), jnp.bfloat16),
        grid_spec=pltpu.PrefetchScalarGridSpec(
            num_scalar_prefetch=0,
            grid=(pl.cdiv(R1, row_tile),),
            in_specs=[
                pl.BlockSpec((row_tile, k1_blk), lambda i: (i, 0)),
                pl.BlockSpec((k1_blk, LANE), lambda i: (0, 0)),
                pl.BlockSpec((1, LANE), lambda i: (0, 0)),
            ],
            out_specs=pl.BlockSpec((row_tile, LANE), lambda i: (i, 0)),
        ),
        compiler_params=pltpu.CompilerParams(
            dimension_semantics=("parallel",),
            vmem_limit_bytes=48 * 1024 * 1024),
        cost_estimate=cost1,
    )(p1d, w1_blk, b1_blk)

    # Kernel 1's lane-dense output *is* the conv2 patch matrix (free row-major reshape).
    p2 = p2_flat.reshape(B, NPOS * k2)

    # ---- kernel 2: fused conv2 + fc1 + ReLU + fc2 over batch tiles -----------------
    if batch_tile is None:
        batch_tile = _pick_batch_tile(B, max_tile=512)
    cost2 = pl.CostEstimate(
        flops=2 * B * (NPOS * k2 * c2 + NPOS * c2 * f1 + f1 * a_pad),
        transcendentals=0,
        bytes_accessed=(B * NPOS * k2 + k2 * c2 + NPOS * c2 * f1 + f1 * a_pad) * 2
        + (B * a_pad + c2 + f1 + a_pad) * 4,
    )
    q_pad = pl.pallas_call(
        conv2_fc_fused_kernel,
        out_shape=jax.ShapeDtypeStruct((B, a_pad), jnp.float32),
        grid_spec=pltpu.PrefetchScalarGridSpec(
            num_scalar_prefetch=0,
            grid=(pl.cdiv(B, batch_tile),),
            in_specs=[
                pl.BlockSpec((batch_tile, NPOS * k2), lambda i: (i, 0)),
                pl.BlockSpec((k2, c2), lambda i: (0, 0)),
                pl.BlockSpec((1, c2), lambda i: (0, 0)),
                pl.BlockSpec((NPOS * c2, f1), lambda i: (0, 0)),
                pl.BlockSpec((1, f1), lambda i: (0, 0)),
                pl.BlockSpec((f1, a_pad), lambda i: (0, 0)),
                pl.BlockSpec((1, a_pad), lambda i: (0, 0)),
            ],
            out_specs=pl.BlockSpec((batch_tile, a_pad), lambda i: (i, 0)),
            scratch_shapes=[pltpu.VMEM((batch_tile, NPOS * c2), jnp.bfloat16)],
        ),
        compiler_params=pltpu.CompilerParams(
            dimension_semantics=("parallel",),
            vmem_limit_bytes=48 * 1024 * 1024),
        cost_estimate=cost2,
    )(p2, w2r, b2, wfc1, bfc1, wfc2, bfc2)

    return q_pad[:, :action_size]


# ------------------------------------------------------------------------- reference
def qnetwork_pixels_reference(state, params):
    """Pure-JAX f32 reference mirroring the PyTorch forward (incl. flatten order)."""
    dn = ("NCDHW", "OIDHW", "NCDHW")
    h = lax.conv_general_dilated(state, params["conv1_w"], CONV1_S, "VALID",
                                 dimension_numbers=dn)
    h = jnp.maximum(h + params["conv1_b"].reshape(1, -1, 1, 1, 1), 0.0)
    h = lax.conv_general_dilated(h, params["conv2_w"], CONV2_S, "VALID",
                                 dimension_numbers=dn)
    h = jnp.maximum(h + params["conv2_b"].reshape(1, -1, 1, 1, 1), 0.0)
    h = h.reshape(h.shape[0], -1)                      # PyTorch .view(B, -1) order
    h = jnp.maximum(h @ params["fc1_w"] + params["fc1_b"], 0.0)
    return h @ params["fc2_w"] + params["fc2_b"]


if __name__ == "__main__":
    key = jax.random.PRNGKey(0)
    k_params, k_state = jax.random.split(key)

    batch = 2
    state_shape = (3, 4, 32, 32)   # (channels, frames, height, width)
    action_size = 4

    params = init_qnetwork_pixels_params(k_params, state_shape, action_size)
    prep = prepare_params(params)
    state = jax.random.normal(k_state, (batch,) + state_shape, jnp.float32)

    q = qnetwork_pixels_forward(state, prep, action_size=action_size)
    q = jax.block_until_ready(q)

    q_ref = qnetwork_pixels_reference(state, params)
    assert q.shape == (batch, action_size)
    assert jnp.allclose(q, q_ref, atol=1e-2, rtol=1e-2), (
        "mismatch vs reference, max abs err = " + str(jnp.max(jnp.abs(q - q_ref))))
    print("KERNEL_OK")
</pallas_src>

<mosaic_0001>
module attributes {stable_mosaic.version = 11 : i64} {
  func.func @conv1_patch_gemm_kernel(%arg0: i32, %arg1: memref<32x1536xbf16, #tpu.memory_space<vmem>>, %arg2: memref<1536x128xbf16, #tpu.memory_space<vmem>>, %arg3: memref<1x128xf32, #tpu.memory_space<vmem>>, %arg4: memref<32x128xbf16, #tpu.memory_space<vmem>>) attributes {dimension_semantics = [#tpu.dimension_semantics<parallel>], iteration_bounds = array<i64: 2>, scalar_prefetch = 0 : i64, scratch_operands = 0 : i64, tpu.core_type = #tpu.core_type<tc>, window_params = [{transform_indices = @transform_0, window_bounds = array<i64: 32, 1536>}, {pipeline_mode = #tpu.pipeline_mode<synchronous>, transform_indices = @transform_1, window_bounds = array<i64: 1536, 128>}, {pipeline_mode = #tpu.pipeline_mode<synchronous>, transform_indices = @transform_2, window_bounds = array<i64: 1, 128>}, {transform_indices = @transform_3, window_bounds = array<i64: 32, 128>}]} {
    %c0 = arith.constant 0 : index
    %c0_0 = arith.constant 0 : index
    %0 = vector.load %arg1[%c0, %c0_0] : memref<32x1536xbf16, #tpu.memory_space<vmem>>, vector<32x1536xbf16>
    %c0_1 = arith.constant 0 : index
    %c0_2 = arith.constant 0 : index
    %1 = vector.load %arg2[%c0_1, %c0_2] : memref<1536x128xbf16, #tpu.memory_space<vmem>>, vector<1536x128xbf16>
    %cst = arith.constant dense<0.000000e+00> : vector<32x128xf32>
    %2 = tpu.matmul %0, %1, %cst {dimension_numbers = #tpu.dot_dimension_numbers<[1], [0], [0], [1], [0, 0, 1, 1], [], []>} : vector<32x1536xbf16>, vector<1536x128xbf16>, vector<32x128xf32> -> vector<32x128xf32>
    %c0_3 = arith.constant 0 : index
    %c0_4 = arith.constant 0 : index
    %3 = vector.load %arg3[%c0_3, %c0_4] : memref<1x128xf32, #tpu.memory_space<vmem>>, vector<1x128xf32>
    %4 = vector.broadcast %3 : vector<1x128xf32> to vector<32x128xf32>
    %5 = arith.addf %2, %4 : vector<32x128xf32>
    %cst_5 = arith.constant 0.000000e+00 : f32
    %6 = vector.broadcast %cst_5 : f32 to vector<32x128xf32>
    %7 = arith.maximumf %5, %6 : vector<32x128xf32>
    %8 = arith.truncf %7 : vector<32x128xf32> to vector<32x128xbf16>
    %c0_6 = arith.constant 0 : index
    %c0_7 = arith.constant 0 : index
    %9 = vector.load %arg4[%c0_6, %c0_7] : memref<32x128xbf16, #tpu.memory_space<vmem>>, vector<32x128xbf16>
    tpu.vector_store %arg4[%c0_6, %c0_7], %8 {strides = array<i32>} : memref<32x128xbf16, #tpu.memory_space<vmem>>, vector<32x128xbf16>,
    return
  }
  func.func @transform_0(%arg0: i32) -> (i32, i32) {
    %c0_i32 = arith.constant 0 : i32
    %c0_i32_0 = arith.constant 0 : i32
    return %arg0, %c0_i32 : i32, i32
  }
  func.func @transform_1(%arg0: i32) -> (i32, i32) {
    %c0_i32 = arith.constant 0 : i32
    %c0_i32_0 = arith.constant 0 : i32
    %c0_i32_1 = arith.constant 0 : i32
    return %c0_i32, %c0_i32_0 : i32, i32
  }
  func.func @transform_2(%arg0: i32) -> (i32, i32) {
    %c0_i32 = arith.constant 0 : i32
    %c0_i32_0 = arith.constant 0 : i32
    %c0_i32_1 = arith.constant 0 : i32
    return %c0_i32, %c0_i32_0 : i32, i32
  }
  func.func @transform_3(%arg0: i32) -> (i32, i32) {
    %c0_i32 = arith.constant 0 : i32
    %c0_i32_0 = arith.constant 0 : i32
    return %arg0, %c0_i32 : i32, i32
  }
}

module attributes {stable_mosaic.version = 11 : i64} {
  func.func @conv2_fc_fused_kernel(%arg0: i32, %arg1: memref<2x4096xbf16, #tpu.memory_space<vmem>>, %arg2: memref<1024x32xbf16, #tpu.memory_space<vmem>>, %arg3: memref<1x32xf32, #tpu.memory_space<vmem>>, %arg4: memref<128x256xbf16, #tpu.memory_space<vmem>>, %arg5: memref<1x256xf32, #tpu.memory_space<vmem>>, %arg6: memref<256x128xbf16, #tpu.memory_space<vmem>>, %arg7: memref<1x128xf32, #tpu.memory_space<vmem>>, %arg8: memref<2x128xf32, #tpu.memory_space<vmem>>, %arg9: memref<2x128xbf16, #tpu.memory_space<vmem>>) attributes {dimension_semantics = [#tpu.dimension_semantics<parallel>], iteration_bounds = array<i64: 1>, scalar_prefetch = 0 : i64, scratch_operands = 1 : i64, tpu.core_type = #tpu.core_type<tc>, window_params = [{transform_indices = @transform_0, window_bounds = array<i64: 2, 4096>}, {pipeline_mode = #tpu.pipeline_mode<synchronous>, transform_indices = @transform_1, window_bounds = array<i64: 1024, 32>}, {pipeline_mode = #tpu.pipeline_mode<synchronous>, transform_indices = @transform_2, window_bounds = array<i64: 1, 32>}, {pipeline_mode = #tpu.pipeline_mode<synchronous>, transform_indices = @transform_3, window_bounds = array<i64: 128, 256>}, {pipeline_mode = #tpu.pipeline_mode<synchronous>, transform_indices = @transform_4, window_bounds = array<i64: 1, 256>}, {pipeline_mode = #tpu.pipeline_mode<synchronous>, transform_indices = @transform_5, window_bounds = array<i64: 256, 128>}, {pipeline_mode = #tpu.pipeline_mode<synchronous>, transform_indices = @transform_6, window_bounds = array<i64: 1, 128>}, {transform_indices = @transform_7, window_bounds = array<i64: 2, 128>}]} {
    %c0 = arith.constant 0 : index
    %c0_0 = arith.constant 0 : index
    %0 = vector.load %arg1[%c0, %c0_0] : memref<2x4096xbf16, #tpu.memory_space<vmem>>, vector<2x1024xbf16>
    %c0_1 = arith.constant 0 : index
    %c0_2 = arith.constant 0 : index
    %1 = vector.load %arg2[%c0_1, %c0_2] : memref<1024x32xbf16, #tpu.memory_space<vmem>>, vector<1024x32xbf16>
    %cst = arith.constant dense<0.000000e+00> : vector<2x32xf32>
    %2 = tpu.matmul %0, %1, %cst {dimension_numbers = #tpu.dot_dimension_numbers<[1], [0], [0], [1], [0, 0, 1, 1], [], []>} : vector<2x1024xbf16>, vector<1024x32xbf16>, vector<2x32xf32> -> vector<2x32xf32>
    %c0_3 = arith.constant 0 : index
    %c0_4 = arith.constant 0 : index
    %3 = vector.load %arg3[%c0_3, %c0_4] : memref<1x32xf32, #tpu.memory_space<vmem>>, vector<1x32xf32>
    %4 = vector.broadcast %3 : vector<1x32xf32> to vector<2x32xf32>
    %5 = arith.addf %2, %4 : vector<2x32xf32>
    %cst_5 = arith.constant 0.000000e+00 : f32
    %6 = vector.broadcast %cst_5 : f32 to vector<2x32xf32>
    %7 = arith.maximumf %5, %6 : vector<2x32xf32>
    %8 = arith.truncf %7 : vector<2x32xf32> to vector<2x32xbf16>
    %c0_6 = arith.constant 0 : index
    %c0_7 = arith.constant 0 : index
    %9 = vector.load %arg9[%c0_6, %c0_7] : memref<2x128xbf16, #tpu.memory_space<vmem>>, vector<2x32xbf16>
    tpu.vector_store %arg9[%c0_6, %c0_7], %8 {strides = array<i32>} : memref<2x128xbf16, #tpu.memory_space<vmem>>, vector<2x32xbf16>,
    %c0_8 = arith.constant 0 : index
    %c1024 = arith.constant 1024 : index
    %10 = vector.load %arg1[%c0_8, %c1024] : memref<2x4096xbf16, #tpu.memory_space<vmem>>, vector<2x1024xbf16>
    %c0_9 = arith.constant 0 : index
    %c0_10 = arith.constant 0 : index
    %11 = vector.load %arg2[%c0_9, %c0_10] : memref<1024x32xbf16, #tpu.memory_space<vmem>>, vector<1024x32xbf16>
    %cst_11 = arith.constant dense<0.000000e+00> : vector<2x32xf32>
    %12 = tpu.matmul %10, %11, %cst_11 {dimension_numbers = #tpu.dot_dimension_numbers<[1], [0], [0], [1], [0, 0, 1, 1], [], []>} : vector<2x1024xbf16>, vector<1024x32xbf16>, vector<2x32xf32> -> vector<2x32xf32>
    %c0_12 = arith.constant 0 : index
    %c0_13 = arith.constant 0 : index
    %13 = vector.load %arg3[%c0_12, %c0_13] : memref<1x32xf32, #tpu.memory_space<vmem>>, vector<1x32xf32>
    %14 = vector.broadcast %13 : vector<1x32xf32> to vector<2x32xf32>
    %15 = arith.addf %12, %14 : vector<2x32xf32>
    %cst_14 = arith.constant 0.000000e+00 : f32
    %16 = vector.broadcast %cst_14 : f32 to vector<2x32xf32>
    %17 = arith.maximumf %15, %16 : vector<2x32xf32>
    %18 = arith.truncf %17 : vector<2x32xf32> to vector<2x32xbf16>
    %c0_15 = arith.constant 0 : index
    %c32 = arith.constant 32 : index
    %19 = vector.load %arg9[%c0_15, %c32] : memref<2x128xbf16, #tpu.memory_space<vmem>>, vector<2x32xbf16>
    tpu.vector_store %arg9[%c0_15, %c32], %18 {strides = array<i32>} : memref<2x128xbf16, #tpu.memory_space<vmem>>, vector<2x32xbf16>,
    %c0_16 = arith.constant 0 : index
    %c2048 = arith.constant 2048 : index
    %20 = vector.load %arg1[%c0_16, %c2048] : memref<2x4096xbf16, #tpu.memory_space<vmem>>, vector<2x1024xbf16>
    %c0_17 = arith.constant 0 : index
    %c0_18 = arith.constant 0 : index
    %21 = vector.load %arg2[%c0_17, %c0_18] : memref<1024x32xbf16, #tpu.memory_space<vmem>>, vector<1024x32xbf16>
    %cst_19 = arith.constant dense<0.000000e+00> : vector<2x32xf32>
    %22 = tpu.matmul %20, %21, %cst_19 {dimension_numbers = #tpu.dot_dimension_numbers<[1], [0], [0], [1], [0, 0, 1, 1], [], []>} : vector<2x1024xbf16>, vector<1024x32xbf16>, vector<2x32xf32> -> vector<2x32xf32>
    %c0_20 = arith.constant 0 : index
    %c0_21 = arith.constant 0 : index
    %23 = vector.load %arg3[%c0_20, %c0_21] : memref<1x32xf32, #tpu.memory_space<vmem>>, vector<1x32xf32>
    %24 = vector.broadcast %23 : vector<1x32xf32> to vector<2x32xf32>
    %25 = arith.addf %22, %24 : vector<2x32xf32>
    %cst_22 = arith.constant 0.000000e+00 : f32
    %26 = vector.broadcast %cst_22 : f32 to vector<2x32xf32>
    %27 = arith.maximumf %25, %26 : vector<2x32xf32>
    %28 = arith.truncf %27 : vector<2x32xf32> to vector<2x32xbf16>
    %c0_23 = arith.constant 0 : index
    %c64 = arith.constant 64 : index
    %29 = vector.load %arg9[%c0_23, %c64] : memref<2x128xbf16, #tpu.memory_space<vmem>>, vector<2x32xbf16>
    tpu.vector_store %arg9[%c0_23, %c64], %28 {strides = array<i32>} : memref<2x128xbf16, #tpu.memory_space<vmem>>, vector<2x32xbf16>,
    %c0_24 = arith.constant 0 : index
    %c3072 = arith.constant 3072 : index
    %30 = vector.load %arg1[%c0_24, %c3072] : memref<2x4096xbf16, #tpu.memory_space<vmem>>, vector<2x1024xbf16>
    %c0_25 = arith.constant 0 : index
    %c0_26 = arith.constant 0 : index
    %31 = vector.load %arg2[%c0_25, %c0_26] : memref<1024x32xbf16, #tpu.memory_space<vmem>>, vector<1024x32xbf16>
    %cst_27 = arith.constant dense<0.000000e+00> : vector<2x32xf32>
    %32 = tpu.matmul %30, %31, %cst_27 {dimension_numbers = #tpu.dot_dimension_numbers<[1], [0], [0], [1], [0, 0, 1, 1], [], []>} : vector<2x1024xbf16>, vector<1024x32xbf16>, vector<2x32xf32> -> vector<2x32xf32>
    %c0_28 = arith.constant 0 : index
    %c0_29 = arith.constant 0 : index
    %33 = vector.load %arg3[%c0_28, %c0_29] : memref<1x32xf32, #tpu.memory_space<vmem>>, vector<1x32xf32>
    %34 = vector.broadcast %33 : vector<1x32xf32> to vector<2x32xf32>
    %35 = arith.addf %32, %34 : vector<2x32xf32>
    %cst_30 = arith.constant 0.000000e+00 : f32
    %36 = vector.broadcast %cst_30 : f32 to vector<2x32xf32>
    %37 = arith.maximumf %35, %36 : vector<2x32xf32>
    %38 = arith.truncf %37 : vector<2x32xf32> to vector<2x32xbf16>
    %c0_31 = arith.constant 0 : index
    %c96 = arith.constant 96 : index
    %39 = vector.load %arg9[%c0_31, %c96] : memref<2x128xbf16, #tpu.memory_space<vmem>>, vector<2x32xbf16>
    tpu.vector_store %arg9[%c0_31, %c96], %38 {strides = array<i32>} : memref<2x128xbf16, #tpu.memory_space<vmem>>, vector<2x32xbf16>,
    %c0_32 = arith.constant 0 : index
    %c0_33 = arith.constant 0 : index
    %40 = vector.load %arg9[%c0_32, %c0_33] : memref<2x128xbf16, #tpu.memory_space<vmem>>, vector<2x128xbf16>
    %c0_34 = arith.constant 0 : index
    %c0_35 = arith.constant 0 : index
    %41 = vector.load %arg4[%c0_34, %c0_35] : memref<128x256xbf16, #tpu.memory_space<vmem>>, vector<128x256xbf16>
    %cst_36 = arith.constant dense<0.000000e+00> : vector<2x256xf32>
    %42 = tpu.matmul %40, %41, %cst_36 {dimension_numbers = #tpu.dot_dimension_numbers<[1], [0], [0], [1], [0, 0, 1, 1], [], []>} : vector<2x128xbf16>, vector<128x256xbf16>, vector<2x256xf32> -> vector<2x256xf32>
    %c0_37 = arith.constant 0 : index
    %c0_38 = arith.constant 0 : index
    %43 = vector.load %arg5[%c0_37, %c0_38] : memref<1x256xf32, #tpu.memory_space<vmem>>, vector<1x256xf32>
    %44 = vector.broadcast %43 : vector<1x256xf32> to vector<2x256xf32>
    %45 = arith.addf %42, %44 : vector<2x256xf32>
    %cst_39 = arith.constant 0.000000e+00 : f32
    %46 = vector.broadcast %cst_39 : f32 to vector<2x256xf32>
    %47 = arith.maximumf %45, %46 : vector<2x256xf32>
    %48 = arith.truncf %47 : vector<2x256xf32> to vector<2x256xbf16>
    %c0_40 = arith.constant 0 : index
    %c0_41 = arith.constant 0 : index
    %49 = vector.load %arg6[%c0_40, %c0_41] : memref<256x128xbf16, #tpu.memory_space<vmem>>, vector<256x128xbf16>
    %cst_42 = arith.constant dense<0.000000e+00> : vector<2x128xf32>
    %50 = tpu.matmul %48, %49, %cst_42 {dimension_numbers = #tpu.dot_dimension_numbers<[1], [0], [0], [1], [0, 0, 1, 1], [], []>} : vector<2x256xbf16>, vector<256x128xbf16>, vector<2x128xf32> -> vector<2x128xf32>
    %c0_43 = arith.constant 0 : index
    %c0_44 = arith.constant 0 : index
    %51 = vector.load %arg7[%c0_43, %c0_44] : memref<1x128xf32, #tpu.memory_space<vmem>>, vector<1x128xf32>
    %52 = vector.broadcast %51 : vector<1x128xf32> to vector<2x128xf32>
    %53 = arith.addf %50, %52 : vector<2x128xf32>
    %c0_45 = arith.constant 0 : index
    %c0_46 = arith.constant 0 : index
    %54 = vector.load %arg8[%c0_45, %c0_46] : memref<2x128xf32, #tpu.memory_space<vmem>>, vector<2x128xf32>
    tpu.vector_store %arg8[%c0_45, %c0_46], %53 {strides = array<i32>} : memref<2x128xf32, #tpu.memory_space<vmem>>, vector<2x128xf32>,
    return
  }
  func.func @transform_0(%arg0: i32) -> (i32, i32) {
    %c0_i32 = arith.constant 0 : i32
    %c0_i32_0 = arith.constant 0 : i32
    return %arg0, %c0_i32 : i32, i32
  }
  func.func @transform_1(%arg0: i32) -> (i32, i32) {
    %c0_i32 = arith.constant 0 : i32
    %c0_i32_0 = arith.constant 0 : i32
    %c0_i32_1 = arith.constant 0 : i32
    return %c0_i32, %c0_i32_0 : i32, i32
  }
  func.func @transform_2(%arg0: i32) -> (i32, i32) {
    %c0_i32 = arith.constant 0 : i32
    %c0_i32_0 = arith.constant 0 : i32
    %c0_i32_1 = arith.constant 0 : i32
    return %c0_i32, %c0_i32_0 : i32, i32
  }
  func.func @transform_3(%arg0: i32) -> (i32, i32) {
    %c0_i32 = arith.constant 0 : i32
    %c0_i32_0 = arith.constant 0 : i32
    %c0_i32_1 = arith.constant 0 : i32
    return %c0_i32, %c0_i32_0 : i32, i32
  }
  func.func @transform_4(%arg0: i32) -> (i32, i32) {
    %c0_i32 = arith.constant 0 : i32
    %c0_i32_0 = arith.constant 0 : i32
    %c0_i32_1 = arith.constant 0 : i32
    return %c0_i32, %c0_i32_0 : i32, i32
  }
  func.func @transform_5(%arg0: i32) -> (i32, i32) {
    %c0_i32 = arith.constant 0 : i32
    %c0_i32_0 = arith.constant 0 : i32
    %c0_i32_1 = arith.constant 0 : i32
    return %c0_i32, %c0_i32_0 : i32, i32
  }
  func.func @transform_6(%arg0: i32) -> (i32, i32) {
    %c0_i32 = arith.constant 0 : i32
    %c0_i32_0 = arith.constant 0 : i32
    %c0_i32_1 = arith.constant 0 : i32
    return %c0_i32, %c0_i32_0 : i32, i32
  }
  func.func @transform_7(%arg0: i32) -> (i32, i32) {
    %c0_i32 = arith.constant 0 : i32
    %c0_i32_0 = arith.constant 0 : i32
    return %arg0, %c0_i32 : i32, i32
  }
}

</mosaic_0001>

<llo_original>
// kernel: qnetwork_pixels_forward.2
$region0: #{qnetwork_pixels_forward.2}
  #allocation0 [shape = 'u32[]', space=smem, size = 0x4, offset = 0x4, fixed_abs, tag = 'smem constant byte address 0x4 - core index']
  #allocation1 [shape = 'u32[72,128]{1,0:T(1,128)}', space=vmem, size = 0x9000, scoped, tag = 'internal scratch']
  %s0 = inlined_call_operand.vmem [shape: bf16[64,1536], index: 0, kind: input, shape index: {}]
  %s1 = inlined_call_operand.vmem [shape: bf16[1536,128], index: 1, kind: input, shape index: {}]
  %s2 = inlined_call_operand.vmem [shape: f32[1,128], index: 2, kind: input, shape index: {}]
  %s3 = inlined_call_operand.vmem [shape: bf16[64,128], index: 3, kind: output, shape index: {}]
  %s4 = sld [smem:[#allocation0]]
  $region45: #{qnetwork_pixels_forward.2} parent=0
    _
  %s6 = ssub.s32 1, %s4
  %s7 = scalar_select 0, %s6, %s4
  loop: start=0, step=1, limit=4
  $region2: #{qnetwork_pixels_forward.2} parent=0 // loop_pre_header
    _
  $region3: #{qnetwork_pixels_forward.2} parent=0 // loop_header
    %s9 = sphi 0, %s13
    %p10 = scmp.ge.s32.totalorder %s9, 4
    %s19 = sphi 0, %s21
    %s22 = sphi 0, %s19
    %s23 = sphi 0, %s22
    %s39 = sphi 0, %s23
    %s43 = sphi 0, %s43
    %s45 = sphi 0, %s43
    %s46 = sphi 0, %s45
    %s60 = sphi 0, %s46
    %s64 = sphi 0, %s64
    %s66 = sphi 0, %s64
    %s67 = sphi 0, %s66
    %s81 = sphi 0, %s67
    %s87 = sphi 0, %s89
    %s90 = sphi 0, %s87
    %s91 = sphi 0, %s90
    %s107 = sphi 0, %s91
  $region4: #{qnetwork_pixels_forward.2} parent=0 // loop_header_branch
    %12 = sbr.rel (%p10) target = $region8
  $region5: #{qnetwork_pixels_forward.2} parent=0 // loop_body
    %s14 = ssub.s32 %s9, 1
    %s15 = ssub.s32 %s9, 2
    %s16 = sadd.s32 %s9, 1
    %s17 = ssub.s32 %s9, %s16
    %p18 = scmp.eq.s32.totalorder %s17, 0
    %s20 = sadd.s32 %s19, 1
    %s21 = scalar_select %p18, %s19, %s20
    %p24 = pneg %p18
    %p25 = scmp.eq.s32.totalorder %s9, 1
    %p26 = por %p24, %p25
    %p27 = scmp.ne.s32.totalorder %s19, %s22
    %p28 = scmp.eq.s32.totalorder %s9, 0
    %p29 = por %p27, %p28
    %p30 = scmp.ne.s32.totalorder %s19, %s22
    %p31 = scmp.eq.s32.totalorder %s14, 1
    %p32 = por %p30, %p31
    %p33 = scmp.ne.s32.totalorder %s22, %s23
    %p34 = scmp.eq.s32.totalorder %s14, 0
    %p35 = por %p33, %p34
    %p36 = scmp.ne.s32.totalorder %s22, %s23
    %p37 = scmp.eq.s32.totalorder %s15, 1
    %p38 = por %p36, %p37
    %p40 = scmp.ne.s32.totalorder %s23, %s39
    %p41 = scmp.eq.s32.totalorder %s15, 0
    %p42 = por %p40, %p41
    %s44 = sadd.s32 %s43, 1
    %p47 = scmp.eq.s32.totalorder %s9, 1
    %p48 = scmp.ne.s32.totalorder %s43, %s45
    %p49 = scmp.eq.s32.totalorder %s9, 0
    %p50 = por %p48, %p49
    %p51 = scmp.ne.s32.totalorder %s43, %s45
    %p52 = scmp.eq.s32.totalorder %s14, 1
    %p53 = por %p51, %p52
    %p54 = scmp.ne.s32.totalorder %s45, %s46
    %p55 = scmp.eq.s32.totalorder %s14, 0
    %p56 = por %p54, %p55
    %p57 = scmp.ne.s32.totalorder %s45, %s46
    %p58 = scmp.eq.s32.totalorder %s15, 1
    %p59 = por %p57, %p58
    %p61 = scmp.ne.s32.totalorder %s46, %s60
    %p62 = scmp.eq.s32.totalorder %s15, 0
    %p63 = por %p61, %p62
    %s65 = sadd.s32 %s64, 1
    %p68 = scmp.eq.s32.totalorder %s9, 1
    %p69 = scmp.ne.s32.totalorder %s64, %s66
    %p70 = scmp.eq.s32.totalorder %s9, 0
    %p71 = por %p69, %p70
    %p72 = scmp.ne.s32.totalorder %s64, %s66
    %p73 = scmp.eq.s32.totalorder %s14, 1
    %p74 = por %p72, %p73
    %p75 = scmp.ne.s32.totalorder %s66, %s67
    %p76 = scmp.eq.s32.totalorder %s14, 0
    %p77 = por %p75, %p76
    %p78 = scmp.ne.s32.totalorder %s66, %s67
    %p79 = scmp.eq.s32.totalorder %s15, 1
    %p80 = por %p78, %p79
    %p82 = scmp.ne.s32.totalorder %s67, %s81
    %p83 = scmp.eq.s32.totalorder %s15, 0
    %p84 = por %p82, %p83
    %s85 = ssub.s32 %s9, %s16
    %p86 = scmp.eq.s32.totalorder %s85, 0
    %s88 = sadd.s32 %s87, 1
    %s89 = scalar_select %p86, %s87, %s88
    %p92 = pneg %p86
    %p93 = scmp.eq.s32.totalorder %s9, 1
    %p94 = por %p92, %p93
    %p95 = scmp.ne.s32.totalorder %s87, %s90
    %p96 = scmp.eq.s32.totalorder %s9, 0
    %p97 = por %p95, %p96
    %p98 = scmp.ne.s32.totalorder %s87, %s90
    %p99 = scmp.eq.s32.totalorder %s14, 1
    %p100 = por %p98, %p99
    %p101 = scmp.ne.s32.totalorder %s90, %s91
    %p102 = scmp.eq.s32.totalorder %s14, 0
    %p103 = por %p101, %p102
    %p104 = scmp.ne.s32.totalorder %s90, %s91
    %p105 = scmp.eq.s32.totalorder %s15, 1
    %p106 = por %p104, %p105
    %p108 = scmp.ne.s32.totalorder %s91, %s107
    %p109 = scmp.eq.s32.totalorder %s15, 0
    %p110 = por %p108, %p109
    %p111 = scmp.le.s32.totalorder 1, %s9
    %p112 = scmp.lt.s32.totalorder %s9, 3
    %p113 = pnand %p111, %p112
    %p114 = pneg %p113
    // Predicated region
    $region9: #{qnetwork_pixels_forward.2} parent=5 // pred_check
      _
    $region10: #{qnetwork_pixels_forward.2} parent=5 // pred_check_branch
      %116 = sbr.rel (%p113) target = $region12
    $region11: #{qnetwork_pixels_forward.2} parent=5 // pred_region
      %s117 = ssub.s32 %s9, 1
      // Predicated region
      $region13: #{qnetwork_pixels_forward.2} parent=11 // pred_check
        %p118 = pneg %p56
      $region14: #{qnetwork_pixels_forward.2} parent=11 // pred_check_branch
        %120 = sbr.rel (%p118) target = $region16
      $region15: #{qnetwork_pixels_forward.2} parent=11 // pred_region
        _
      $region16: #{qnetwork_pixels_forward.2} parent=11 // pred_fallthru
        _
      // Predicated region
      $region17: #{qnetwork_pixels_forward.2} parent=11 // pred_check
        %p121 = pneg %p77
      $region18: #{qnetwork_pixels_forward.2} parent=11 // pred_check_branch
        %123 = sbr.rel (%p121) target = $region20
      $region19: #{qnetwork_pixels_forward.2} parent=11 // pred_region
        _
      $region20: #{qnetwork_pixels_forward.2} parent=11 // pred_fallthru
        _
    $region12: #{qnetwork_pixels_forward.2} parent=5 // pred_fallthru
      _
    %p124 = scmp.lt.s32.totalorder %s9, 2
    // Predicated region
    $region21: #{qnetwork_pixels_forward.2} parent=5 // pred_check
      %p125 = pneg %p124
    $region22: #{qnetwork_pixels_forward.2} parent=5 // pred_check_branch
      %127 = sbr.rel (%p125) target = $region24
    $region23: #{qnetwork_pixels_forward.2} parent=5 // pred_region
      // Predicated region
      $region25: #{qnetwork_pixels_forward.2} parent=23 // pred_check
        %p128 = pneg %p29
      $region26: #{qnetwork_pixels_forward.2} parent=23 // pred_check_branch
        %130 = sbr.rel (%p128) target = $region28
      $region27: #{qnetwork_pixels_forward.2} parent=23 // pred_region
        %s131 = smul.u32 4, %s9
        %p132 = scmp.lt.s32.totalorder %s131, 7
        %s133 = scalar_select %p132, %s131, 7
        %s134 = smul.addr %s133, 12
        %s135 = smul.addr %s134, 4
        %s136 = scalar_lea.vmem %s0, %s135
        %s137 = smul.u32 4, %s9
      $region28: #{qnetwork_pixels_forward.2} parent=23 // pred_fallthru
        _
    $region24: #{qnetwork_pixels_forward.2} parent=5 // pred_fallthru
      _
    %p138 = scmp.le.s32.totalorder 1, %s9
    %p139 = scmp.lt.s32.totalorder %s9, 3
    %p140 = pnand %p138, %p139
    %p141 = pneg %p140
    // Predicated region
    $region29: #{qnetwork_pixels_forward.2} parent=5 // pred_check
      _
    $region30: #{qnetwork_pixels_forward.2} parent=5 // pred_check_branch
      %143 = sbr.rel (%p140) target = $region32
    $region31: #{qnetwork_pixels_forward.2} parent=5 // pred_region
      %s144 = ssub.s32 %s9, 1
      %s145 = smul.u32 4, %s14
      %p146 = scmp.lt.s32.totalorder %s145, 7
      %s147 = scalar_select %p146, %s145, 7
      %s148 = smul.addr %s147, 12
      %s149 = smul.addr %s148, 4
      %s150 = scalar_lea.vmem %s0, %s149
      %p151 = pneg %p35
      %p152 = pneg %p32
      %p153 = pneg %p56
      %p154 = pneg %p53
      %p155 = pneg %p77
      %p156 = pneg %p74
      %p157 = pneg %p103
      %p158 = pneg %p100
      %s159 = smul.u32 4, %s14
      %p160 = scmp.lt.s32.totalorder %s159, 7
      %s161 = scalar_select %p160, %s159, 7
      %s162 = smul.addr %s161, 4
      %s163 = scalar_lea.vmem %s3, %s162
      %s164 = smul.u32 4, %s14
      %p165 = scmp.lt.s32.totalorder %s164, 7
      %s166 = scalar_select %p165, %s164, 7
      %s167 = smul.addr %s166, 12
      %s168 = smul.addr %s167, 4
      %s169 = scalar_lea.vmem %s0, %s168
      %s170 = smul.u32 4, %s14
      %s171 = smul.u32 4, %s14
      %p172 = scmp.lt.s32.totalorder %s171, 7
      %s173 = scalar_select %p172, %s171, 7
      %s174 = smul.addr %s173, 4
      %s175 = scalar_lea.vmem %s3, %s174
      %s176 = smul.u32 4, %s14
      %v177 = vld [vmem:[%s169] sm:$0xff]
      %v178 = vld [vmem:[%s169 + $0x8] sm:$0xff]
      %v179 = vld [vmem:[%s169 + $0x10] sm:$0xff]
      %v180 = vld [vmem:[%s169 + $0x18] sm:$0xff]
      %v181 = vld [vmem:[%s169 + $0x20] sm:$0xff]
      %v182 = vld [vmem:[%s169 + $0x28] sm:$0xff]
      %v183 = vld [vmem:[%s169 + $0x30] sm:$0xff]
      %v184 = vld [vmem:[%s169 + $0x38] sm:$0xff]
      %v185 = vld [vmem:[%s169 + $0x40] sm:$0xff]
      %v186 = vld [vmem:[%s169 + $0x48] sm:$0xff]
      %v187 = vld [vmem:[%s169 + $0x50] sm:$0xff]
      %v188 = vld [vmem:[%s169 + $0x58] sm:$0xff]
      %v189 = vld [vmem:[%s169 + $0x60] sm:$0xff]
      %v190 = vld [vmem:[%s169 + $0x68] sm:$0xff]
      %v191 = vld [vmem:[%s169 + $0x70] sm:$0xff]
      %v192 = vld [vmem:[%s169 + $0x78] sm:$0xff]
      %v193 = vld [vmem:[%s169 + $0x80] sm:$0xff]
      %v194 = vld [vmem:[%s169 + $0x88] sm:$0xff]
      %v195 = vld [vmem:[%s169 + $0x90] sm:$0xff]
      %v196 = vld [vmem:[%s169 + $0x98] sm:$0xff]
      %v197 = vld [vmem:[%s169 + $0xa0] sm:$0xff]
      %v198 = vld [vmem:[%s169 + $0xa8] sm:$0xff]
      %v199 = vld [vmem:[%s169 + $0xb0] sm:$0xff]
      %v200 = vld [vmem:[%s169 + $0xb8] sm:$0xff]
      %v201 = vld [vmem:[%s1] sm:$0xf]
      %v202 = vld [vmem:[%s1 + $0x4] sm:$0xf]
      %v203 = vld [vmem:[%s1 + $0x8] sm:$0xf]
      %v204 = vld [vmem:[%s1 + $0xc] sm:$0xf]
      %v205 = vld [vmem:[%s1 + $0x10] sm:$0xf]
      %v206 = vld [vmem:[%s1 + $0x14] sm:$0xf]
      %v207 = vld [vmem:[%s1 + $0x18] sm:$0xf]
      %v208 = vld [vmem:[%s1 + $0x1c] sm:$0xf]
      %v209 = vld [vmem:[%s1 + $0x20] sm:$0xf]
      %v210 = vld [vmem:[%s1 + $0x24] sm:$0xf]
      %v211 = vld [vmem:[%s1 + $0x28] sm:$0xf]
      %v212 = vld [vmem:[%s1 + $0x2c] sm:$0xf]
      %v213 = vld [vmem:[%s1 + $0x30] sm:$0xf]
      %v214 = vld [vmem:[%s1 + $0x34] sm:$0xf]
      %v215 = vld [vmem:[%s1 + $0x38] sm:$0xf]
      %v216 = vld [vmem:[%s1 + $0x3c] sm:$0xf]
      %v217 = vld [vmem:[%s1 + $0x40] sm:$0xf]
      %v218 = vld [vmem:[%s1 + $0x44] sm:$0xf]
      %v219 = vld [vmem:[%s1 + $0x48] sm:$0xf]
      %v220 = vld [vmem:[%s1 + $0x4c] sm:$0xf]
      %v221 = vld [vmem:[%s1 + $0x50] sm:$0xf]
      %v222 = vld [vmem:[%s1 + $0x54] sm:$0xf]
      %v223 = vld [vmem:[%s1 + $0x58] sm:$0xf]
      %v224 = vld [vmem:[%s1 + $0x5c] sm:$0xf]
      %v225 = vld [vmem:[%s1 + $0x60] sm:$0xf]
      %v226 = vld [vmem:[%s1 + $0x64] sm:$0xf]
      %v227 = vld [vmem:[%s1 + $0x68] sm:$0xf]
      %v228 = vld [vmem:[%s1 + $0x6c] sm:$0xf]
      %v229 = vld [vmem:[%s1 + $0x70] sm:$0xf]
      %v230 = vld [vmem:[%s1 + $0x74] sm:$0xf]
      %v231 = vld [vmem:[%s1 + $0x78] sm:$0xf]
      %v232 = vld [vmem:[%s1 + $0x7c] sm:$0xf]
      %v233 = vld [vmem:[%s1 + $0x80] sm:$0xf]
      %v234 = vld [vmem:[%s1 + $0x84] sm:$0xf]
      %v235 = vld [vmem:[%s1 + $0x88] sm:$0xf]
      %v236 = vld [vmem:[%s1 + $0x8c] sm:$0xf]
      %v237 = vld [vmem:[%s1 + $0x90] sm:$0xf]
      %v238 = vld [vmem:[%s1 + $0x94] sm:$0xf]
      %v239 = vld [vmem:[%s1 + $0x98] sm:$0xf]
      %v240 = vld [vmem:[%s1 + $0x9c] sm:$0xf]
      %v241 = vld [vmem:[%s1 + $0xa0] sm:$0xf]
      %v242 = vld [vmem:[%s1 + $0xa4] sm:$0xf]
      %v243 = vld [vmem:[%s1 + $0xa8] sm:$0xf]
      %v244 = vld [vmem:[%s1 + $0xac] sm:$0xf]
      %v245 = vld [vmem:[%s1 + $0xb0] sm:$0xf]
      %v246 = vld [vmem:[%s1 + $0xb4] sm:$0xf]
      %v247 = vld [vmem:[%s1 + $0xb8] sm:$0xf]
      %v248 = vld [vmem:[%s1 + $0xbc] sm:$0xf]
      %v249 = vld [vmem:[%s1 + $0xc0] sm:$0xf]
      %v250 = vld [vmem:[%s1 + $0xc4] sm:$0xf]
      %v251 = vld [vmem:[%s1 + $0xc8] sm:$0xf]
      %v252 = vld [vmem:[%s1 + $0xcc] sm:$0xf]
      %v253 = vld [vmem:[%s1 + $0xd0] sm:$0xf]
      %v254 = vld [vmem:[%s1 + $0xd4] sm:$0xf]
      %v255 = vld [vmem:[%s1 + $0xd8] sm:$0xf]
      %v256 = vld [vmem:[%s1 + $0xdc] sm:$0xf]
      %v257 = vld [vmem:[%s1 + $0xe0] sm:$0xf]
      %v258 = vld [vmem:[%s1 + $0xe4] sm:$0xf]
      %v259 = vld [vmem:[%s1 + $0xe8] sm:$0xf]
      %v260 = vld [vmem:[%s1 + $0xec] sm:$0xf]
      %v261 = vld [vmem:[%s1 + $0xf0] sm:$0xf]
      %v262 = vld [vmem:[%s1 + $0xf4] sm:$0xf]
      %v263 = vld [vmem:[%s1 + $0xf8] sm:$0xf]
      %v264 = vld [vmem:[%s1 + $0xfc] sm:$0xf]
      %v265 = vld [vmem:[%s1 + $0x100] sm:$0xf]
      %v266 = vld [vmem:[%s1 + $0x104] sm:$0xf]
      %v267 = vld [vmem:[%s1 + $0x108] sm:$0xf]
      %v268 = vld [vmem:[%s1 + $0x10c] sm:$0xf]
      %v269 = vld [vmem:[%s1 + $0x110] sm:$0xf]
      %v270 = vld [vmem:[%s1 + $0x114] sm:$0xf]
      %v271 = vld [vmem:[%s1 + $0x118] sm:$0xf]
      %v272 = vld [vmem:[%s1 + $0x11c] sm:$0xf]
      %v273 = vld [vmem:[%s1 + $0x120] sm:$0xf]
      %v274 = vld [vmem:[%s1 + $0x124] sm:$0xf]
      %v275 = vld [vmem:[%s1 + $0x128] sm:$0xf]
      %v276 = vld [vmem:[%s1 + $0x12c] sm:$0xf]
      %v277 = vld [vmem:[%s1 + $0x130] sm:$0xf]
      %v278 = vld [vmem:[%s1 + $0x134] sm:$0xf]
      %v279 = vld [vmem:[%s1 + $0x138] sm:$0xf]
      %v280 = vld [vmem:[%s1 + $0x13c] sm:$0xf]
      %v281 = vld [vmem:[%s1 + $0x140] sm:$0xf]
      %v282 = vld [vmem:[%s1 + $0x144] sm:$0xf]
      %v283 = vld [vmem:[%s1 + $0x148] sm:$0xf]
      %v284 = vld [vmem:[%s1 + $0x14c] sm:$0xf]
      %v285 = vld [vmem:[%s1 + $0x150] sm:$0xf]
      %v286 = vld [vmem:[%s1 + $0x154] sm:$0xf]
      %v287 = vld [vmem:[%s1 + $0x158] sm:$0xf]
      %v288 = vld [vmem:[%s1 + $0x15c] sm:$0xf]
      %v289 = vld [vmem:[%s1 + $0x160] sm:$0xf]
      %v290 = vld [vmem:[%s1 + $0x164] sm:$0xf]
      %v291 = vld [vmem:[%s1 + $0x168] sm:$0xf]
      %v292 = vld [vmem:[%s1 + $0x16c] sm:$0xf]
      %v293 = vld [vmem:[%s1 + $0x170] sm:$0xf]
      %v294 = vld [vmem:[%s1 + $0x174] sm:$0xf]
      %v295 = vld [vmem:[%s1 + $0x178] sm:$0xf]
      %v296 = vld [vmem:[%s1 + $0x17c] sm:$0xf]
      %v297 = vld [vmem:[%s1 + $0x180] sm:$0xf]
      %v298 = vld [vmem:[%s1 + $0x184] sm:$0xf]
      %v299 = vld [vmem:[%s1 + $0x188] sm:$0xf]
      %v300 = vld [vmem:[%s1 + $0x18c] sm:$0xf]
      %v301 = vld [vmem:[%s1 + $0x190] sm:$0xf]
      %v302 = vld [vmem:[%s1 + $0x194] sm:$0xf]
      %v303 = vld [vmem:[%s1 + $0x198] sm:$0xf]
      %v304 = vld [vmem:[%s1 + $0x19c] sm:$0xf]
      %v305 = vld [vmem:[%s1 + $0x1a0] sm:$0xf]
      %v306 = vld [vmem:[%s1 + $0x1a4] sm:$0xf]
      %v307 = vld [vmem:[%s1 + $0x1a8] sm:$0xf]
      %v308 = vld [vmem:[%s1 + $0x1ac] sm:$0xf]
      %v309 = vld [vmem:[%s1 + $0x1b0] sm:$0xf]
      %v310 = vld [vmem:[%s1 + $0x1b4] sm:$0xf]
      %v311 = vld [vmem:[%s1 + $0x1b8] sm:$0xf]
      %v312 = vld [vmem:[%s1 + $0x1bc] sm:$0xf]
      %v313 = vld [vmem:[%s1 + $0x1c0] sm:$0xf]
      %v314 = vld [vmem:[%s1 + $0x1c4] sm:$0xf]
      %v315 = vld [vmem:[%s1 + $0x1c8] sm:$0xf]
      %v316 = vld [vmem:[%s1 + $0x1cc] sm:$0xf]
      %v317 = vld [vmem:[%s1 + $0x1d0] sm:$0xf]
      %v318 = vld [vmem:[%s1 + $0x1d4] sm:$0xf]
      %v319 = vld [vmem:[%s1 + $0x1d8] sm:$0xf]
      %v320 = vld [vmem:[%s1 + $0x1dc] sm:$0xf]
      %v321 = vld [vmem:[%s1 + $0x1e0] sm:$0xf]
      %v322 = vld [vmem:[%s1 + $0x1e4] sm:$0xf]
      %v323 = vld [vmem:[%s1 + $0x1e8] sm:$0xf]
      %v324 = vld [vmem:[%s1 + $0x1ec] sm:$0xf]
      %v325 = vld [vmem:[%s1 + $0x1f0] sm:$0xf]
      %v326 = vld [vmem:[%s1 + $0x1f4] sm:$0xf]
      %v327 = vld [vmem:[%s1 + $0x1f8] sm:$0xf]
      %v328 = vld [vmem:[%s1 + $0x1fc] sm:$0xf]
      %v329 = vld [vmem:[%s1 + $0x200] sm:$0xf]
      %v330 = vld [vmem:[%s1 + $0x204] sm:$0xf]
      %v331 = vld [vmem:[%s1 + $0x208] sm:$0xf]
      %v332 = vld [vmem:[%s1 + $0x20c] sm:$0xf]
      %v333 = vld [vmem:[%s1 + $0x210] sm:$0xf]
      %v334 = vld [vmem:[%s1 + $0x214] sm:$0xf]
      %v335 = vld [vmem:[%s1 + $0x218] sm:$0xf]
      %v336 = vld [vmem:[%s1 + $0x21c] sm:$0xf]
      %v337 = vld [vmem:[%s1 + $0x220] sm:$0xf]
      %v338 = vld [vmem:[%s1 + $0x224] sm:$0xf]
      %v339 = vld [vmem:[%s1 + $0x228] sm:$0xf]
      %v340 = vld [vmem:[%s1 + $0x22c] sm:$0xf]
      %v341 = vld [vmem:[%s1 + $0x230] sm:$0xf]
      %v342 = vld [vmem:[%s1 + $0x234] sm:$0xf]
      %v343 = vld [vmem:[%s1 + $0x238] sm:$0xf]
      %v344 = vld [vmem:[%s1 + $0x23c] sm:$0xf]
      %v345 = vld [vmem:[%s1 + $0x240] sm:$0xf]
      %v346 = vld [vmem:[%s1 + $0x244] sm:$0xf]
      %v347 = vld [vmem:[%s1 + $0x248] sm:$0xf]
      %v348 = vld [vmem:[%s1 + $0x24c] sm:$0xf]
      %v349 = vld [vmem:[%s1 + $0x250] sm:$0xf]
      %v350 = vld [vmem:[%s1 + $0x254] sm:$0xf]
      %v351 = vld [vmem:[%s1 + $0x258] sm:$0xf]
      %v352 = vld [vmem:[%s1 + $0x25c] sm:$0xf]
      %v353 = vld [vmem:[%s1 + $0x260] sm:$0xf]
      %v354 = vld [vmem:[%s1 + $0x264] sm:$0xf]
      %v355 = vld [vmem:[%s1 + $0x268] sm:$0xf]
      %v356 = vld [vmem:[%s1 + $0x26c] sm:$0xf]
      %v357 = vld [vmem:[%s1 + $0x270] sm:$0xf]
      %v358 = vld [vmem:[%s1 + $0x274] sm:$0xf]
      %v359 = vld [vmem:[%s1 + $0x278] sm:$0xf]
      %v360 = vld [vmem:[%s1 + $0x27c] sm:$0xf]
      %v361 = vld [vmem:[%s1 + $0x280] sm:$0xf]
      %v362 = vld [vmem:[%s1 + $0x284] sm:$0xf]
      %v363 = vld [vmem:[%s1 + $0x288] sm:$0xf]
      %v364 = vld [vmem:[%s1 + $0x28c] sm:$0xf]
      %v365 = vld [vmem:[%s1 + $0x290] sm:$0xf]
      %v366 = vld [vmem:[%s1 + $0x294] sm:$0xf]
      %v367 = vld [vmem:[%s1 + $0x298] sm:$0xf]
      %v368 = vld [vmem:[%s1 + $0x29c] sm:$0xf]
      %v369 = vld [vmem:[%s1 + $0x2a0] sm:$0xf]
      %v370 = vld [vmem:[%s1 + $0x2a4] sm:$0xf]
      %v371 = vld [vmem:[%s1 + $0x2a8] sm:$0xf]
      %v372 = vld [vmem:[%s1 + $0x2ac] sm:$0xf]
      %v373 = vld [vmem:[%s1 + $0x2b0] sm:$0xf]
      %v374 = vld [vmem:[%s1 + $0x2b4] sm:$0xf]
      %v375 = vld [vmem:[%s1 + $0x2b8] sm:$0xf]
      %v376 = vld [vmem:[%s1 + $0x2bc] sm:$0xf]
      %v377 = vld [vmem:[%s1 + $0x2c0] sm:$0xf]
      %v378 = vld [vmem:[%s1 + $0x2c4] sm:$0xf]
      %v379 = vld [vmem:[%s1 + $0x2c8] sm:$0xf]
      %v380 = vld [vmem:[%s1 + $0x2cc] sm:$0xf]
      %v381 = vld [vmem:[%s1 + $0x2d0] sm:$0xf]
      %v382 = vld [vmem:[%s1 + $0x2d4] sm:$0xf]
      %v383 = vld [vmem:[%s1 + $0x2d8] sm:$0xf]
      %v384 = vld [vmem:[%s1 + $0x2dc] sm:$0xf]
      %v385 = vld [vmem:[%s1 + $0x2e0] sm:$0xf]
      %v386 = vld [vmem:[%s1 + $0x2e4] sm:$0xf]
      %v387 = vld [vmem:[%s1 + $0x2e8] sm:$0xf]
      %v388 = vld [vmem:[%s1 + $0x2ec] sm:$0xf]
      %v389 = vld [vmem:[%s1 + $0x2f0] sm:$0xf]
      %v390 = vld [vmem:[%s1 + $0x2f4] sm:$0xf]
      %v391 = vld [vmem:[%s1 + $0x2f8] sm:$0xf]
      %v392 = vld [vmem:[%s1 + $0x2fc] sm:$0xf]
      %v393 = vld [vmem:[%s2] sm:$0x1]
      %v395 = vperm.slane %v393, 0
      %v421 = vunpack.c.l.b16 %v177
      %v422 = vunpack.c.h.b16 %v177
      %v423 = vunpack.c.l.b16 %v178
      %v424 = vunpack.c.h.b16 %v178
      %v425 = vunpack.c.l.b16 %v179
      %v426 = vunpack.c.h.b16 %v179
      %v427 = vunpack.c.l.b16 %v180
      %v428 = vunpack.c.h.b16 %v180
      %v429 = vunpack.c.l.b16 %v181
      %v430 = vunpack.c.h.b16 %v181
      %v431 = vunpack.c.l.b16 %v182
      %v432 = vunpack.c.h.b16 %v182
      %v433 = vunpack.c.l.b16 %v183
      %v434 = vunpack.c.h.b16 %v183
      %v435 = vunpack.c.l.b16 %v184
      %v436 = vunpack.c.h.b16 %v184
      %v437 = vunpack.c.l.b16 %v185
      %v438 = vunpack.c.h.b16 %v185
      %v439 = vunpack.c.l.b16 %v186
      %v440 = vunpack.c.h.b16 %v186
      %v441 = vunpack.c.l.b16 %v187
      %v442 = vunpack.c.h.b16 %v187
      %v443 = vunpack.c.l.b16 %v188
      %v444 = vunpack.c.h.b16 %v188
      %v445 = vunpack.c.l.b16 %v189
      %v446 = vunpack.c.h.b16 %v189
      %v447 = vunpack.c.l.b16 %v190
      %v448 = vunpack.c.h.b16 %v190
      %v449 = vunpack.c.l.b16 %v191
      %v450 = vunpack.c.h.b16 %v191
      %v451 = vunpack.c.l.b16 %v192
      %v452 = vunpack.c.h.b16 %v192
      %v453 = vunpack.c.l.b16 %v193
      %v454 = vunpack.c.h.b16 %v193
      %v455 = vunpack.c.l.b16 %v194
      %v456 = vunpack.c.h.b16 %v194
      %v457 = vunpack.c.l.b16 %v195
      %v458 = vunpack.c.h.b16 %v195
      %v459 = vunpack.c.l.b16 %v196
      %v460 = vunpack.c.h.b16 %v196
      %v461 = vunpack.c.l.b16 %v197
      %v462 = vunpack.c.h.b16 %v197
      %v463 = vunpack.c.l.b16 %v198
      %v464 = vunpack.c.h.b16 %v198
      %v465 = vunpack.c.l.b16 %v199
      %v466 = vunpack.c.h.b16 %v199
      %v467 = vunpack.c.l.b16 %v200
      %v468 = vunpack.c.h.b16 %v200
      %v469 = vpack.c.b16 %v433, %v421
      %v470 = vpack.c.b16 %v434, %v422
      %v471 = vpack.c.b16 %v435, %v423
      %v472 = vpack.c.b16 %v436, %v424
      %v473 = vpack.c.b16 %v437, %v425
      %v474 = vpack.c.b16 %v438, %v426
      %v475 = vpack.c.b16 %v439, %v427
      %v476 = vpack.c.b16 %v440, %v428
      %v477 = vpack.c.b16 %v441, %v429
      %v478 = vpack.c.b16 %v442, %v430
      %v479 = vpack.c.b16 %v443, %v431
      %v480 = vpack.c.b16 %v444, %v432
      %v481 = vpack.c.b16 %v457, %v445
      %v482 = vpack.c.b16 %v458, %v446
      %v483 = vpack.c.b16 %v459, %v447
      %v484 = vpack.c.b16 %v460, %v448
      %v485 = vpack.c.b16 %v461, %v449
      %v486 = vpack.c.b16 %v462, %v450
      %v487 = vpack.c.b16 %v463, %v451
      %v488 = vpack.c.b16 %v464, %v452
      %v489 = vpack.c.b16 %v465, %v453
      %v490 = vpack.c.b16 %v466, %v454
      %v491 = vpack.c.b16 %v467, %v455
      %v492 = vpack.c.b16 %v468, %v456
      %v709 = vunpack.c.l.b16 %v201
      %v710 = vunpack.c.l.b16 %v202
      %v711 = vunpack.c.l.b16 %v203
      %v712 = vunpack.c.l.b16 %v204
      %v713 = vunpack.c.l.b16 %v205
      %v714 = vunpack.c.l.b16 %v206
      %v715 = vunpack.c.l.b16 %v207
      %v716 = vunpack.c.l.b16 %v208
      %v717 = vunpack.c.l.b16 %v209
      %v718 = vunpack.c.l.b16 %v210
      %v719 = vunpack.c.l.b16 %v211
      %v720 = vunpack.c.l.b16 %v212
      %v721 = vunpack.c.l.b16 %v213
      %v722 = vunpack.c.l.b16 %v214
      %v723 = vunpack.c.l.b16 %v215
      %v724 = vunpack.c.l.b16 %v216
      %v725 = vunpack.c.l.b16 %v217
      %v726 = vunpack.c.l.b16 %v218
      %v727 = vunpack.c.l.b16 %v219
      %v728 = vunpack.c.l.b16 %v220
      %v729 = vunpack.c.l.b16 %v221
      %v730 = vunpack.c.l.b16 %v222
      %v731 = vunpack.c.l.b16 %v223
      %v732 = vunpack.c.l.b16 %v224
      %v733 = vunpack.c.l.b16 %v225
      %v734 = vunpack.c.l.b16 %v226
      %v735 = vunpack.c.l.b16 %v227
      %v736 = vunpack.c.l.b16 %v228
      %v737 = vunpack.c.l.b16 %v229
      %v738 = vunpack.c.l.b16 %v230
      %v739 = vunpack.c.l.b16 %v231
      %v740 = vunpack.c.l.b16 %v232
      %v741 = vunpack.c.l.b16 %v233
      %v742 = vunpack.c.l.b16 %v234
      %v743 = vunpack.c.l.b16 %v235
      %v744 = vunpack.c.l.b16 %v236
      %v745 = vunpack.c.l.b16 %v237
      %v746 = vunpack.c.l.b16 %v238
      %v747 = vunpack.c.l.b16 %v239
      %v748 = vunpack.c.l.b16 %v240
      %v749 = vunpack.c.l.b16 %v241
      %v750 = vunpack.c.l.b16 %v242
      %v751 = vunpack.c.l.b16 %v243
      %v752 = vunpack.c.l.b16 %v244
      %v753 = vunpack.c.l.b16 %v245
      %v754 = vunpack.c.l.b16 %v246
      %v755 = vunpack.c.l.b16 %v247
      %v756 = vunpack.c.l.b16 %v248
      %v757 = vunpack.c.l.b16 %v249
      %v758 = vunpack.c.l.b16 %v250
      %v759 = vunpack.c.l.b16 %v251
      %v760 = vunpack.c.l.b16 %v252
      %v761 = vunpack.c.l.b16 %v253
      %v762 = vunpack.c.l.b16 %v254
      %v763 = vunpack.c.l.b16 %v255
      %v764 = vunpack.c.l.b16 %v256
      %v765 = vunpack.c.l.b16 %v257
      %v766 = vunpack.c.l.b16 %v258
      %v767 = vunpack.c.l.b16 %v259
      %v768 = vunpack.c.l.b16 %v260
      %v769 = vunpack.c.l.b16 %v261
      %v770 = vunpack.c.l.b16 %v262
      %v771 = vunpack.c.l.b16 %v263
      %v772 = vunpack.c.l.b16 %v264
      %v773 = vunpack.c.l.b16 %v265
      %v774 = vunpack.c.l.b16 %v266
      %v775 = vunpack.c.l.b16 %v267
      %v776 = vunpack.c.l.b16 %v268
      %v777 = vunpack.c.l.b16 %v269
      %v778 = vunpack.c.l.b16 %v270
      %v779 = vunpack.c.l.b16 %v271
      %v780 = vunpack.c.l.b16 %v272
      %v781 = vunpack.c.l.b16 %v273
      %v782 = vunpack.c.l.b16 %v274
      %v783 = vunpack.c.l.b16 %v275
      %v784 = vunpack.c.l.b16 %v276
      %v785 = vunpack.c.l.b16 %v277
      %v786 = vunpack.c.l.b16 %v278
      %v787 = vunpack.c.l.b16 %v279
      %v788 = vunpack.c.l.b16 %v280
      %v789 = vunpack.c.l.b16 %v281
      %v790 = vunpack.c.l.b16 %v282
      %v791 = vunpack.c.l.b16 %v283
      %v792 = vunpack.c.l.b16 %v284
      %v793 = vunpack.c.l.b16 %v285
      %v794 = vunpack.c.l.b16 %v286
      %v795 = vunpack.c.l.b16 %v287
      %v796 = vunpack.c.l.b16 %v288
      %v797 = vunpack.c.l.b16 %v289
      %v798 = vunpack.c.l.b16 %v290
      %v799 = vunpack.c.l.b16 %v291
      %v800 = vunpack.c.l.b16 %v292
      %v801 = vunpack.c.l.b16 %v293
      %v802 = vunpack.c.l.b16 %v294
      %v803 = vunpack.c.l.b16 %v295
      %v804 = vunpack.c.l.b16 %v296
      %v805 = vunpack.c.l.b16 %v297
      %v806 = vunpack.c.l.b16 %v298
      %v807 = vunpack.c.l.b16 %v299
      %v808 = vunpack.c.l.b16 %v300
      %v809 = vunpack.c.l.b16 %v301
      %v810 = vunpack.c.l.b16 %v302
      %v811 = vunpack.c.l.b16 %v303
      %v812 = vunpack.c.l.b16 %v304
      %v813 = vunpack.c.l.b16 %v305
      %v814 = vunpack.c.l.b16 %v306
      %v815 = vunpack.c.l.b16 %v307
      %v816 = vunpack.c.l.b16 %v308
      %v817 = vunpack.c.l.b16 %v309
      %v818 = vunpack.c.l.b16 %v310
      %v819 = vunpack.c.l.b16 %v311
      %v820 = vunpack.c.l.b16 %v312
      %v821 = vunpack.c.l.b16 %v313
      %v822 = vunpack.c.l.b16 %v314
      %v823 = vunpack.c.l.b16 %v315
      %v824 = vunpack.c.l.b16 %v316
      %v825 = vunpack.c.l.b16 %v317
      %v826 = vunpack.c.l.b16 %v318
      %v827 = vunpack.c.l.b16 %v319
      %v828 = vunpack.c.l.b16 %v320
      %v829 = vunpack.c.l.b16 %v321
      %v830 = vunpack.c.l.b16 %v322
      %v831 = vunpack.c.l.b16 %v323
      %v832 = vunpack.c.l.b16 %v324
      %v833 = vunpack.c.l.b16 %v325
      %v834 = vunpack.c.l.b16 %v326
      %v835 = vunpack.c.l.b16 %v327
      %v836 = vunpack.c.l.b16 %v328
      %v837 = vunpack.c.l.b16 %v329
      %v838 = vunpack.c.l.b16 %v330
      %v839 = vunpack.c.l.b16 %v331
      %v840 = vunpack.c.l.b16 %v332
      %v841 = vunpack.c.l.b16 %v333
      %v842 = vunpack.c.l.b16 %v334
      %v843 = vunpack.c.l.b16 %v335
      %v844 = vunpack.c.l.b16 %v336
      %v845 = vunpack.c.l.b16 %v337
      %v846 = vunpack.c.l.b16 %v338
      %v847 = vunpack.c.l.b16 %v339
      %v848 = vunpack.c.l.b16 %v340
      %v849 = vunpack.c.l.b16 %v341
      %v850 = vunpack.c.l.b16 %v342
      %v851 = vunpack.c.l.b16 %v343
      %v852 = vunpack.c.l.b16 %v344
      %v853 = vunpack.c.l.b16 %v345
      %v854 = vunpack.c.l.b16 %v346
      %v855 = vunpack.c.l.b16 %v347
      %v856 = vunpack.c.l.b16 %v348
      %v857 = vunpack.c.l.b16 %v349
      %v858 = vunpack.c.l.b16 %v350
      %v859 = vunpack.c.l.b16 %v351
      %v860 = vunpack.c.l.b16 %v352
      %v861 = vunpack.c.l.b16 %v353
      %v862 = vunpack.c.l.b16 %v354
      %v863 = vunpack.c.l.b16 %v355
      %v864 = vunpack.c.l.b16 %v356
      %v865 = vunpack.c.l.b16 %v357
      %v866 = vunpack.c.l.b16 %v358
      %v867 = vunpack.c.l.b16 %v359
      %v868 = vunpack.c.l.b16 %v360
      %v869 = vunpack.c.l.b16 %v361
      %v870 = vunpack.c.l.b16 %v362
      %v871 = vunpack.c.l.b16 %v363
      %v872 = vunpack.c.l.b16 %v364
      %v873 = vunpack.c.l.b16 %v365
      %v874 = vunpack.c.l.b16 %v366
      %v875 = vunpack.c.l.b16 %v367
      %v876 = vunpack.c.l.b16 %v368
      %v877 = vunpack.c.l.b16 %v369
      %v878 = vunpack.c.l.b16 %v370
      %v879 = vunpack.c.l.b16 %v371
      %v880 = vunpack.c.l.b16 %v372
      %v881 = vunpack.c.l.b16 %v373
      %v882 = vunpack.c.l.b16 %v374
      %v883 = vunpack.c.l.b16 %v375
      %v884 = vunpack.c.l.b16 %v376
      %v885 = vunpack.c.l.b16 %v377
      %v886 = vunpack.c.l.b16 %v378
      %v887 = vunpack.c.l.b16 %v379
      %v888 = vunpack.c.l.b16 %v380
      %v889 = vunpack.c.l.b16 %v381
      %v890 = vunpack.c.l.b16 %v382
      %v891 = vunpack.c.l.b16 %v383
      %v892 = vunpack.c.l.b16 %v384
      %v893 = vunpack.c.l.b16 %v385
      %v894 = vunpack.c.l.b16 %v386
      %v895 = vunpack.c.l.b16 %v387
      %v896 = vunpack.c.l.b16 %v388
      %v897 = vunpack.c.l.b16 %v389
      %v898 = vunpack.c.l.b16 %v390
      %v899 = vunpack.c.l.b16 %v391
      %v900 = vunpack.c.l.b16 %v392
      %v901 = vpack.c.b16 %v710, %v709
      %v902 = vpack.c.b16 %v712, %v711
      %v903 = vpack.c.b16 %v714, %v713
      %v904 = vpack.c.b16 %v716, %v715
      %v905 = vpack.c.b16 %v718, %v717
      %v906 = vpack.c.b16 %v720, %v719
      %v907 = vpack.c.b16 %v722, %v721
      %v908 = vpack.c.b16 %v724, %v723
      %v909 = vpack.c.b16 %v726, %v725
      %v910 = vpack.c.b16 %v728, %v727
      %v911 = vpack.c.b16 %v730, %v729
      %v912 = vpack.c.b16 %v732, %v731
      %v913 = vpack.c.b16 %v734, %v733
      %v914 = vpack.c.b16 %v736, %v735
      %v915 = vpack.c.b16 %v738, %v737
      %v916 = vpack.c.b16 %v740, %v739
      %v917 = vpack.c.b16 %v742, %v741
      %v918 = vpack.c.b16 %v744, %v743
      %v919 = vpack.c.b16 %v746, %v745
      %v920 = vpack.c.b16 %v748, %v747
      %v921 = vpack.c.b16 %v750, %v749
      %v922 = vpack.c.b16 %v752, %v751
      %v923 = vpack.c.b16 %v754, %v753
      %v924 = vpack.c.b16 %v756, %v755
      %v925 = vpack.c.b16 %v758, %v757
      %v926 = vpack.c.b16 %v760, %v759
      %v927 = vpack.c.b16 %v762, %v761
      %v928 = vpack.c.b16 %v764, %v763
      %v929 = vpack.c.b16 %v766, %v765
      %v930 = vpack.c.b16 %v768, %v767
      %v931 = vpack.c.b16 %v770, %v769
      %v932 = vpack.c.b16 %v772, %v771
      %v933 = vpack.c.b16 %v774, %v773
      %v934 = vpack.c.b16 %v776, %v775
      %v935 = vpack.c.b16 %v778, %v777
      %v936 = vpack.c.b16 %v780, %v779
      %v937 = vpack.c.b16 %v782, %v781
      %v938 = vpack.c.b16 %v784, %v783
      %v939 = vpack.c.b16 %v786, %v785
      %v940 = vpack.c.b16 %v788, %v787
      %v941 = vpack.c.b16 %v790, %v789
      %v942 = vpack.c.b16 %v792, %v791
      %v943 = vpack.c.b16 %v794, %v793
      %v944 = vpack.c.b16 %v796, %v795
      %v945 = vpack.c.b16 %v798, %v797
      %v946 = vpack.c.b16 %v800, %v799
      %v947 = vpack.c.b16 %v802, %v801
      %v948 = vpack.c.b16 %v804, %v803
      %v949 = vpack.c.b16 %v806, %v805
      %v950 = vpack.c.b16 %v808, %v807
      %v951 = vpack.c.b16 %v810, %v809
      %v952 = vpack.c.b16 %v812, %v811
      %v953 = vpack.c.b16 %v814, %v813
      %v954 = vpack.c.b16 %v816, %v815
      %v955 = vpack.c.b16 %v818, %v817
      %v956 = vpack.c.b16 %v820, %v819
      %v957 = vpack.c.b16 %v822, %v821
      %v958 = vpack.c.b16 %v824, %v823
      %v959 = vpack.c.b16 %v826, %v825
      %v960 = vpack.c.b16 %v828, %v827
      %v961 = vpack.c.b16 %v830, %v829
      %v962 = vpack.c.b16 %v832, %v831
      %v963 = vpack.c.b16 %v834, %v833
      %v964 = vpack.c.b16 %v836, %v835
      %v965 = vpack.c.b16 %v838, %v837
      %v966 = vpack.c.b16 %v840, %v839
      %v967 = vpack.c.b16 %v842, %v841
      %v968 = vpack.c.b16 %v844, %v843
      %v969 = vpack.c.b16 %v846, %v845
      %v970 = vpack.c.b16 %v848, %v847
      %v971 = vpack.c.b16 %v850, %v849
      %v972 = vpack.c.b16 %v852, %v851
      %v973 = vpack.c.b16 %v854, %v853
      %v974 = vpack.c.b16 %v856, %v855
      %v975 = vpack.c.b16 %v858, %v857
      %v976 = vpack.c.b16 %v860, %v859
      %v977 = vpack.c.b16 %v862, %v861
      %v978 = vpack.c.b16 %v864, %v863
      %v979 = vpack.c.b16 %v866, %v865
      %v980 = vpack.c.b16 %v868, %v867
      %v981 = vpack.c.b16 %v870, %v869
      %v982 = vpack.c.b16 %v872, %v871
      %v983 = vpack.c.b16 %v874, %v873
      %v984 = vpack.c.b16 %v876, %v875
      %v985 = vpack.c.b16 %v878, %v877
      %v986 = vpack.c.b16 %v880, %v879
      %v987 = vpack.c.b16 %v882, %v881
      %v988 = vpack.c.b16 %v884, %v883
      %v989 = vpack.c.b16 %v886, %v885
      %v990 = vpack.c.b16 %v888, %v887
      %v991 = vpack.c.b16 %v890, %v889
      %v992 = vpack.c.b16 %v892, %v891
      %v993 = vpack.c.b16 %v894, %v893
      %v994 = vpack.c.b16 %v896, %v895
      %v995 = vpack.c.b16 %v898, %v897
      %v996 = vpack.c.b16 %v900, %v899
      %1093 = vmatpush.bf16.msra.mxu0 %v908
      %1094 = vmatpush.bf16.msra.mxu0 %v907
      %1095 = vmatpush.bf16.msra.mxu0 %v906
      %1096 = vmatpush.bf16.msra.mxu0 %v905
      %1097 = vmatpush.bf16.msra.mxu0 %v904
      %1098 = vmatpush.bf16.msra.mxu0 %v903
      %1099 = vmatpush.bf16.msra.mxu0 %v902
      %1100 = vmatpush.bf16.msra.mxu0 %v901
      %1101 = vmatmul.bf16.gmra.mxu0 %v469
      %v1102 = vpop.f32.mrf.mxu0
      %v1103 = vadd.f32 %v395, %v1102
      %v1104 = vpop.f32.mrf.mxu0
      %v1105 = vadd.f32 %v395, %v1104
      %1106 = vmatmul.bf16.gmra.mxu0 %v481
      %v1107 = vpop.f32.mrf.mxu0
      %v1108 = vadd.f32 %v395, %v1107
      %v1109 = vpop.f32.mrf.mxu0
      %v1110 = vadd.f32 %v395, %v1109
      %1111 = vdwg.mxu0
      %1112 = vmatpush.bf16.msra.mxu0 %v916
      %1113 = vmatpush.bf16.msra.mxu0 %v915
      %1114 = vmatpush.bf16.msra.mxu0 %v914
      %1115 = vmatpush.bf16.msra.mxu0 %v913
      %1116 = vmatpush.bf16.msra.mxu0 %v912
      %1117 = vmatpush.bf16.msra.mxu0 %v911
      %1118 = vmatpush.bf16.msra.mxu0 %v910
      %1119 = vmatpush.bf16.msra.mxu0 %v909
      %1120 = vmatmul.bf16.gmra.mxu0 %v470
      %v1121 = vpop.f32.mrf.mxu0
      %v1122 = vadd.f32 %v1103, %v1121
      %v1123 = vpop.f32.mrf.mxu0
      %v1124 = vadd.f32 %v1105, %v1123
      %1125 = vmatmul.bf16.gmra.mxu0 %v482
      %v1126 = vpop.f32.mrf.mxu0
      %v1127 = vadd.f32 %v1108, %v1126
      %v1128 = vpop.f32.mrf.mxu0
      %v1129 = vadd.f32 %v1110, %v1128
      %1130 = vdwg.mxu0
      %1131 = vmatpush.bf16.msra.mxu0 %v924
      %1132 = vmatpush.bf16.msra.mxu0 %v923
      %1133 = vmatpush.bf16.msra.mxu0 %v922
      %1134 = vmatpush.bf16.msra.mxu0 %v921
      %1135 = vmatpush.bf16.msra.mxu0 %v920
      %1136 = vmatpush.bf16.msra.mxu0 %v919
      %1137 = vmatpush.bf16.msra.mxu0 %v918
      %1138 = vmatpush.bf16.msra.mxu0 %v917
      %1139 = vmatmul.bf16.gmra.mxu0 %v471
      %v1140 = vpop.f32.mrf.mxu0
      %v1141 = vadd.f32 %v1122, %v1140
      %v1142 = vpop.f32.mrf.mxu0
      %v1143 = vadd.f32 %v1124, %v1142
      %1144 = vmatmul.bf16.gmra.mxu0 %v483
      %v1145 = vpop.f32.mrf.mxu0
      %v1146 = vadd.f32 %v1127, %v1145
      %v1147 = vpop.f32.mrf.mxu0
      %v1148 = vadd.f32 %v1129, %v1147
      %1149 = vdwg.mxu0
      %1150 = vmatpush.bf16.msra.mxu0 %v932
      %1151 = vmatpush.bf16.msra.mxu0 %v931
      %1152 = vmatpush.bf16.msra.mxu0 %v930
      %1153 = vmatpush.bf16.msra.mxu0 %v929
      %1154 = vmatpush.bf16.msra.mxu0 %v928
      %1155 = vmatpush.bf16.msra.mxu0 %v927
      %1156 = vmatpush.bf16.msra.mxu0 %v926
      %1157 = vmatpush.bf16.msra.mxu0 %v925
      %1158 = vmatmul.bf16.gmra.mxu0 %v472
      %v1159 = vpop.f32.mrf.mxu0
      %v1160 = vadd.f32 %v1141, %v1159
      %v1161 = vpop.f32.mrf.mxu0
      %v1162 = vadd.f32 %v1143, %v1161
      %1163 = vmatmul.bf16.gmra.mxu0 %v484
      %v1164 = vpop.f32.mrf.mxu0
      %v1165 = vadd.f32 %v1146, %v1164
      %v1166 = vpop.f32.mrf.mxu0
      %v1167 = vadd.f32 %v1148, %v1166
      %1168 = vdwg.mxu0
      %1169 = vmatpush.bf16.msra.mxu0 %v940
      %1170 = vmatpush.bf16.msra.mxu0 %v939
      %1171 = vmatpush.bf16.msra.mxu0 %v938
      %1172 = vmatpush.bf16.msra.mxu0 %v937
      %1173 = vmatpush.bf16.msra.mxu0 %v936
      %1174 = vmatpush.bf16.msra.mxu0 %v935
      %1175 = vmatpush.bf16.msra.mxu0 %v934
      %1176 = vmatpush.bf16.msra.mxu0 %v933
      %1177 = vmatmul.bf16.gmra.mxu0 %v473
      %v1178 = vpop.f32.mrf.mxu0
      %v1179 = vadd.f32 %v1160, %v1178
      %v1180 = vpop.f32.mrf.mxu0
      %v1181 = vadd.f32 %v1162, %v1180
      %1182 = vmatmul.bf16.gmra.mxu0 %v485
      %v1183 = vpop.f32.mrf.mxu0
      %v1184 = vadd.f32 %v1165, %v1183
      %v1185 = vpop.f32.mrf.mxu0
      %v1186 = vadd.f32 %v1167, %v1185
      %1187 = vdwg.mxu0
      %1188 = vmatpush.bf16.msra.mxu0 %v948
      %1189 = vmatpush.bf16.msra.mxu0 %v947
      %1190 = vmatpush.bf16.msra.mxu0 %v946
      %1191 = vmatpush.bf16.msra.mxu0 %v945
      %1192 = vmatpush.bf16.msra.mxu0 %v944
      %1193 = vmatpush.bf16.msra.mxu0 %v943
      %1194 = vmatpush.bf16.msra.mxu0 %v942
      %1195 = vmatpush.bf16.msra.mxu0 %v941
      %1196 = vmatmul.bf16.gmra.mxu0 %v474
      %v1197 = vpop.f32.mrf.mxu0
      %v1198 = vadd.f32 %v1179, %v1197
      %v1199 = vpop.f32.mrf.mxu0
      %v1200 = vadd.f32 %v1181, %v1199
      %1201 = vmatmul.bf16.gmra.mxu0 %v486
      %v1202 = vpop.f32.mrf.mxu0
      %v1203 = vadd.f32 %v1184, %v1202
      %v1204 = vpop.f32.mrf.mxu0
      %v1205 = vadd.f32 %v1186, %v1204
      %1206 = vdwg.mxu0
      %1207 = vmatpush.bf16.msra.mxu0 %v956
      %1208 = vmatpush.bf16.msra.mxu0 %v955
      %1209 = vmatpush.bf16.msra.mxu0 %v954
      %1210 = vmatpush.bf16.msra.mxu0 %v953
      %1211 = vmatpush.bf16.msra.mxu0 %v952
      %1212 = vmatpush.bf16.msra.mxu0 %v951
      %1213 = vmatpush.bf16.msra.mxu0 %v950
      %1214 = vmatpush.bf16.msra.mxu0 %v949
      %1215 = vmatmul.bf16.gmra.mxu0 %v475
      %v1216 = vpop.f32.mrf.mxu0
      %v1217 = vadd.f32 %v1198, %v1216
      %v1218 = vpop.f32.mrf.mxu0
      %v1219 = vadd.f32 %v1200, %v1218
      %1220 = vmatmul.bf16.gmra.mxu0 %v487
      %v1221 = vpop.f32.mrf.mxu0
      %v1222 = vadd.f32 %v1203, %v1221
      %v1223 = vpop.f32.mrf.mxu0
      %v1224 = vadd.f32 %v1205, %v1223
      %1225 = vdwg.mxu0
      %1226 = vmatpush.bf16.msra.mxu0 %v964
      %1227 = vmatpush.bf16.msra.mxu0 %v963
      %1228 = vmatpush.bf16.msra.mxu0 %v962
      %1229 = vmatpush.bf16.msra.mxu0 %v961
      %1230 = vmatpush.bf16.msra.mxu0 %v960
      %1231 = vmatpush.bf16.msra.mxu0 %v959
      %1232 = vmatpush.bf16.msra.mxu0 %v958
      %1233 = vmatpush.bf16.msra.mxu0 %v957
      %1234 = vmatmul.bf16.gmra.mxu0 %v476
      %v1235 = vpop.f32.mrf.mxu0
      %v1236 = vadd.f32 %v1217, %v1235
      %v1237 = vpop.f32.mrf.mxu0
      %v1238 = vadd.f32 %v1219, %v1237
      %1239 = vmatmul.bf16.gmra.mxu0 %v488
      %v1240 = vpop.f32.mrf.mxu0
      %v1241 = vadd.f32 %v1222, %v1240
      %v1242 = vpop.f32.mrf.mxu0
      %v1243 = vadd.f32 %v1224, %v1242
      %1244 = vdwg.mxu0
      %1245 = vmatpush.bf16.msra.mxu0 %v972
      %1246 = vmatpush.bf16.msra.mxu0 %v971
      %1247 = vmatpush.bf16.msra.mxu0 %v970
      %1248 = vmatpush.bf16.msra.mxu0 %v969
      %1249 = vmatpush.bf16.msra.mxu0 %v968
      %1250 = vmatpush.bf16.msra.mxu0 %v967
      %1251 = vmatpush.bf16.msra.mxu0 %v966
      %1252 = vmatpush.bf16.msra.mxu0 %v965
      %1253 = vmatmul.bf16.gmra.mxu0 %v477
      %v1254 = vpop.f32.mrf.mxu0
      %v1255 = vadd.f32 %v1236, %v1254
      %v1256 = vpop.f32.mrf.mxu0
      %v1257 = vadd.f32 %v1238, %v1256
      %1258 = vmatmul.bf16.gmra.mxu0 %v489
      %v1259 = vpop.f32.mrf.mxu0
      %v1260 = vadd.f32 %v1241, %v1259
      %v1261 = vpop.f32.mrf.mxu0
      %v1262 = vadd.f32 %v1243, %v1261
      %1263 = vdwg.mxu0
      %1264 = vmatpush.bf16.msra.mxu0 %v980
      %1265 = vmatpush.bf16.msra.mxu0 %v979
      %1266 = vmatpush.bf16.msra.mxu0 %v978
      %1267 = vmatpush.bf16.msra.mxu0 %v977
      %1268 = vmatpush.bf16.msra.mxu0 %v976
      %1269 = vmatpush.bf16.msra.mxu0 %v975
      %1270 = vmatpush.bf16.msra.mxu0 %v974
      %1271 = vmatpush.bf16.msra.mxu0 %v973
      %1272 = vmatmul.bf16.gmra.mxu0 %v478
      %v1273 = vpop.f32.mrf.mxu0
      %v1274 = vadd.f32 %v1255, %v1273
      %v1275 = vpop.f32.mrf.mxu0
      %v1276 = vadd.f32 %v1257, %v1275
      %1277 = vmatmul.bf16.gmra.mxu0 %v490
      %v1278 = vpop.f32.mrf.mxu0
      %v1279 = vadd.f32 %v1260, %v1278
      %v1280 = vpop.f32.mrf.mxu0
      %v1281 = vadd.f32 %v1262, %v1280
      %1282 = vdwg.mxu0
      %1283 = vmatpush.bf16.msra.mxu0 %v988
      %1284 = vmatpush.bf16.msra.mxu0 %v987
      %1285 = vmatpush.bf16.msra.mxu0 %v986
      %1286 = vmatpush.bf16.msra.mxu0 %v985
      %1287 = vmatpush.bf16.msra.mxu0 %v984
      %1288 = vmatpush.bf16.msra.mxu0 %v983
      %1289 = vmatpush.bf16.msra.mxu0 %v982
      %1290 = vmatpush.bf16.msra.mxu0 %v981
      %1291 = vmatmul.bf16.gmra.mxu0 %v479
      %v1292 = vpop.f32.mrf.mxu0
      %v1293 = vadd.f32 %v1274, %v1292
      %v1294 = vpop.f32.mrf.mxu0
      %v1295 = vadd.f32 %v1276, %v1294
      %1296 = vmatmul.bf16.gmra.mxu0 %v491
      %v1297 = vpop.f32.mrf.mxu0
      %v1298 = vadd.f32 %v1279, %v1297
      %v1299 = vpop.f32.mrf.mxu0
      %v1300 = vadd.f32 %v1281, %v1299
      %1301 = vdwg.mxu0
      %1302 = vmatpush.bf16.msra.mxu0 %v996
      %1303 = vmatpush.bf16.msra.mxu0 %v995
      %1304 = vmatpush.bf16.msra.mxu0 %v994
      %1305 = vmatpush.bf16.msra.mxu0 %v993
      %1306 = vmatpush.bf16.msra.mxu0 %v992
      %1307 = vmatpush.bf16.msra.mxu0 %v991
      %1308 = vmatpush.bf16.msra.mxu0 %v990
      %1309 = vmatpush.bf16.msra.mxu0 %v989
      %1310 = vmatmul.bf16.gmra.mxu0 %v480
      %v1311 = vpop.f32.mrf.mxu0
      %v1312 = vadd.f32 %v1293, %v1311
      %v1313 = vpop.f32.mrf.mxu0
      %v1314 = vadd.f32 %v1295, %v1313
      %1315 = vmatmul.bf16.gmra.mxu0 %v492
      %v1316 = vpop.f32.mrf.mxu0
      %v1317 = vadd.f32 %v1298, %v1316
      %v1318 = vpop.f32.mrf.mxu0
      %v1319 = vadd.f32 %v1300, %v1318
      %1320 = vdwg.mxu0
      %v1321 = vmax.f32 %v1312, 0.0
      %v1322 = vmax.f32 %v1314, 0.0
      %v1323 = vmax.f32 %v1317, 0.0
      %v1324 = vmax.f32 %v1319, 0.0
      %v1325 = vpack.c.bf16 %v1321, %v1321
      %v1326 = vpack.c.bf16 %v1322, %v1322
      %v1327 = vpack.c.bf16 %v1323, %v1323
      %v1328 = vpack.c.bf16 %v1324, %v1324
      %1329 = vst [vmem:[%s175] sm:$0xf] %v1325
      %1330 = vst [vmem:[%s175 + $0x4] sm:$0xf] %v1326
      %1331 = vst [vmem:[%s175 + $0x8] sm:$0xf] %v1327
      %1332 = vst [vmem:[%s175 + $0xc] sm:$0xf] %v1328
      %s1333 = smul.u32 4, %s14
      %p1334 = scmp.lt.s32.totalorder %s1333, 7
      %s1335 = scalar_select %p1334, %s1333, 7
      %s1336 = smul.addr %s1335, 4
      %s1337 = scalar_lea.vmem %s3, %s1336
      // Predicated region
      $region33: #{qnetwork_pixels_forward.2} parent=31 // pred_check
        %p1338 = pneg %p100
      $region34: #{qnetwork_pixels_forward.2} parent=31 // pred_check_branch
        %1340 = sbr.rel (%p1338) target = $region36
      $region35: #{qnetwork_pixels_forward.2} parent=31 // pred_region
        %s1341 = smul.u32 4, %s14
      $region36: #{qnetwork_pixels_forward.2} parent=31 // pred_fallthru
        _
    $region32: #{qnetwork_pixels_forward.2} parent=5 // pred_fallthru
      _
    %p1342 = scmp.le.s32.totalorder 2, %s9
    // Predicated region
    $region37: #{qnetwork_pixels_forward.2} parent=5 // pred_check
      %p1343 = pneg %p1342
    $region38: #{qnetwork_pixels_forward.2} parent=5 // pred_check_branch
      %1345 = sbr.rel (%p1343) target = $region40
    $region39: #{qnetwork_pixels_forward.2} parent=5 // pred_region
      %s1346 = ssub.s32 %s9, 2
      // Predicated region
      $region41: #{qnetwork_pixels_forward.2} parent=39 // pred_check
        %p1347 = pneg %p106
      $region42: #{qnetwork_pixels_forward.2} parent=39 // pred_check_branch
        %1349 = sbr.rel (%p1347) target = $region44
      $region43: #{qnetwork_pixels_forward.2} parent=39 // pred_region
        %s1350 = smul.u32 4, %s15
        %p1351 = scmp.lt.s32.totalorder %s1350, 7
        %s1352 = scalar_select %p1351, %s1350, 7
        %s1353 = smul.addr %s1352, 4
        %s1354 = scalar_lea.vmem %s3, %s1353
      $region44: #{qnetwork_pixels_forward.2} parent=39 // pred_fallthru
        _
    $region40: #{qnetwork_pixels_forward.2} parent=5 // pred_fallthru
      _
  $region6: #{qnetwork_pixels_forward.2} parent=0 // loop_footer
    %s13 = sadd.s32 1, %s9
  $region7: #{qnetwork_pixels_forward.2} parent=0 // loop_footer_branch
    %8 = sbr.rel target = $region3
  $region8: #{qnetwork_pixels_forward.2} parent=0 // loop_exit
    _

// kernel: qnetwork_pixels_forward.3
$region0: #{qnetwork_pixels_forward.3}
  #allocation0 [shape = 'u32[]', space=smem, size = 0x4, offset = 0x4, fixed_abs, tag = 'smem constant byte address 0x4 - core index']
  #allocation1 [shape = 'u32[72,128]{1,0:T(1,128)}', space=vmem, size = 0x9000, scoped, tag = 'internal scratch']
  #allocation2 [shape = 'bf16[2,128]{1,0:T(2,128)(2,1)}', space=vmem, size = 0x200, scoped, tag = 'scratch operand']
  %s0 = inlined_call_operand.vmem [shape: bf16[2,4096], index: 0, kind: input, shape index: {}]
  %s1 = inlined_call_operand.vmem [shape: bf16[1024,32], index: 1, kind: input, shape index: {}]
  %s2 = inlined_call_operand.vmem [shape: f32[1,32], index: 2, kind: input, shape index: {}]
  %s3 = inlined_call_operand.vmem [shape: bf16[128,256], index: 3, kind: input, shape index: {}]
  %s4 = inlined_call_operand.vmem [shape: f32[1,256], index: 4, kind: input, shape index: {}]
  %s5 = inlined_call_operand.vmem [shape: bf16[256,128], index: 5, kind: input, shape index: {}]
  %s6 = inlined_call_operand.vmem [shape: f32[1,128], index: 6, kind: input, shape index: {}]
  %s7 = inlined_call_operand.hbm [shape: f32[2,128], index: 7, kind: output, shape index: {}]
  %s8 = sld [smem:[#allocation0]]
  $region38: #{qnetwork_pixels_forward.3} parent=0
    _
  %s10 = ssub.s32 1, %s8
  %s11 = scalar_select 0, %s10, %s8
  $region1: #{qnetwork_pixels_forward.3} parent=0
    #allocation3 [shape = 'u8[1024]{0}', space=vmem, size = 0x400, scoped, tag = 'output window, operand 0, single buffered']
    #allocation4 [shape = 's32[1]{0}', space=sflag, size = 0x4, scoped, tag = 'scoped memory for qnetwork_pixels_forward.3']
    %12 = vsyncpa [#allocation4], 0
    // Predicated region
    $region2: #{qnetwork_pixels_forward.3} parent=1 // pred_check
      _
    $region3: #{qnetwork_pixels_forward.3} parent=1 // pred_check_branch
      %14 = sbr.rel (0) target = $region5
    $region4: #{qnetwork_pixels_forward.3} parent=1 // pred_region
      _
    $region5: #{qnetwork_pixels_forward.3} parent=1 // pred_fallthru
      _
    // Predicated region
    $region6: #{qnetwork_pixels_forward.3} parent=1 // pred_check
      _
    $region7: #{qnetwork_pixels_forward.3} parent=1 // pred_check_branch
      %16 = sbr.rel (0) target = $region9
    $region8: #{qnetwork_pixels_forward.3} parent=1 // pred_region
      _
    $region9: #{qnetwork_pixels_forward.3} parent=1 // pred_fallthru
      _
    // Predicated region
    $region10: #{qnetwork_pixels_forward.3} parent=1 // pred_check
      _
    $region11: #{qnetwork_pixels_forward.3} parent=1 // pred_check_branch
      %18 = sbr.rel (0) target = $region13
    $region12: #{qnetwork_pixels_forward.3} parent=1 // pred_region
      _
    $region13: #{qnetwork_pixels_forward.3} parent=1 // pred_fallthru
      _
    // Predicated region
    $region14: #{qnetwork_pixels_forward.3} parent=1 // pred_check
      _
    $region15: #{qnetwork_pixels_forward.3} parent=1 // pred_check_branch
      %20 = sbr.rel (0) target = $region17
    $region16: #{qnetwork_pixels_forward.3} parent=1 // pred_region
      _
    $region17: #{qnetwork_pixels_forward.3} parent=1 // pred_fallthru
      _
    // Predicated region
    $region18: #{qnetwork_pixels_forward.3} parent=1 // pred_check
      _
    $region19: #{qnetwork_pixels_forward.3} parent=1 // pred_check_branch
      %22 = sbr.rel (0) target = $region21
    $region20: #{qnetwork_pixels_forward.3} parent=1 // pred_region
      _
    $region21: #{qnetwork_pixels_forward.3} parent=1 // pred_fallthru
      _
    // Predicated region
    $region22: #{qnetwork_pixels_forward.3} parent=1 // pred_check
      _
    $region23: #{qnetwork_pixels_forward.3} parent=1 // pred_check_branch
      %24 = sbr.rel (0) target = $region25
    $region24: #{qnetwork_pixels_forward.3} parent=1 // pred_region
      _
    $region25: #{qnetwork_pixels_forward.3} parent=1 // pred_fallthru
      _
    // Predicated region
    $region26: #{qnetwork_pixels_forward.3} parent=1 // pred_check
      _
    $region27: #{qnetwork_pixels_forward.3} parent=1 // pred_check_branch
      %26 = sbr.rel (0) target = $region29
    $region28: #{qnetwork_pixels_forward.3} parent=1 // pred_region
      _
    $region29: #{qnetwork_pixels_forward.3} parent=1 // pred_fallthru
      _
    %v27 = vld [vmem:[%s0] sm:$0xff]
    %v28 = vld [vmem:[%s1] sm:$0xf]
    %v29 = vld [vmem:[%s1 + $0x4] sm:$0xf]
    %v30 = vld [vmem:[%s1 + $0x8] sm:$0xf]
    %v31 = vld [vmem:[%s1 + $0xc] sm:$0xf]
    %v32 = vld [vmem:[%s1 + $0x10] sm:$0xf]
    %v33 = vld [vmem:[%s1 + $0x14] sm:$0xf]
    %v34 = vld [vmem:[%s1 + $0x18] sm:$0xf]
    %v35 = vld [vmem:[%s1 + $0x1c] sm:$0xf]
    %v36 = vld [vmem:[%s1 + $0x20] sm:$0xf]
    %v37 = vld [vmem:[%s1 + $0x24] sm:$0xf]
    %v38 = vld [vmem:[%s1 + $0x28] sm:$0xf]
    %v39 = vld [vmem:[%s1 + $0x2c] sm:$0xf]
    %v40 = vld [vmem:[%s1 + $0x30] sm:$0xf]
    %v41 = vld [vmem:[%s1 + $0x34] sm:$0xf]
    %v42 = vld [vmem:[%s1 + $0x38] sm:$0xf]
    %v43 = vld [vmem:[%s1 + $0x3c] sm:$0xf]
    %v44 = vld [vmem:[%s1 + $0x40] sm:$0xf]
    %v45 = vld [vmem:[%s1 + $0x44] sm:$0xf]
    %v46 = vld [vmem:[%s1 + $0x48] sm:$0xf]
    %v47 = vld [vmem:[%s1 + $0x4c] sm:$0xf]
    %v48 = vld [vmem:[%s1 + $0x50] sm:$0xf]
    %v49 = vld [vmem:[%s1 + $0x54] sm:$0xf]
    %v50 = vld [vmem:[%s1 + $0x58] sm:$0xf]
    %v51 = vld [vmem:[%s1 + $0x5c] sm:$0xf]
    %v52 = vld [vmem:[%s1 + $0x60] sm:$0xf]
    %v53 = vld [vmem:[%s1 + $0x64] sm:$0xf]
    %v54 = vld [vmem:[%s1 + $0x68] sm:$0xf]
    %v55 = vld [vmem:[%s1 + $0x6c] sm:$0xf]
    %v56 = vld [vmem:[%s1 + $0x70] sm:$0xf]
    %v57 = vld [vmem:[%s1 + $0x74] sm:$0xf]
    %v58 = vld [vmem:[%s1 + $0x78] sm:$0xf]
    %v59 = vld [vmem:[%s1 + $0x7c] sm:$0xf]
    %v60 = vld [vmem:[%s1 + $0x80] sm:$0xf]
    %v61 = vld [vmem:[%s1 + $0x84] sm:$0xf]
    %v62 = vld [vmem:[%s1 + $0x88] sm:$0xf]
    %v63 = vld [vmem:[%s1 + $0x8c] sm:$0xf]
    %v64 = vld [vmem:[%s1 + $0x90] sm:$0xf]
    %v65 = vld [vmem:[%s1 + $0x94] sm:$0xf]
    %v66 = vld [vmem:[%s1 + $0x98] sm:$0xf]
    %v67 = vld [vmem:[%s1 + $0x9c] sm:$0xf]
    %v68 = vld [vmem:[%s1 + $0xa0] sm:$0xf]
    %v69 = vld [vmem:[%s1 + $0xa4] sm:$0xf]
    %v70 = vld [vmem:[%s1 + $0xa8] sm:$0xf]
    %v71 = vld [vmem:[%s1 + $0xac] sm:$0xf]
    %v72 = vld [vmem:[%s1 + $0xb0] sm:$0xf]
    %v73 = vld [vmem:[%s1 + $0xb4] sm:$0xf]
    %v74 = vld [vmem:[%s1 + $0xb8] sm:$0xf]
    %v75 = vld [vmem:[%s1 + $0xbc] sm:$0xf]
    %v76 = vld [vmem:[%s1 + $0xc0] sm:$0xf]
    %v77 = vld [vmem:[%s1 + $0xc4] sm:$0xf]
    %v78 = vld [vmem:[%s1 + $0xc8] sm:$0xf]
    %v79 = vld [vmem:[%s1 + $0xcc] sm:$0xf]
    %v80 = vld [vmem:[%s1 + $0xd0] sm:$0xf]
    %v81 = vld [vmem:[%s1 + $0xd4] sm:$0xf]
    %v82 = vld [vmem:[%s1 + $0xd8] sm:$0xf]
    %v83 = vld [vmem:[%s1 + $0xdc] sm:$0xf]
    %v84 = vld [vmem:[%s1 + $0xe0] sm:$0xf]
    %v85 = vld [vmem:[%s1 + $0xe4] sm:$0xf]
    %v86 = vld [vmem:[%s1 + $0xe8] sm:$0xf]
    %v87 = vld [vmem:[%s1 + $0xec] sm:$0xf]
    %v88 = vld [vmem:[%s1 + $0xf0] sm:$0xf]
    %v89 = vld [vmem:[%s1 + $0xf4] sm:$0xf]
    %v90 = vld [vmem:[%s1 + $0xf8] sm:$0xf]
    %v91 = vld [vmem:[%s1 + $0xfc] sm:$0xf]
    %v92 = vld [vmem:[%s1 + $0x100] sm:$0xf]
    %v93 = vld [vmem:[%s1 + $0x104] sm:$0xf]
    %v94 = vld [vmem:[%s1 + $0x108] sm:$0xf]
    %v95 = vld [vmem:[%s1 + $0x10c] sm:$0xf]
    %v96 = vld [vmem:[%s1 + $0x110] sm:$0xf]
    %v97 = vld [vmem:[%s1 + $0x114] sm:$0xf]
    %v98 = vld [vmem:[%s1 + $0x118] sm:$0xf]
    %v99 = vld [vmem:[%s1 + $0x11c] sm:$0xf]
    %v100 = vld [vmem:[%s1 + $0x120] sm:$0xf]
    %v101 = vld [vmem:[%s1 + $0x124] sm:$0xf]
    %v102 = vld [vmem:[%s1 + $0x128] sm:$0xf]
    %v103 = vld [vmem:[%s1 + $0x12c] sm:$0xf]
    %v104 = vld [vmem:[%s1 + $0x130] sm:$0xf]
    %v105 = vld [vmem:[%s1 + $0x134] sm:$0xf]
    %v106 = vld [vmem:[%s1 + $0x138] sm:$0xf]
    %v107 = vld [vmem:[%s1 + $0x13c] sm:$0xf]
    %v108 = vld [vmem:[%s1 + $0x140] sm:$0xf]
    %v109 = vld [vmem:[%s1 + $0x144] sm:$0xf]
    %v110 = vld [vmem:[%s1 + $0x148] sm:$0xf]
    %v111 = vld [vmem:[%s1 + $0x14c] sm:$0xf]
    %v112 = vld [vmem:[%s1 + $0x150] sm:$0xf]
    %v113 = vld [vmem:[%s1 + $0x154] sm:$0xf]
    %v114 = vld [vmem:[%s1 + $0x158] sm:$0xf]
    %v115 = vld [vmem:[%s1 + $0x15c] sm:$0xf]
    %v116 = vld [vmem:[%s1 + $0x160] sm:$0xf]
    %v117 = vld [vmem:[%s1 + $0x164] sm:$0xf]
    %v118 = vld [vmem:[%s1 + $0x168] sm:$0xf]
    %v119 = vld [vmem:[%s1 + $0x16c] sm:$0xf]
    %v120 = vld [vmem:[%s1 + $0x170] sm:$0xf]
    %v121 = vld [vmem:[%s1 + $0x174] sm:$0xf]
    %v122 = vld [vmem:[%s1 + $0x178] sm:$0xf]
    %v123 = vld [vmem:[%s1 + $0x17c] sm:$0xf]
    %v124 = vld [vmem:[%s1 + $0x180] sm:$0xf]
    %v125 = vld [vmem:[%s1 + $0x184] sm:$0xf]
    %v126 = vld [vmem:[%s1 + $0x188] sm:$0xf]
    %v127 = vld [vmem:[%s1 + $0x18c] sm:$0xf]
    %v128 = vld [vmem:[%s1 + $0x190] sm:$0xf]
    %v129 = vld [vmem:[%s1 + $0x194] sm:$0xf]
    %v130 = vld [vmem:[%s1 + $0x198] sm:$0xf]
    %v131 = vld [vmem:[%s1 + $0x19c] sm:$0xf]
    %v132 = vld [vmem:[%s1 + $0x1a0] sm:$0xf]
    %v133 = vld [vmem:[%s1 + $0x1a4] sm:$0xf]
    %v134 = vld [vmem:[%s1 + $0x1a8] sm:$0xf]
    %v135 = vld [vmem:[%s1 + $0x1ac] sm:$0xf]
    %v136 = vld [vmem:[%s1 + $0x1b0] sm:$0xf]
    %v137 = vld [vmem:[%s1 + $0x1b4] sm:$0xf]
    %v138 = vld [vmem:[%s1 + $0x1b8] sm:$0xf]
    %v139 = vld [vmem:[%s1 + $0x1bc] sm:$0xf]
    %v140 = vld [vmem:[%s1 + $0x1c0] sm:$0xf]
    %v141 = vld [vmem:[%s1 + $0x1c4] sm:$0xf]
    %v142 = vld [vmem:[%s1 + $0x1c8] sm:$0xf]
    %v143 = vld [vmem:[%s1 + $0x1cc] sm:$0xf]
    %v144 = vld [vmem:[%s1 + $0x1d0] sm:$0xf]
    %v145 = vld [vmem:[%s1 + $0x1d4] sm:$0xf]
    %v146 = vld [vmem:[%s1 + $0x1d8] sm:$0xf]
    %v147 = vld [vmem:[%s1 + $0x1dc] sm:$0xf]
    %v148 = vld [vmem:[%s1 + $0x1e0] sm:$0xf]
    %v149 = vld [vmem:[%s1 + $0x1e4] sm:$0xf]
    %v150 = vld [vmem:[%s1 + $0x1e8] sm:$0xf]
    %v151 = vld [vmem:[%s1 + $0x1ec] sm:$0xf]
    %v152 = vld [vmem:[%s1 + $0x1f0] sm:$0xf]
    %v153 = vld [vmem:[%s1 + $0x1f4] sm:$0xf]
    %v154 = vld [vmem:[%s1 + $0x1f8] sm:$0xf]
    %v155 = vld [vmem:[%s1 + $0x1fc] sm:$0xf]
    %v156 = vld [vmem:[%s2] sm:$0x1]
    %v158 = vperm.slane %v156, 0
    %161 = vst [vmem:[#allocation1] ss:$9 sm:$0xff] %v27
    %v162 = vld [vmem:[#allocation1] sm:$0xff]
    %v163 = vld [vmem:[#allocation1 + $0x9] sm:$0xff]
    %v164 = vld [vmem:[#allocation1 + $0x12] sm:$0xff]
    %v165 = vld [vmem:[#allocation1 + $0x1b] sm:$0xff]
    %v166 = vld [vmem:[#allocation1 + $0x24] sm:$0xff]
    %v167 = vld [vmem:[#allocation1 + $0x2d] sm:$0xff]
    %v168 = vld [vmem:[#allocation1 + $0x36] sm:$0xff]
    %v169 = vld [vmem:[#allocation1 + $0x3f] sm:$0xff]
    %v306 = vunpack.c.l.b16 %v28
    %v307 = vunpack.c.l.b16 %v29
    %v308 = vunpack.c.l.b16 %v30
    %v309 = vunpack.c.l.b16 %v31
    %v310 = vunpack.c.l.b16 %v32
    %v311 = vunpack.c.l.b16 %v33
    %v312 = vunpack.c.l.b16 %v34
    %v313 = vunpack.c.l.b16 %v35
    %v314 = vunpack.c.l.b16 %v36
    %v315 = vunpack.c.l.b16 %v37
    %v316 = vunpack.c.l.b16 %v38
    %v317 = vunpack.c.l.b16 %v39
    %v318 = vunpack.c.l.b16 %v40
    %v319 = vunpack.c.l.b16 %v41
    %v320 = vunpack.c.l.b16 %v42
    %v321 = vunpack.c.l.b16 %v43
    %v322 = vunpack.c.l.b16 %v44
    %v323 = vunpack.c.l.b16 %v45
    %v324 = vunpack.c.l.b16 %v46
    %v325 = vunpack.c.l.b16 %v47
    %v326 = vunpack.c.l.b16 %v48
    %v327 = vunpack.c.l.b16 %v49
    %v328 = vunpack.c.l.b16 %v50
    %v329 = vunpack.c.l.b16 %v51
    %v330 = vunpack.c.l.b16 %v52
    %v331 = vunpack.c.l.b16 %v53
    %v332 = vunpack.c.l.b16 %v54
    %v333 = vunpack.c.l.b16 %v55
    %v334 = vunpack.c.l.b16 %v56
    %v335 = vunpack.c.l.b16 %v57
    %v336 = vunpack.c.l.b16 %v58
    %v337 = vunpack.c.l.b16 %v59
    %v338 = vunpack.c.l.b16 %v60
    %v339 = vunpack.c.l.b16 %v61
    %v340 = vunpack.c.l.b16 %v62
    %v341 = vunpack.c.l.b16 %v63
    %v342 = vunpack.c.l.b16 %v64
    %v343 = vunpack.c.l.b16 %v65
    %v344 = vunpack.c.l.b16 %v66
    %v345 = vunpack.c.l.b16 %v67
    %v346 = vunpack.c.l.b16 %v68
    %v347 = vunpack.c.l.b16 %v69
    %v348 = vunpack.c.l.b16 %v70
    %v349 = vunpack.c.l.b16 %v71
    %v350 = vunpack.c.l.b16 %v72
    %v351 = vunpack.c.l.b16 %v73
    %v352 = vunpack.c.l.b16 %v74
    %v353 = vunpack.c.l.b16 %v75
    %v354 = vunpack.c.l.b16 %v76
    %v355 = vunpack.c.l.b16 %v77
    %v356 = vunpack.c.l.b16 %v78
    %v357 = vunpack.c.l.b16 %v79
    %v358 = vunpack.c.l.b16 %v80
    %v359 = vunpack.c.l.b16 %v81
    %v360 = vunpack.c.l.b16 %v82
    %v361 = vunpack.c.l.b16 %v83
    %v362 = vunpack.c.l.b16 %v84
    %v363 = vunpack.c.l.b16 %v85
    %v364 = vunpack.c.l.b16 %v86
    %v365 = vunpack.c.l.b16 %v87
    %v366 = vunpack.c.l.b16 %v88
    %v367 = vunpack.c.l.b16 %v89
    %v368 = vunpack.c.l.b16 %v90
    %v369 = vunpack.c.l.b16 %v91
    %v370 = vunpack.c.l.b16 %v92
    %v371 = vunpack.c.l.b16 %v93
    %v372 = vunpack.c.l.b16 %v94
    %v373 = vunpack.c.l.b16 %v95
    %v374 = vunpack.c.l.b16 %v96
    %v375 = vunpack.c.l.b16 %v97
    %v376 = vunpack.c.l.b16 %v98
    %v377 = vunpack.c.l.b16 %v99
    %v378 = vunpack.c.l.b16 %v100
    %v379 = vunpack.c.l.b16 %v101
    %v380 = vunpack.c.l.b16 %v102
    %v381 = vunpack.c.l.b16 %v103
    %v382 = vunpack.c.l.b16 %v104
    %v383 = vunpack.c.l.b16 %v105
    %v384 = vunpack.c.l.b16 %v106
    %v385 = vunpack.c.l.b16 %v107
    %v386 = vunpack.c.l.b16 %v108
    %v387 = vunpack.c.l.b16 %v109
    %v388 = vunpack.c.l.b16 %v110
    %v389 = vunpack.c.l.b16 %v111
    %v390 = vunpack.c.l.b16 %v112
    %v391 = vunpack.c.l.b16 %v113
    %v392 = vunpack.c.l.b16 %v114
    %v393 = vunpack.c.l.b16 %v115
    %v394 = vunpack.c.l.b16 %v116
    %v395 = vunpack.c.l.b16 %v117
    %v396 = vunpack.c.l.b16 %v118
    %v397 = vunpack.c.l.b16 %v119
    %v398 = vunpack.c.l.b16 %v120
    %v399 = vunpack.c.l.b16 %v121
    %v400 = vunpack.c.l.b16 %v122
    %v401 = vunpack.c.l.b16 %v123
    %v402 = vunpack.c.l.b16 %v124
    %v403 = vunpack.c.l.b16 %v125
    %v404 = vunpack.c.l.b16 %v126
    %v405 = vunpack.c.l.b16 %v127
    %v406 = vunpack.c.l.b16 %v128
    %v407 = vunpack.c.l.b16 %v129
    %v408 = vunpack.c.l.b16 %v130
    %v409 = vunpack.c.l.b16 %v131
    %v410 = vunpack.c.l.b16 %v132
    %v411 = vunpack.c.l.b16 %v133
    %v412 = vunpack.c.l.b16 %v134
    %v413 = vunpack.c.l.b16 %v135
    %v414 = vunpack.c.l.b16 %v136
    %v415 = vunpack.c.l.b16 %v137
    %v416 = vunpack.c.l.b16 %v138
    %v417 = vunpack.c.l.b16 %v139
    %v418 = vunpack.c.l.b16 %v140
    %v419 = vunpack.c.l.b16 %v141
    %v420 = vunpack.c.l.b16 %v142
    %v421 = vunpack.c.l.b16 %v143
    %v422 = vunpack.c.l.b16 %v144
    %v423 = vunpack.c.l.b16 %v145
    %v424 = vunpack.c.l.b16 %v146
    %v425 = vunpack.c.l.b16 %v147
    %v426 = vunpack.c.l.b16 %v148
    %v427 = vunpack.c.l.b16 %v149
    %v428 = vunpack.c.l.b16 %v150
    %v429 = vunpack.c.l.b16 %v151
    %v430 = vunpack.c.l.b16 %v152
    %v431 = vunpack.c.l.b16 %v153
    %v432 = vunpack.c.l.b16 %v154
    %v433 = vunpack.c.l.b16 %v155
    %v434 = vpack.c.b16 %v307, %v306
    %v435 = vpack.c.b16 %v309, %v308
    %v436 = vpack.c.b16 %v311, %v310
    %v437 = vpack.c.b16 %v313, %v312
    %v438 = vpack.c.b16 %v315, %v314
    %v439 = vpack.c.b16 %v317, %v316
    %v440 = vpack.c.b16 %v319, %v318
    %v441 = vpack.c.b16 %v321, %v320
    %v442 = vpack.c.b16 %v323, %v322
    %v443 = vpack.c.b16 %v325, %v324
    %v444 = vpack.c.b16 %v327, %v326
    %v445 = vpack.c.b16 %v329, %v328
    %v446 = vpack.c.b16 %v331, %v330
    %v447 = vpack.c.b16 %v333, %v332
    %v448 = vpack.c.b16 %v335, %v334
    %v449 = vpack.c.b16 %v337, %v336
    %v450 = vpack.c.b16 %v339, %v338
    %v451 = vpack.c.b16 %v341, %v340
    %v452 = vpack.c.b16 %v343, %v342
    %v453 = vpack.c.b16 %v345, %v344
    %v454 = vpack.c.b16 %v347, %v346
    %v455 = vpack.c.b16 %v349, %v348
    %v456 = vpack.c.b16 %v351, %v350
    %v457 = vpack.c.b16 %v353, %v352
    %v458 = vpack.c.b16 %v355, %v354
    %v459 = vpack.c.b16 %v357, %v356
    %v460 = vpack.c.b16 %v359, %v358
    %v461 = vpack.c.b16 %v361, %v360
    %v462 = vpack.c.b16 %v363, %v362
    %v463 = vpack.c.b16 %v365, %v364
    %v464 = vpack.c.b16 %v367, %v366
    %v465 = vpack.c.b16 %v369, %v368
    %v466 = vpack.c.b16 %v371, %v370
    %v467 = vpack.c.b16 %v373, %v372
    %v468 = vpack.c.b16 %v375, %v374
    %v469 = vpack.c.b16 %v377, %v376
    %v470 = vpack.c.b16 %v379, %v378
    %v471 = vpack.c.b16 %v381, %v380
    %v472 = vpack.c.b16 %v383, %v382
    %v473 = vpack.c.b16 %v385, %v384
    %v474 = vpack.c.b16 %v387, %v386
    %v475 = vpack.c.b16 %v389, %v388
    %v476 = vpack.c.b16 %v391, %v390
    %v477 = vpack.c.b16 %v393, %v392
    %v478 = vpack.c.b16 %v395, %v394
    %v479 = vpack.c.b16 %v397, %v396
    %v480 = vpack.c.b16 %v399, %v398
    %v481 = vpack.c.b16 %v401, %v400
    %v482 = vpack.c.b16 %v403, %v402
    %v483 = vpack.c.b16 %v405, %v404
    %v484 = vpack.c.b16 %v407, %v406
    %v485 = vpack.c.b16 %v409, %v408
    %v486 = vpack.c.b16 %v411, %v410
    %v487 = vpack.c.b16 %v413, %v412
    %v488 = vpack.c.b16 %v415, %v414
    %v489 = vpack.c.b16 %v417, %v416
    %v490 = vpack.c.b16 %v419, %v418
    %v491 = vpack.c.b16 %v421, %v420
    %v492 = vpack.c.b16 %v423, %v422
    %v493 = vpack.c.b16 %v425, %v424
    %v494 = vpack.c.b16 %v427, %v426
    %v495 = vpack.c.b16 %v429, %v428
    %v496 = vpack.c.b16 %v431, %v430
    %v497 = vpack.c.b16 %v433, %v432
    %562 = vmatpush.bf16.msra.mxu0 %v441
    %563 = vmatpush.bf16.msra.mxu0 %v440
    %564 = vmatpush.bf16.msra.mxu0 %v439
    %565 = vmatpush.bf16.msra.mxu0 %v438
    %566 = vmatpush.bf16.msra.mxu0 %v437
    %567 = vmatpush.bf16.msra.mxu0 %v436
    %568 = vmatpush.bf16.msra.mxu0 %v435
    %569 = vmatpush.bf16.msra.mxu0 %v434
    %570 = vmatmul.bf16.gmra.mxu0 %v162
    %v571 = vpop.f32.mrf.mxu0
    %v572 = vadd.f32 %v158, %v571
    %v573 = vpop.f32.mrf.mxu0
    %574 = vdwg.mxu0
    %575 = vmatpush.bf16.msra.mxu0 %v449
    %576 = vmatpush.bf16.msra.mxu0 %v448
    %577 = vmatpush.bf16.msra.mxu0 %v447
    %578 = vmatpush.bf16.msra.mxu0 %v446
    %579 = vmatpush.bf16.msra.mxu0 %v445
    %580 = vmatpush.bf16.msra.mxu0 %v444
    %581 = vmatpush.bf16.msra.mxu0 %v443
    %582 = vmatpush.bf16.msra.mxu0 %v442
    %583 = vmatmul.bf16.gmra.mxu0 %v163
    %v584 = vpop.f32.mrf.mxu0
    %v585 = vadd.f32 %v572, %v584
    %v586 = vpop.f32.mrf.mxu0
    %587 = vdwg.mxu0
    %588 = vmatpush.bf16.msra.mxu0 %v457
    %589 = vmatpush.bf16.msra.mxu0 %v456
    %590 = vmatpush.bf16.msra.mxu0 %v455
    %591 = vmatpush.bf16.msra.mxu0 %v454
    %592 = vmatpush.bf16.msra.mxu0 %v453
    %593 = vmatpush.bf16.msra.mxu0 %v452
    %594 = vmatpush.bf16.msra.mxu0 %v451
    %595 = vmatpush.bf16.msra.mxu0 %v450
    %596 = vmatmul.bf16.gmra.mxu0 %v164
    %v597 = vpop.f32.mrf.mxu0
    %v598 = vadd.f32 %v585, %v597
    %v599 = vpop.f32.mrf.mxu0
    %600 = vdwg.mxu0
    %601 = vmatpush.bf16.msra.mxu0 %v465
    %602 = vmatpush.bf16.msra.mxu0 %v464
    %603 = vmatpush.bf16.msra.mxu0 %v463
    %604 = vmatpush.bf16.msra.mxu0 %v462
    %605 = vmatpush.bf16.msra.mxu0 %v461
    %606 = vmatpush.bf16.msra.mxu0 %v460
    %607 = vmatpush.bf16.msra.mxu0 %v459
    %608 = vmatpush.bf16.msra.mxu0 %v458
    %609 = vmatmul.bf16.gmra.mxu0 %v165
    %v610 = vpop.f32.mrf.mxu0
    %v611 = vadd.f32 %v598, %v610
    %v612 = vpop.f32.mrf.mxu0
    %613 = vdwg.mxu0
    %614 = vmatpush.bf16.msra.mxu0 %v473
    %615 = vmatpush.bf16.msra.mxu0 %v472
    %616 = vmatpush.bf16.msra.mxu0 %v471
    %617 = vmatpush.bf16.msra.mxu0 %v470
    %618 = vmatpush.bf16.msra.mxu0 %v469
    %619 = vmatpush.bf16.msra.mxu0 %v468
    %620 = vmatpush.bf16.msra.mxu0 %v467
    %621 = vmatpush.bf16.msra.mxu0 %v466
    %622 = vmatmul.bf16.gmra.mxu0 %v166
    %v623 = vpop.f32.mrf.mxu0
    %v624 = vadd.f32 %v611, %v623
    %v625 = vpop.f32.mrf.mxu0
    %626 = vdwg.mxu0
    %627 = vmatpush.bf16.msra.mxu0 %v481
    %628 = vmatpush.bf16.msra.mxu0 %v480
    %629 = vmatpush.bf16.msra.mxu0 %v479
    %630 = vmatpush.bf16.msra.mxu0 %v478
    %631 = vmatpush.bf16.msra.mxu0 %v477
    %632 = vmatpush.bf16.msra.mxu0 %v476
    %633 = vmatpush.bf16.msra.mxu0 %v475
    %634 = vmatpush.bf16.msra.mxu0 %v474
    %635 = vmatmul.bf16.gmra.mxu0 %v167
    %v636 = vpop.f32.mrf.mxu0
    %v637 = vadd.f32 %v624, %v636
    %v638 = vpop.f32.mrf.mxu0
    %639 = vdwg.mxu0
    %640 = vmatpush.bf16.msra.mxu0 %v489
    %641 = vmatpush.bf16.msra.mxu0 %v488
    %642 = vmatpush.bf16.msra.mxu0 %v487
    %643 = vmatpush.bf16.msra.mxu0 %v486
    %644 = vmatpush.bf16.msra.mxu0 %v485
    %645 = vmatpush.bf16.msra.mxu0 %v484
    %646 = vmatpush.bf16.msra.mxu0 %v483
    %647 = vmatpush.bf16.msra.mxu0 %v482
    %648 = vmatmul.bf16.gmra.mxu0 %v168
    %v649 = vpop.f32.mrf.mxu0
    %v650 = vadd.f32 %v637, %v649
    %v651 = vpop.f32.mrf.mxu0
    %652 = vdwg.mxu0
    %653 = vmatpush.bf16.msra.mxu0 %v497
    %654 = vmatpush.bf16.msra.mxu0 %v496
    %655 = vmatpush.bf16.msra.mxu0 %v495
    %656 = vmatpush.bf16.msra.mxu0 %v494
    %657 = vmatpush.bf16.msra.mxu0 %v493
    %658 = vmatpush.bf16.msra.mxu0 %v492
    %659 = vmatpush.bf16.msra.mxu0 %v491
    %660 = vmatpush.bf16.msra.mxu0 %v490
    %661 = vmatmul.bf16.gmra.mxu0 %v169
    %v662 = vpop.f32.mrf.mxu0
    %v663 = vadd.f32 %v650, %v662
    %v664 = vpop.f32.mrf.mxu0
    %665 = vdwg.mxu0
    %v666 = vmax.f32 %v663, 0.0
    %v667 = vpack.c.bf16 %v666, %v666
    %vm668 = vcmask 253952
    %669 = vst.msk [vmem:[#allocation2] sm:$0x1] %vm668, %v667
    %v670 = vld [vmem:[%s0 + $0x8] sm:$0xff]
    %v671 = vld [vmem:[%s1] sm:$0xf]
    %v672 = vld [vmem:[%s1 + $0x4] sm:$0xf]
    %v673 = vld [vmem:[%s1 + $0x8] sm:$0xf]
    %v674 = vld [vmem:[%s1 + $0xc] sm:$0xf]
    %v675 = vld [vmem:[%s1 + $0x10] sm:$0xf]
    %v676 = vld [vmem:[%s1 + $0x14] sm:$0xf]
    %v677 = vld [vmem:[%s1 + $0x18] sm:$0xf]
    %v678 = vld [vmem:[%s1 + $0x1c] sm:$0xf]
    %v679 = vld [vmem:[%s1 + $0x20] sm:$0xf]
    %v680 = vld [vmem:[%s1 + $0x24] sm:$0xf]
    %v681 = vld [vmem:[%s1 + $0x28] sm:$0xf]
    %v682 = vld [vmem:[%s1 + $0x2c] sm:$0xf]
    %v683 = vld [vmem:[%s1 + $0x30] sm:$0xf]
    %v684 = vld [vmem:[%s1 + $0x34] sm:$0xf]
    %v685 = vld [vmem:[%s1 + $0x38] sm:$0xf]
    %v686 = vld [vmem:[%s1 + $0x3c] sm:$0xf]
    %v687 = vld [vmem:[%s1 + $0x40] sm:$0xf]
    %v688 = vld [vmem:[%s1 + $0x44] sm:$0xf]
    %v689 = vld [vmem:[%s1 + $0x48] sm:$0xf]
    %v690 = vld [vmem:[%s1 + $0x4c] sm:$0xf]
    %v691 = vld [vmem:[%s1 + $0x50] sm:$0xf]
    %v692 = vld [vmem:[%s1 + $0x54] sm:$0xf]
    %v693 = vld [vmem:[%s1 + $0x58] sm:$0xf]
    %v694 = vld [vmem:[%s1 + $0x5c] sm:$0xf]
    %v695 = vld [vmem:[%s1 + $0x60] sm:$0xf]
    %v696 = vld [vmem:[%s1 + $0x64] sm:$0xf]
    %v697 = vld [vmem:[%s1 + $0x68] sm:$0xf]
    %v698 = vld [vmem:[%s1 + $0x6c] sm:$0xf]
    %v699 = vld [vmem:[%s1 + $0x70] sm:$0xf]
    %v700 = vld [vmem:[%s1 + $0x74] sm:$0xf]
    %v701 = vld [vmem:[%s1 + $0x78] sm:$0xf]
    %v702 = vld [vmem:[%s1 + $0x7c] sm:$0xf]
    %v703 = vld [vmem:[%s1 + $0x80] sm:$0xf]
    %v704 = vld [vmem:[%s1 + $0x84] sm:$0xf]
    %v705 = vld [vmem:[%s1 + $0x88] sm:$0xf]
    %v706 = vld [vmem:[%s1 + $0x8c] sm:$0xf]
    %v707 = vld [vmem:[%s1 + $0x90] sm:$0xf]
    %v708 = vld [vmem:[%s1 + $0x94] sm:$0xf]
    %v709 = vld [vmem:[%s1 + $0x98] sm:$0xf]
    %v710 = vld [vmem:[%s1 + $0x9c] sm:$0xf]
    %v711 = vld [vmem:[%s1 + $0xa0] sm:$0xf]
    %v712 = vld [vmem:[%s1 + $0xa4] sm:$0xf]
    %v713 = vld [vmem:[%s1 + $0xa8] sm:$0xf]
    %v714 = vld [vmem:[%s1 + $0xac] sm:$0xf]
    %v715 = vld [vmem:[%s1 + $0xb0] sm:$0xf]
    %v716 = vld [vmem:[%s1 + $0xb4] sm:$0xf]
    %v717 = vld [vmem:[%s1 + $0xb8] sm:$0xf]
    %v718 = vld [vmem:[%s1 + $0xbc] sm:$0xf]
    %v719 = vld [vmem:[%s1 + $0xc0] sm:$0xf]
    %v720 = vld [vmem:[%s1 + $0xc4] sm:$0xf]
    %v721 = vld [vmem:[%s1 + $0xc8] sm:$0xf]
    %v722 = vld [vmem:[%s1 + $0xcc] sm:$0xf]
    %v723 = vld [vmem:[%s1 + $0xd0] sm:$0xf]
    %v724 = vld [vmem:[%s1 + $0xd4] sm:$0xf]
    %v725 = vld [vmem:[%s1 + $0xd8] sm:$0xf]
    %v726 = vld [vmem:[%s1 + $0xdc] sm:$0xf]
    %v727 = vld [vmem:[%s1 + $0xe0] sm:$0xf]
    %v728 = vld [vmem:[%s1 + $0xe4] sm:$0xf]
    %v729 = vld [vmem:[%s1 + $0xe8] sm:$0xf]
    %v730 = vld [vmem:[%s1 + $0xec] sm:$0xf]
    %v731 = vld [vmem:[%s1 + $0xf0] sm:$0xf]
    %v732 = vld [vmem:[%s1 + $0xf4] sm:$0xf]
    %v733 = vld [vmem:[%s1 + $0xf8] sm:$0xf]
    %v734 = vld [vmem:[%s1 + $0xfc] sm:$0xf]
    %v735 = vld [vmem:[%s1 + $0x100] sm:$0xf]
    %v736 = vld [vmem:[%s1 + $0x104] sm:$0xf]
    %v737 = vld [vmem:[%s1 + $0x108] sm:$0xf]
    %v738 = vld [vmem:[%s1 + $0x10c] sm:$0xf]
    %v739 = vld [vmem:[%s1 + $0x110] sm:$0xf]
    %v740 = vld [vmem:[%s1 + $0x114] sm:$0xf]
    %v741 = vld [vmem:[%s1 + $0x118] sm:$0xf]
    %v742 = vld [vmem:[%s1 + $0x11c] sm:$0xf]
    %v743 = vld [vmem:[%s1 + $0x120] sm:$0xf]
    %v744 = vld [vmem:[%s1 + $0x124] sm:$0xf]
    %v745 = vld [vmem:[%s1 + $0x128] sm:$0xf]
    %v746 = vld [vmem:[%s1 + $0x12c] sm:$0xf]
    %v747 = vld [vmem:[%s1 + $0x130] sm:$0xf]
    %v748 = vld [vmem:[%s1 + $0x134] sm:$0xf]
    %v749 = vld [vmem:[%s1 + $0x138] sm:$0xf]
    %v750 = vld [vmem:[%s1 + $0x13c] sm:$0xf]
    %v751 = vld [vmem:[%s1 + $0x140] sm:$0xf]
    %v752 = vld [vmem:[%s1 + $0x144] sm:$0xf]
    %v753 = vld [vmem:[%s1 + $0x148] sm:$0xf]
    %v754 = vld [vmem:[%s1 + $0x14c] sm:$0xf]
    %v755 = vld [vmem:[%s1 + $0x150] sm:$0xf]
    %v756 = vld [vmem:[%s1 + $0x154] sm:$0xf]
    %v757 = vld [vmem:[%s1 + $0x158] sm:$0xf]
    %v758 = vld [vmem:[%s1 + $0x15c] sm:$0xf]
    %v759 = vld [vmem:[%s1 + $0x160] sm:$0xf]
    %v760 = vld [vmem:[%s1 + $0x164] sm:$0xf]
    %v761 = vld [vmem:[%s1 + $0x168] sm:$0xf]
    %v762 = vld [vmem:[%s1 + $0x16c] sm:$0xf]
    %v763 = vld [vmem:[%s1 + $0x170] sm:$0xf]
    %v764 = vld [vmem:[%s1 + $0x174] sm:$0xf]
    %v765 = vld [vmem:[%s1 + $0x178] sm:$0xf]
    %v766 = vld [vmem:[%s1 + $0x17c] sm:$0xf]
    %v767 = vld [vmem:[%s1 + $0x180] sm:$0xf]
    %v768 = vld [vmem:[%s1 + $0x184] sm:$0xf]
    %v769 = vld [vmem:[%s1 + $0x188] sm:$0xf]
    %v770 = vld [vmem:[%s1 + $0x18c] sm:$0xf]
    %v771 = vld [vmem:[%s1 + $0x190] sm:$0xf]
    %v772 = vld [vmem:[%s1 + $0x194] sm:$0xf]
    %v773 = vld [vmem:[%s1 + $0x198] sm:$0xf]
    %v774 = vld [vmem:[%s1 + $0x19c] sm:$0xf]
    %v775 = vld [vmem:[%s1 + $0x1a0] sm:$0xf]
    %v776 = vld [vmem:[%s1 + $0x1a4] sm:$0xf]
    %v777 = vld [vmem:[%s1 + $0x1a8] sm:$0xf]
    %v778 = vld [vmem:[%s1 + $0x1ac] sm:$0xf]
    %v779 = vld [vmem:[%s1 + $0x1b0] sm:$0xf]
    %v780 = vld [vmem:[%s1 + $0x1b4] sm:$0xf]
    %v781 = vld [vmem:[%s1 + $0x1b8] sm:$0xf]
    %v782 = vld [vmem:[%s1 + $0x1bc] sm:$0xf]
    %v783 = vld [vmem:[%s1 + $0x1c0] sm:$0xf]
    %v784 = vld [vmem:[%s1 + $0x1c4] sm:$0xf]
    %v785 = vld [vmem:[%s1 + $0x1c8] sm:$0xf]
    %v786 = vld [vmem:[%s1 + $0x1cc] sm:$0xf]
    %v787 = vld [vmem:[%s1 + $0x1d0] sm:$0xf]
    %v788 = vld [vmem:[%s1 + $0x1d4] sm:$0xf]
    %v789 = vld [vmem:[%s1 + $0x1d8] sm:$0xf]
    %v790 = vld [vmem:[%s1 + $0x1dc] sm:$0xf]
    %v791 = vld [vmem:[%s1 + $0x1e0] sm:$0xf]
    %v792 = vld [vmem:[%s1 + $0x1e4] sm:$0xf]
    %v793 = vld [vmem:[%s1 + $0x1e8] sm:$0xf]
    %v794 = vld [vmem:[%s1 + $0x1ec] sm:$0xf]
    %v795 = vld [vmem:[%s1 + $0x1f0] sm:$0xf]
    %v796 = vld [vmem:[%s1 + $0x1f4] sm:$0xf]
    %v797 = vld [vmem:[%s1 + $0x1f8] sm:$0xf]
    %v798 = vld [vmem:[%s1 + $0x1fc] sm:$0xf]
    %v799 = vld [vmem:[%s2] sm:$0x1]
    %v801 = vperm.slane %v799, 0
    %804 = vst [vmem:[#allocation1] ss:$9 sm:$0xff] %v670
    %v805 = vld [vmem:[#allocation1] sm:$0xff]
    %v806 = vld [vmem:[#allocation1 + $0x9] sm:$0xff]
    %v807 = vld [vmem:[#allocation1 + $0x12] sm:$0xff]
    %v808 = vld [vmem:[#allocation1 + $0x1b] sm:$0xff]
    %v809 = vld [vmem:[#allocation1 + $0x24] sm:$0xff]
    %v810 = vld [vmem:[#allocation1 + $0x2d] sm:$0xff]
    %v811 = vld [vmem:[#allocation1 + $0x36] sm:$0xff]
    %v812 = vld [vmem:[#allocation1 + $0x3f] sm:$0xff]
    %v949 = vunpack.c.l.b16 %v671
    %v950 = vunpack.c.l.b16 %v672
    %v951 = vunpack.c.l.b16 %v673
    %v952 = vunpack.c.l.b16 %v674
    %v953 = vunpack.c.l.b16 %v675
    %v954 = vunpack.c.l.b16 %v676
    %v955 = vunpack.c.l.b16 %v677
    %v956 = vunpack.c.l.b16 %v678
    %v957 = vunpack.c.l.b16 %v679
    %v958 = vunpack.c.l.b16 %v680
    %v959 = vunpack.c.l.b16 %v681
    %v960 = vunpack.c.l.b16 %v682
    %v961 = vunpack.c.l.b16 %v683
    %v962 = vunpack.c.l.b16 %v684
    %v963 = vunpack.c.l.b16 %v685
    %v964 = vunpack.c.l.b16 %v686
    %v965 = vunpack.c.l.b16 %v687
    %v966 = vunpack.c.l.b16 %v688
    %v967 = vunpack.c.l.b16 %v689
    %v968 = vunpack.c.l.b16 %v690
    %v969 = vunpack.c.l.b16 %v691
    %v970 = vunpack.c.l.b16 %v692
    %v971 = vunpack.c.l.b16 %v693
    %v972 = vunpack.c.l.b16 %v694
    %v973 = vunpack.c.l.b16 %v695
    %v974 = vunpack.c.l.b16 %v696
    %v975 = vunpack.c.l.b16 %v697
    %v976 = vunpack.c.l.b16 %v698
    %v977 = vunpack.c.l.b16 %v699
    %v978 = vunpack.c.l.b16 %v700
    %v979 = vunpack.c.l.b16 %v701
    %v980 = vunpack.c.l.b16 %v702
    %v981 = vunpack.c.l.b16 %v703
    %v982 = vunpack.c.l.b16 %v704
    %v983 = vunpack.c.l.b16 %v705
    %v984 = vunpack.c.l.b16 %v706
    %v985 = vunpack.c.l.b16 %v707
    %v986 = vunpack.c.l.b16 %v708
    %v987 = vunpack.c.l.b16 %v709
    %v988 = vunpack.c.l.b16 %v710
    %v989 = vunpack.c.l.b16 %v711
    %v990 = vunpack.c.l.b16 %v712
    %v991 = vunpack.c.l.b16 %v713
    %v992 = vunpack.c.l.b16 %v714
    %v993 = vunpack.c.l.b16 %v715
    %v994 = vunpack.c.l.b16 %v716
    %v995 = vunpack.c.l.b16 %v717
    %v996 = vunpack.c.l.b16 %v718
    %v997 = vunpack.c.l.b16 %v719
    %v998 = vunpack.c.l.b16 %v720
    %v999 = vunpack.c.l.b16 %v721
    %v1000 = vunpack.c.l.b16 %v722
    %v1001 = vunpack.c.l.b16 %v723
    %v1002 = vunpack.c.l.b16 %v724
    %v1003 = vunpack.c.l.b16 %v725
    %v1004 = vunpack.c.l.b16 %v726
    %v1005 = vunpack.c.l.b16 %v727
    %v1006 = vunpack.c.l.b16 %v728
    %v1007 = vunpack.c.l.b16 %v729
    %v1008 = vunpack.c.l.b16 %v730
    %v1009 = vunpack.c.l.b16 %v731
    %v1010 = vunpack.c.l.b16 %v732
    %v1011 = vunpack.c.l.b16 %v733
    %v1012 = vunpack.c.l.b16 %v734
    %v1013 = vunpack.c.l.b16 %v735
    %v1014 = vunpack.c.l.b16 %v736
    %v1015 = vunpack.c.l.b16 %v737
    %v1016 = vunpack.c.l.b16 %v738
    %v1017 = vunpack.c.l.b16 %v739
    %v1018 = vunpack.c.l.b16 %v740
    %v1019 = vunpack.c.l.b16 %v741
    %v1020 = vunpack.c.l.b16 %v742
    %v1021 = vunpack.c.l.b16 %v743
    %v1022 = vunpack.c.l.b16 %v744
    %v1023 = vunpack.c.l.b16 %v745
    %v1024 = vunpack.c.l.b16 %v746
    %v1025 = vunpack.c.l.b16 %v747
    %v1026 = vunpack.c.l.b16 %v748
    %v1027 = vunpack.c.l.b16 %v749
    %v1028 = vunpack.c.l.b16 %v750
    %v1029 = vunpack.c.l.b16 %v751
    %v1030 = vunpack.c.l.b16 %v752
    %v1031 = vunpack.c.l.b16 %v753
    %v1032 = vunpack.c.l.b16 %v754
    %v1033 = vunpack.c.l.b16 %v755
    %v1034 = vunpack.c.l.b16 %v756
    %v1035 = vunpack.c.l.b16 %v757
    %v1036 = vunpack.c.l.b16 %v758
    %v1037 = vunpack.c.l.b16 %v759
    %v1038 = vunpack.c.l.b16 %v760
    %v1039 = vunpack.c.l.b16 %v761
    %v1040 = vunpack.c.l.b16 %v762
    %v1041 = vunpack.c.l.b16 %v763
    %v1042 = vunpack.c.l.b16 %v764
    %v1043 = vunpack.c.l.b16 %v765
    %v1044 = vunpack.c.l.b16 %v766
    %v1045 = vunpack.c.l.b16 %v767
    %v1046 = vunpack.c.l.b16 %v768
    %v1047 = vunpack.c.l.b16 %v769
    %v1048 = vunpack.c.l.b16 %v770
    %v1049 = vunpack.c.l.b16 %v771
    %v1050 = vunpack.c.l.b16 %v772
    %v1051 = vunpack.c.l.b16 %v773
    %v1052 = vunpack.c.l.b16 %v774
    %v1053 = vunpack.c.l.b16 %v775
    %v1054 = vunpack.c.l.b16 %v776
    %v1055 = vunpack.c.l.b16 %v777
    %v1056 = vunpack.c.l.b16 %v778
    %v1057 = vunpack.c.l.b16 %v779
    %v1058 = vunpack.c.l.b16 %v780
    %v1059 = vunpack.c.l.b16 %v781
    %v1060 = vunpack.c.l.b16 %v782
    %v1061 = vunpack.c.l.b16 %v783
    %v1062 = vunpack.c.l.b16 %v784
    %v1063 = vunpack.c.l.b16 %v785
    %v1064 = vunpack.c.l.b16 %v786
    %v1065 = vunpack.c.l.b16 %v787
    %v1066 = vunpack.c.l.b16 %v788
    %v1067 = vunpack.c.l.b16 %v789
    %v1068 = vunpack.c.l.b16 %v790
    %v1069 = vunpack.c.l.b16 %v791
    %v1070 = vunpack.c.l.b16 %v792
    %v1071 = vunpack.c.l.b16 %v793
    %v1072 = vunpack.c.l.b16 %v794
    %v1073 = vunpack.c.l.b16 %v795
    %v1074 = vunpack.c.l.b16 %v796
    %v1075 = vunpack.c.l.b16 %v797
    %v1076 = vunpack.c.l.b16 %v798
    %v1077 = vpack.c.b16 %v950, %v949
    %v1078 = vpack.c.b16 %v952, %v951
    %v1079 = vpack.c.b16 %v954, %v953
    %v1080 = vpack.c.b16 %v956, %v955
    %v1081 = vpack.c.b16 %v958, %v957
    %v1082 = vpack.c.b16 %v960, %v959
    %v1083 = vpack.c.b16 %v962, %v961
    %v1084 = vpack.c.b16 %v964, %v963
    %v1085 = vpack.c.b16 %v966, %v965
    %v1086 = vpack.c.b16 %v968, %v967
    %v1087 = vpack.c.b16 %v970, %v969
    %v1088 = vpack.c.b16 %v972, %v971
    %v1089 = vpack.c.b16 %v974, %v973
    %v1090 = vpack.c.b16 %v976, %v975
    %v1091 = vpack.c.b16 %v978, %v977
    %v1092 = vpack.c.b16 %v980, %v979
    %v1093 = vpack.c.b16 %v982, %v981
    %v1094 = vpack.c.b16 %v984, %v983
    %v1095 = vpack.c.b16 %v986, %v985
    %v1096 = vpack.c.b16 %v988, %v987
    %v1097 = vpack.c.b16 %v990, %v989
    %v1098 = vpack.c.b16 %v992, %v991
    %v1099 = vpack.c.b16 %v994, %v993
    %v1100 = vpack.c.b16 %v996, %v995
    %v1101 = vpack.c.b16 %v998, %v997
    %v1102 = vpack.c.b16 %v1000, %v999
    %v1103 = vpack.c.b16 %v1002, %v1001
    %v1104 = vpack.c.b16 %v1004, %v1003
    %v1105 = vpack.c.b16 %v1006, %v1005
    %v1106 = vpack.c.b16 %v1008, %v1007
    %v1107 = vpack.c.b16 %v1010, %v1009
    %v1108 = vpack.c.b16 %v1012, %v1011
    %v1109 = vpack.c.b16 %v1014, %v1013
    %v1110 = vpack.c.b16 %v1016, %v1015
    %v1111 = vpack.c.b16 %v1018, %v1017
    %v1112 = vpack.c.b16 %v1020, %v1019
    %v1113 = vpack.c.b16 %v1022, %v1021
    %v1114 = vpack.c.b16 %v1024, %v1023
    %v1115 = vpack.c.b16 %v1026, %v1025
    %v1116 = vpack.c.b16 %v1028, %v1027
    %v1117 = vpack.c.b16 %v1030, %v1029
    %v1118 = vpack.c.b16 %v1032, %v1031
    %v1119 = vpack.c.b16 %v1034, %v1033
    %v1120 = vpack.c.b16 %v1036, %v1035
    %v1121 = vpack.c.b16 %v1038, %v1037
    %v1122 = vpack.c.b16 %v1040, %v1039
    %v1123 = vpack.c.b16 %v1042, %v1041
    %v1124 = vpack.c.b16 %v1044, %v1043
    %v1125 = vpack.c.b16 %v1046, %v1045
    %v1126 = vpack.c.b16 %v1048, %v1047
    %v1127 = vpack.c.b16 %v1050, %v1049
    %v1128 = vpack.c.b16 %v1052, %v1051
    %v1129 = vpack.c.b16 %v1054, %v1053
    %v1130 = vpack.c.b16 %v1056, %v1055
    %v1131 = vpack.c.b16 %v1058, %v1057
    %v1132 = vpack.c.b16 %v1060, %v1059
    %v1133 = vpack.c.b16 %v1062, %v1061
    %v1134 = vpack.c.b16 %v1064, %v1063
    %v1135 = vpack.c.b16 %v1066, %v1065
    %v1136 = vpack.c.b16 %v1068, %v1067
    %v1137 = vpack.c.b16 %v1070, %v1069
    %v1138 = vpack.c.b16 %v1072, %v1071
    %v1139 = vpack.c.b16 %v1074, %v1073
    %v1140 = vpack.c.b16 %v1076, %v1075
    %1205 = vmatpush.bf16.msra.mxu0 %v1084
    %1206 = vmatpush.bf16.msra.mxu0 %v1083
    %1207 = vmatpush.bf16.msra.mxu0 %v1082
    %1208 = vmatpush.bf16.msra.mxu0 %v1081
    %1209 = vmatpush.bf16.msra.mxu0 %v1080
    %1210 = vmatpush.bf16.msra.mxu0 %v1079
    %1211 = vmatpush.bf16.msra.mxu0 %v1078
    %1212 = vmatpush.bf16.msra.mxu0 %v1077
    %1213 = vmatmul.bf16.gmra.mxu0 %v805
    %v1214 = vpop.f32.mrf.mxu0
    %v1215 = vadd.f32 %v801, %v1214
    %v1216 = vpop.f32.mrf.mxu0
    %1217 = vdwg.mxu0
    %1218 = vmatpush.bf16.msra.mxu0 %v1092
    %1219 = vmatpush.bf16.msra.mxu0 %v1091
    %1220 = vmatpush.bf16.msra.mxu0 %v1090
    %1221 = vmatpush.bf16.msra.mxu0 %v1089
    %1222 = vmatpush.bf16.msra.mxu0 %v1088
    %1223 = vmatpush.bf16.msra.mxu0 %v1087
    %1224 = vmatpush.bf16.msra.mxu0 %v1086
    %1225 = vmatpush.bf16.msra.mxu0 %v1085
    %1226 = vmatmul.bf16.gmra.mxu0 %v806
    %v1227 = vpop.f32.mrf.mxu0
    %v1228 = vadd.f32 %v1215, %v1227
    %v1229 = vpop.f32.mrf.mxu0
    %1230 = vdwg.mxu0
    %1231 = vmatpush.bf16.msra.mxu0 %v1100
    %1232 = vmatpush.bf16.msra.mxu0 %v1099
    %1233 = vmatpush.bf16.msra.mxu0 %v1098
    %1234 = vmatpush.bf16.msra.mxu0 %v1097
    %1235 = vmatpush.bf16.msra.mxu0 %v1096
    %1236 = vmatpush.bf16.msra.mxu0 %v1095
    %1237 = vmatpush.bf16.msra.mxu0 %v1094
    %1238 = vmatpush.bf16.msra.mxu0 %v1093
    %1239 = vmatmul.bf16.gmra.mxu0 %v807
    %v1240 = vpop.f32.mrf.mxu0
    %v1241 = vadd.f32 %v1228, %v1240
    %v1242 = vpop.f32.mrf.mxu0
    %1243 = vdwg.mxu0
    %1244 = vmatpush.bf16.msra.mxu0 %v1108
    %1245 = vmatpush.bf16.msra.mxu0 %v1107
    %1246 = vmatpush.bf16.msra.mxu0 %v1106
    %1247 = vmatpush.bf16.msra.mxu0 %v1105
    %1248 = vmatpush.bf16.msra.mxu0 %v1104
    %1249 = vmatpush.bf16.msra.mxu0 %v1103
    %1250 = vmatpush.bf16.msra.mxu0 %v1102
    %1251 = vmatpush.bf16.msra.mxu0 %v1101
    %1252 = vmatmul.bf16.gmra.mxu0 %v808
    %v1253 = vpop.f32.mrf.mxu0
    %v1254 = vadd.f32 %v1241, %v1253
    %v1255 = vpop.f32.mrf.mxu0
    %1256 = vdwg.mxu0
    %1257 = vmatpush.bf16.msra.mxu0 %v1116
    %1258 = vmatpush.bf16.msra.mxu0 %v1115
    %1259 = vmatpush.bf16.msra.mxu0 %v1114
    %1260 = vmatpush.bf16.msra.mxu0 %v1113
    %1261 = vmatpush.bf16.msra.mxu0 %v1112
    %1262 = vmatpush.bf16.msra.mxu0 %v1111
    %1263 = vmatpush.bf16.msra.mxu0 %v1110
    %1264 = vmatpush.bf16.msra.mxu0 %v1109
    %1265 = vmatmul.bf16.gmra.mxu0 %v809
    %v1266 = vpop.f32.mrf.mxu0
    %v1267 = vadd.f32 %v1254, %v1266
    %v1268 = vpop.f32.mrf.mxu0
    %1269 = vdwg.mxu0
    %1270 = vmatpush.bf16.msra.mxu0 %v1124
    %1271 = vmatpush.bf16.msra.mxu0 %v1123
    %1272 = vmatpush.bf16.msra.mxu0 %v1122
    %1273 = vmatpush.bf16.msra.mxu0 %v1121
    %1274 = vmatpush.bf16.msra.mxu0 %v1120
    %1275 = vmatpush.bf16.msra.mxu0 %v1119
    %1276 = vmatpush.bf16.msra.mxu0 %v1118
    %1277 = vmatpush.bf16.msra.mxu0 %v1117
    %1278 = vmatmul.bf16.gmra.mxu0 %v810
    %v1279 = vpop.f32.mrf.mxu0
    %v1280 = vadd.f32 %v1267, %v1279
    %v1281 = vpop.f32.mrf.mxu0
    %1282 = vdwg.mxu0
    %1283 = vmatpush.bf16.msra.mxu0 %v1132
    %1284 = vmatpush.bf16.msra.mxu0 %v1131
    %1285 = vmatpush.bf16.msra.mxu0 %v1130
    %1286 = vmatpush.bf16.msra.mxu0 %v1129
    %1287 = vmatpush.bf16.msra.mxu0 %v1128
    %1288 = vmatpush.bf16.msra.mxu0 %v1127
    %1289 = vmatpush.bf16.msra.mxu0 %v1126
    %1290 = vmatpush.bf16.msra.mxu0 %v1125
    %1291 = vmatmul.bf16.gmra.mxu0 %v811
    %v1292 = vpop.f32.mrf.mxu0
    %v1293 = vadd.f32 %v1280, %v1292
    %v1294 = vpop.f32.mrf.mxu0
    %1295 = vdwg.mxu0
    %1296 = vmatpush.bf16.msra.mxu0 %v1140
    %1297 = vmatpush.bf16.msra.mxu0 %v1139
    %1298 = vmatpush.bf16.msra.mxu0 %v1138
    %1299 = vmatpush.bf16.msra.mxu0 %v1137
    %1300 = vmatpush.bf16.msra.mxu0 %v1136
    %1301 = vmatpush.bf16.msra.mxu0 %v1135
    %1302 = vmatpush.bf16.msra.mxu0 %v1134
    %1303 = vmatpush.bf16.msra.mxu0 %v1133
    %1304 = vmatmul.bf16.gmra.mxu0 %v812
    %v1305 = vpop.f32.mrf.mxu0
    %v1306 = vadd.f32 %v1293, %v1305
    %v1307 = vpop.f32.mrf.mxu0
    %1308 = vdwg.mxu0
    %v1309 = vmax.f32 %v1306, 0.0
    %v1310 = vpack.c.bf16 %v1309, %v1309
    %v1312 = vrot.slane %v1310, 3
    %vm1313 = vcmask 1040384
    %v1316 = vsel %vm1313, %v1310, %v1312
    %1318 = vrot.lane.b32.xlu0 %v1316, 32
    %v1319 = vpop.permute.xlu0 %1318
    %vm1321 = vcmask 516352
    %1322 = vst.msk [vmem:[#allocation2] sm:$0x1] %vm1321, %v1319
    %v1323 = vld [vmem:[%s0 + $0x10] sm:$0xff]
    %v1324 = vld [vmem:[%s1] sm:$0xf]
    %v1325 = vld [vmem:[%s1 + $0x4] sm:$0xf]
    %v1326 = vld [vmem:[%s1 + $0x8] sm:$0xf]
    %v1327 = vld [vmem:[%s1 + $0xc] sm:$0xf]
    %v1328 = vld [vmem:[%s1 + $0x10] sm:$0xf]
    %v1329 = vld [vmem:[%s1 + $0x14] sm:$0xf]
    %v1330 = vld [vmem:[%s1 + $0x18] sm:$0xf]
    %v1331 = vld [vmem:[%s1 + $0x1c] sm:$0xf]
    %v1332 = vld [vmem:[%s1 + $0x20] sm:$0xf]
    %v1333 = vld [vmem:[%s1 + $0x24] sm:$0xf]
    %v1334 = vld [vmem:[%s1 + $0x28] sm:$0xf]
    %v1335 = vld [vmem:[%s1 + $0x2c] sm:$0xf]
    %v1336 = vld [vmem:[%s1 + $0x30] sm:$0xf]
    %v1337 = vld [vmem:[%s1 + $0x34] sm:$0xf]
    %v1338 = vld [vmem:[%s1 + $0x38] sm:$0xf]
    %v1339 = vld [vmem:[%s1 + $0x3c] sm:$0xf]
    %v1340 = vld [vmem:[%s1 + $0x40] sm:$0xf]
    %v1341 = vld [vmem:[%s1 + $0x44] sm:$0xf]
    %v1342 = vld [vmem:[%s1 + $0x48] sm:$0xf]
    %v1343 = vld [vmem:[%s1 + $0x4c] sm:$0xf]
    %v1344 = vld [vmem:[%s1 + $0x50] sm:$0xf]
    %v1345 = vld [vmem:[%s1 + $0x54] sm:$0xf]
    %v1346 = vld [vmem:[%s1 + $0x58] sm:$0xf]
    %v1347 = vld [vmem:[%s1 + $0x5c] sm:$0xf]
    %v1348 = vld [vmem:[%s1 + $0x60] sm:$0xf]
    %v1349 = vld [vmem:[%s1 + $0x64] sm:$0xf]
    %v1350 = vld [vmem:[%s1 + $0x68] sm:$0xf]
    %v1351 = vld [vmem:[%s1 + $0x6c] sm:$0xf]
    %v1352 = vld [vmem:[%s1 + $0x70] sm:$0xf]
    %v1353 = vld [vmem:[%s1 + $0x74] sm:$0xf]
    %v1354 = vld [vmem:[%s1 + $0x78] sm:$0xf]
    %v1355 = vld [vmem:[%s1 + $0x7c] sm:$0xf]
    %v1356 = vld [vmem:[%s1 + $0x80] sm:$0xf]
    %v1357 = vld [vmem:[%s1 + $0x84] sm:$0xf]
    %v1358 = vld [vmem:[%s1 + $0x88] sm:$0xf]
    %v1359 = vld [vmem:[%s1 + $0x8c] sm:$0xf]
    %v1360 = vld [vmem:[%s1 + $0x90] sm:$0xf]
    %v1361 = vld [vmem:[%s1 + $0x94] sm:$0xf]
    %v1362 = vld [vmem:[%s1 + $0x98] sm:$0xf]
    %v1363 = vld [vmem:[%s1 + $0x9c] sm:$0xf]
    %v1364 = vld [vmem:[%s1 + $0xa0] sm:$0xf]
    %v1365 = vld [vmem:[%s1 + $0xa4] sm:$0xf]
    %v1366 = vld [vmem:[%s1 + $0xa8] sm:$0xf]
    %v1367 = vld [vmem:[%s1 + $0xac] sm:$0xf]
    %v1368 = vld [vmem:[%s1 + $0xb0] sm:$0xf]
    %v1369 = vld [vmem:[%s1 + $0xb4] sm:$0xf]
    %v1370 = vld [vmem:[%s1 + $0xb8] sm:$0xf]
    %v1371 = vld [vmem:[%s1 + $0xbc] sm:$0xf]
    %v1372 = vld [vmem:[%s1 + $0xc0] sm:$0xf]
    %v1373 = vld [vmem:[%s1 + $0xc4] sm:$0xf]
    %v1374 = vld [vmem:[%s1 + $0xc8] sm:$0xf]
    %v1375 = vld [vmem:[%s1 + $0xcc] sm:$0xf]
    %v1376 = vld [vmem:[%s1 + $0xd0] sm:$0xf]
    %v1377 = vld [vmem:[%s1 + $0xd4] sm:$0xf]
    %v1378 = vld [vmem:[%s1 + $0xd8] sm:$0xf]
    %v1379 = vld [vmem:[%s1 + $0xdc] sm:$0xf]
    %v1380 = vld [vmem:[%s1 + $0xe0] sm:$0xf]
    %v1381 = vld [vmem:[%s1 + $0xe4] sm:$0xf]
    %v1382 = vld [vmem:[%s1 + $0xe8] sm:$0xf]
    %v1383 = vld [vmem:[%s1 + $0xec] sm:$0xf]
    %v1384 = vld [vmem:[%s1 + $0xf0] sm:$0xf]
    %v1385 = vld [vmem:[%s1 + $0xf4] sm:$0xf]
    %v1386 = vld [vmem:[%s1 + $0xf8] sm:$0xf]
    %v1387 = vld [vmem:[%s1 + $0xfc] sm:$0xf]
    %v1388 = vld [vmem:[%s1 + $0x100] sm:$0xf]
    %v1389 = vld [vmem:[%s1 + $0x104] sm:$0xf]
    %v1390 = vld [vmem:[%s1 + $0x108] sm:$0xf]
    %v1391 = vld [vmem:[%s1 + $0x10c] sm:$0xf]
    %v1392 = vld [vmem:[%s1 + $0x110] sm:$0xf]
    %v1393 = vld [vmem:[%s1 + $0x114] sm:$0xf]
    %v1394 = vld [vmem:[%s1 + $0x118] sm:$0xf]
    %v1395 = vld [vmem:[%s1 + $0x11c] sm:$0xf]
    %v1396 = vld [vmem:[%s1 + $0x120] sm:$0xf]
    %v1397 = vld [vmem:[%s1 + $0x124] sm:$0xf]
    %v1398 = vld [vmem:[%s1 + $0x128] sm:$0xf]
    %v1399 = vld [vmem:[%s1 + $0x12c] sm:$0xf]
    %v1400 = vld [vmem:[%s1 + $0x130] sm:$0xf]
    %v1401 = vld [vmem:[%s1 + $0x134] sm:$0xf]
    %v1402 = vld [vmem:[%s1 + $0x138] sm:$0xf]
    %v1403 = vld [vmem:[%s1 + $0x13c] sm:$0xf]
    %v1404 = vld [vmem:[%s1 + $0x140] sm:$0xf]
    %v1405 = vld [vmem:[%s1 + $0x144] sm:$0xf]
    %v1406 = vld [vmem:[%s1 + $0x148] sm:$0xf]
    %v1407 = vld [vmem:[%s1 + $0x14c] sm:$0xf]
    %v1408 = vld [vmem:[%s1 + $0x150] sm:$0xf]
    %v1409 = vld [vmem:[%s1 + $0x154] sm:$0xf]
    %v1410 = vld [vmem:[%s1 + $0x158] sm:$0xf]
    %v1411 = vld [vmem:[%s1 + $0x15c] sm:$0xf]
    %v1412 = vld [vmem:[%s1 + $0x160] sm:$0xf]
    %v1413 = vld [vmem:[%s1 + $0x164] sm:$0xf]
    %v1414 = vld [vmem:[%s1 + $0x168] sm:$0xf]
    %v1415 = vld [vmem:[%s1 + $0x16c] sm:$0xf]
    %v1416 = vld [vmem:[%s1 + $0x170] sm:$0xf]
    %v1417 = vld [vmem:[%s1 + $0x174] sm:$0xf]
    %v1418 = vld [vmem:[%s1 + $0x178] sm:$0xf]
    %v1419 = vld [vmem:[%s1 + $0x17c] sm:$0xf]
    %v1420 = vld [vmem:[%s1 + $0x180] sm:$0xf]
    %v1421 = vld [vmem:[%s1 + $0x184] sm:$0xf]
    %v1422 = vld [vmem:[%s1 + $0x188] sm:$0xf]
    %v1423 = vld [vmem:[%s1 + $0x18c] sm:$0xf]
    %v1424 = vld [vmem:[%s1 + $0x190] sm:$0xf]
    %v1425 = vld [vmem:[%s1 + $0x194] sm:$0xf]
    %v1426 = vld [vmem:[%s1 + $0x198] sm:$0xf]
    %v1427 = vld [vmem:[%s1 + $0x19c] sm:$0xf]
    %v1428 = vld [vmem:[%s1 + $0x1a0] sm:$0xf]
    %v1429 = vld [vmem:[%s1 + $0x1a4] sm:$0xf]
    %v1430 = vld [vmem:[%s1 + $0x1a8] sm:$0xf]
    %v1431 = vld [vmem:[%s1 + $0x1ac] sm:$0xf]
    %v1432 = vld [vmem:[%s1 + $0x1b0] sm:$0xf]
    %v1433 = vld [vmem:[%s1 + $0x1b4] sm:$0xf]
    %v1434 = vld [vmem:[%s1 + $0x1b8] sm:$0xf]
    %v1435 = vld [vmem:[%s1 + $0x1bc] sm:$0xf]
    %v1436 = vld [vmem:[%s1 + $0x1c0] sm:$0xf]
    %v1437 = vld [vmem:[%s1 + $0x1c4] sm:$0xf]
    %v1438 = vld [vmem:[%s1 + $0x1c8] sm:$0xf]
    %v1439 = vld [vmem:[%s1 + $0x1cc] sm:$0xf]
    %v1440 = vld [vmem:[%s1 + $0x1d0] sm:$0xf]
    %v1441 = vld [vmem:[%s1 + $0x1d4] sm:$0xf]
    %v1442 = vld [vmem:[%s1 + $0x1d8] sm:$0xf]
    %v1443 = vld [vmem:[%s1 + $0x1dc] sm:$0xf]
    %v1444 = vld [vmem:[%s1 + $0x1e0] sm:$0xf]
    %v1445 = vld [vmem:[%s1 + $0x1e4] sm:$0xf]
    %v1446 = vld [vmem:[%s1 + $0x1e8] sm:$0xf]
    %v1447 = vld [vmem:[%s1 + $0x1ec] sm:$0xf]
    %v1448 = vld [vmem:[%s1 + $0x1f0] sm:$0xf]
    %v1449 = vld [vmem:[%s1 + $0x1f4] sm:$0xf]
    %v1450 = vld [vmem:[%s1 + $0x1f8] sm:$0xf]
    %v1451 = vld [vmem:[%s1 + $0x1fc] sm:$0xf]
    %v1452 = vld [vmem:[%s2] sm:$0x1]
    %v1454 = vperm.slane %v1452, 0
    %1457 = vst [vmem:[#allocation1] ss:$9 sm:$0xff] %v1323
    %v1458 = vld [vmem:[#allocation1] sm:$0xff]
    %v1459 = vld [vmem:[#allocation1 + $0x9] sm:$0xff]
    %v1460 = vld [vmem:[#allocation1 + $0x12] sm:$0xff]
    %v1461 = vld [vmem:[#allocation1 + $0x1b] sm:$0xff]
    %v1462 = vld [vmem:[#allocation1 + $0x24] sm:$0xff]
    %v1463 = vld [vmem:[#allocation1 + $0x2d] sm:$0xff]
    %v1464 = vld [vmem:[#allocation1 + $0x36] sm:$0xff]
    %v1465 = vld [vmem:[#allocation1 + $0x3f] sm:$0xff]
    %v1602 = vunpack.c.l.b16 %v1324
    %v1603 = vunpack.c.l.b16 %v1325
    %v1604 = vunpack.c.l.b16 %v1326
    %v1605 = vunpack.c.l.b16 %v1327
    %v1606 = vunpack.c.l.b16 %v1328
    %v1607 = vunpack.c.l.b16 %v1329
    %v1608 = vunpack.c.l.b16 %v1330
    %v1609 = vunpack.c.l.b16 %v1331
    %v1610 = vunpack.c.l.b16 %v1332
    %v1611 = vunpack.c.l.b16 %v1333
    %v1612 = vunpack.c.l.b16 %v1334
    %v1613 = vunpack.c.l.b16 %v1335
    %v1614 = vunpack.c.l.b16 %v1336
    %v1615 = vunpack.c.l.b16 %v1337
    %v1616 = vunpack.c.l.b16 %v1338
    %v1617 = vunpack.c.l.b16 %v1339
    %v1618 = vunpack.c.l.b16 %v1340
    %v1619 = vunpack.c.l.b16 %v1341
    %v1620 = vunpack.c.l.b16 %v1342
    %v1621 = vunpack.c.l.b16 %v1343
    %v1622 = vunpack.c.l.b16 %v1344
    %v1623 = vunpack.c.l.b16 %v1345
    %v1624 = vunpack.c.l.b16 %v1346
    %v1625 = vunpack.c.l.b16 %v1347
    %v1626 = vunpack.c.l.b16 %v1348
    %v1627 = vunpack.c.l.b16 %v1349
    %v1628 = vunpack.c.l.b16 %v1350
    %v1629 = vunpack.c.l.b16 %v1351
    %v1630 = vunpack.c.l.b16 %v1352
    %v1631 = vunpack.c.l.b16 %v1353
    %v1632 = vunpack.c.l.b16 %v1354
    %v1633 = vunpack.c.l.b16 %v1355
    %v1634 = vunpack.c.l.b16 %v1356
    %v1635 = vunpack.c.l.b16 %v1357
    %v1636 = vunpack.c.l.b16 %v1358
    %v1637 = vunpack.c.l.b16 %v1359
    %v1638 = vunpack.c.l.b16 %v1360
    %v1639 = vunpack.c.l.b16 %v1361
    %v1640 = vunpack.c.l.b16 %v1362
    %v1641 = vunpack.c.l.b16 %v1363
    %v1642 = vunpack.c.l.b16 %v1364
    %v1643 = vunpack.c.l.b16 %v1365
    %v1644 = vunpack.c.l.b16 %v1366
    %v1645 = vunpack.c.l.b16 %v1367
    %v1646 = vunpack.c.l.b16 %v1368
    %v1647 = vunpack.c.l.b16 %v1369
    %v1648 = vunpack.c.l.b16 %v1370
    %v1649 = vunpack.c.l.b16 %v1371
    %v1650 = vunpack.c.l.b16 %v1372
    %v1651 = vunpack.c.l.b16 %v1373
    %v1652 = vunpack.c.l.b16 %v1374
    %v1653 = vunpack.c.l.b16 %v1375
    %v1654 = vunpack.c.l.b16 %v1376
    %v1655 = vunpack.c.l.b16 %v1377
    %v1656 = vunpack.c.l.b16 %v1378
    %v1657 = vunpack.c.l.b16 %v1379
    %v1658 = vunpack.c.l.b16 %v1380
    %v1659 = vunpack.c.l.b16 %v1381
    %v1660 = vunpack.c.l.b16 %v1382
    %v1661 = vunpack.c.l.b16 %v1383
    %v1662 = vunpack.c.l.b16 %v1384
    %v1663 = vunpack.c.l.b16 %v1385
    %v1664 = vunpack.c.l.b16 %v1386
    %v1665 = vunpack.c.l.b16 %v1387
    %v1666 = vunpack.c.l.b16 %v1388
    %v1667 = vunpack.c.l.b16 %v1389
    %v1668 = vunpack.c.l.b16 %v1390
    %v1669 = vunpack.c.l.b16 %v1391
    %v1670 = vunpack.c.l.b16 %v1392
    %v1671 = vunpack.c.l.b16 %v1393
    %v1672 = vunpack.c.l.b16 %v1394
    %v1673 = vunpack.c.l.b16 %v1395
    %v1674 = vunpack.c.l.b16 %v1396
    %v1675 = vunpack.c.l.b16 %v1397
    %v1676 = vunpack.c.l.b16 %v1398
    %v1677 = vunpack.c.l.b16 %v1399
    %v1678 = vunpack.c.l.b16 %v1400
    %v1679 = vunpack.c.l.b16 %v1401
    %v1680 = vunpack.c.l.b16 %v1402
    %v1681 = vunpack.c.l.b16 %v1403
    %v1682 = vunpack.c.l.b16 %v1404
    %v1683 = vunpack.c.l.b16 %v1405
    %v1684 = vunpack.c.l.b16 %v1406
    %v1685 = vunpack.c.l.b16 %v1407
    %v1686 = vunpack.c.l.b16 %v1408
    %v1687 = vunpack.c.l.b16 %v1409
    %v1688 = vunpack.c.l.b16 %v1410
    %v1689 = vunpack.c.l.b16 %v1411
    %v1690 = vunpack.c.l.b16 %v1412
    %v1691 = vunpack.c.l.b16 %v1413
    %v1692 = vunpack.c.l.b16 %v1414
    %v1693 = vunpack.c.l.b16 %v1415
    %v1694 = vunpack.c.l.b16 %v1416
    %v1695 = vunpack.c.l.b16 %v1417
    %v1696 = vunpack.c.l.b16 %v1418
    %v1697 = vunpack.c.l.b16 %v1419
    %v1698 = vunpack.c.l.b16 %v1420
    %v1699 = vunpack.c.l.b16 %v1421
    %v1700 = vunpack.c.l.b16 %v1422
    %v1701 = vunpack.c.l.b16 %v1423
    %v1702 = vunpack.c.l.b16 %v1424
    %v1703 = vunpack.c.l.b16 %v1425
    %v1704 = vunpack.c.l.b16 %v1426
    %v1705 = vunpack.c.l.b16 %v1427
    %v1706 = vunpack.c.l.b16 %v1428
    %v1707 = vunpack.c.l.b16 %v1429
    %v1708 = vunpack.c.l.b16 %v1430
    %v1709 = vunpack.c.l.b16 %v1431
    %v1710 = vunpack.c.l.b16 %v1432
    %v1711 = vunpack.c.l.b16 %v1433
    %v1712 = vunpack.c.l.b16 %v1434
    %v1713 = vunpack.c.l.b16 %v1435
    %v1714 = vunpack.c.l.b16 %v1436
    %v1715 = vunpack.c.l.b16 %v1437
    %v1716 = vunpack.c.l.b16 %v1438
    %v1717 = vunpack.c.l.b16 %v1439
    %v1718 = vunpack.c.l.b16 %v1440
    %v1719 = vunpack.c.l.b16 %v1441
    %v1720 = vunpack.c.l.b16 %v1442
    %v1721 = vunpack.c.l.b16 %v1443
    %v1722 = vunpack.c.l.b16 %v1444
    %v1723 = vunpack.c.l.b16 %v1445
    %v1724 = vunpack.c.l.b16 %v1446
    %v1725 = vunpack.c.l.b16 %v1447
    %v1726 = vunpack.c.l.b16 %v1448
    %v1727 = vunpack.c.l.b16 %v1449
    %v1728 = vunpack.c.l.b16 %v1450
    %v1729 = vunpack.c.l.b16 %v1451
    %v1730 = vpack.c.b16 %v1603, %v1602
    %v1731 = vpack.c.b16 %v1605, %v1604
    %v1732 = vpack.c.b16 %v1607, %v1606
    %v1733 = vpack.c.b16 %v1609, %v1608
    %v1734 = vpack.c.b16 %v1611, %v1610
    %v1735 = vpack.c.b16 %v1613, %v1612
    %v1736 = vpack.c.b16 %v1615, %v1614
    %v1737 = vpack.c.b16 %v1617, %v1616
    %v1738 = vpack.c.b16 %v1619, %v1618
    %v1739 = vpack.c.b16 %v1621, %v1620
    %v1740 = vpack.c.b16 %v1623, %v1622
    %v1741 = vpack.c.b16 %v1625, %v1624
    %v1742 = vpack.c.b16 %v1627, %v1626
    %v1743 = vpack.c.b16 %v1629, %v1628
    %v1744 = vpack.c.b16 %v1631, %v1630
    %v1745 = vpack.c.b16 %v1633, %v1632
    %v1746 = vpack.c.b16 %v1635, %v1634
    %v1747 = vpack.c.b16 %v1637, %v1636
    %v1748 = vpack.c.b16 %v1639, %v1638
    %v1749 = vpack.c.b16 %v1641, %v1640
    %v1750 = vpack.c.b16 %v1643, %v1642
    %v1751 = vpack.c.b16 %v1645, %v1644
    %v1752 = vpack.c.b16 %v1647, %v1646
    %v1753 = vpack.c.b16 %v1649, %v1648
    %v1754 = vpack.c.b16 %v1651, %v1650
    %v1755 = vpack.c.b16 %v1653, %v1652
    %v1756 = vpack.c.b16 %v1655, %v1654
    %v1757 = vpack.c.b16 %v1657, %v1656
    %v1758 = vpack.c.b16 %v1659, %v1658
    %v1759 = vpack.c.b16 %v1661, %v1660
    %v1760 = vpack.c.b16 %v1663, %v1662
    %v1761 = vpack.c.b16 %v1665, %v1664
    %v1762 = vpack.c.b16 %v1667, %v1666
    %v1763 = vpack.c.b16 %v1669, %v1668
    %v1764 = vpack.c.b16 %v1671, %v1670
    %v1765 = vpack.c.b16 %v1673, %v1672
    %v1766 = vpack.c.b16 %v1675, %v1674
    %v1767 = vpack.c.b16 %v1677, %v1676
    %v1768 = vpack.c.b16 %v1679, %v1678
    %v1769 = vpack.c.b16 %v1681, %v1680
    %v1770 = vpack.c.b16 %v1683, %v1682
    %v1771 = vpack.c.b16 %v1685, %v1684
    %v1772 = vpack.c.b16 %v1687, %v1686
    %v1773 = vpack.c.b16 %v1689, %v1688
    %v1774 = vpack.c.b16 %v1691, %v1690
    %v1775 = vpack.c.b16 %v1693, %v1692
    %v1776 = vpack.c.b16 %v1695, %v1694
    %v1777 = vpack.c.b16 %v1697, %v1696
    %v1778 = vpack.c.b16 %v1699, %v1698
    %v1779 = vpack.c.b16 %v1701, %v1700
    %v1780 = vpack.c.b16 %v1703, %v1702
    %v1781 = vpack.c.b16 %v1705, %v1704
    %v1782 = vpack.c.b16 %v1707, %v1706
    %v1783 = vpack.c.b16 %v1709, %v1708
    %v1784 = vpack.c.b16 %v1711, %v1710
    %v1785 = vpack.c.b16 %v1713, %v1712
    %v1786 = vpack.c.b16 %v1715, %v1714
    %v1787 = vpack.c.b16 %v1717, %v1716
    %v1788 = vpack.c.b16 %v1719, %v1718
    %v1789 = vpack.c.b16 %v1721, %v1720
    %v1790 = vpack.c.b16 %v1723, %v1722
    %v1791 = vpack.c.b16 %v1725, %v1724
    %v1792 = vpack.c.b16 %v1727, %v1726
    %v1793 = vpack.c.b16 %v1729, %v1728
    %1858 = vmatpush.bf16.msra.mxu0 %v1737
    %1859 = vmatpush.bf16.msra.mxu0 %v1736
    %1860 = vmatpush.bf16.msra.mxu0 %v1735
    %1861 = vmatpush.bf16.msra.mxu0 %v1734
    %1862 = vmatpush.bf16.msra.mxu0 %v1733
    %1863 = vmatpush.bf16.msra.mxu0 %v1732
    %1864 = vmatpush.bf16.msra.mxu0 %v1731
    %1865 = vmatpush.bf16.msra.mxu0 %v1730
    %1866 = vmatmul.bf16.gmra.mxu0 %v1458
    %v1867 = vpop.f32.mrf.mxu0
    %v1868 = vadd.f32 %v1454, %v1867
    %v1869 = vpop.f32.mrf.mxu0
    %1870 = vdwg.mxu0
    %1871 = vmatpush.bf16.msra.mxu0 %v1745
    %1872 = vmatpush.bf16.msra.mxu0 %v1744
    %1873 = vmatpush.bf16.msra.mxu0 %v1743
    %1874 = vmatpush.bf16.msra.mxu0 %v1742
    %1875 = vmatpush.bf16.msra.mxu0 %v1741
    %1876 = vmatpush.bf16.msra.mxu0 %v1740
    %1877 = vmatpush.bf16.msra.mxu0 %v1739
    %1878 = vmatpush.bf16.msra.mxu0 %v1738
    %1879 = vmatmul.bf16.gmra.mxu0 %v1459
    %v1880 = vpop.f32.mrf.mxu0
    %v1881 = vadd.f32 %v1868, %v1880
    %v1882 = vpop.f32.mrf.mxu0
    %1883 = vdwg.mxu0
    %1884 = vmatpush.bf16.msra.mxu0 %v1753
    %1885 = vmatpush.bf16.msra.mxu0 %v1752
    %1886 = vmatpush.bf16.msra.mxu0 %v1751
    %1887 = vmatpush.bf16.msra.mxu0 %v1750
    %1888 = vmatpush.bf16.msra.mxu0 %v1749
    %1889 = vmatpush.bf16.msra.mxu0 %v1748
    %1890 = vmatpush.bf16.msra.mxu0 %v1747
    %1891 = vmatpush.bf16.msra.mxu0 %v1746
    %1892 = vmatmul.bf16.gmra.mxu0 %v1460
    %v1893 = vpop.f32.mrf.mxu0
    %v1894 = vadd.f32 %v1881, %v1893
    %v1895 = vpop.f32.mrf.mxu0
    %1896 = vdwg.mxu0
    %1897 = vmatpush.bf16.msra.mxu0 %v1761
    %1898 = vmatpush.bf16.msra.mxu0 %v1760
    %1899 = vmatpush.bf16.msra.mxu0 %v1759
    %1900 = vmatpush.bf16.msra.mxu0 %v1758
    %1901 = vmatpush.bf16.msra.mxu0 %v1757
    %1902 = vmatpush.bf16.msra.mxu0 %v1756
    %1903 = vmatpush.bf16.msra.mxu0 %v1755
    %1904 = vmatpush.bf16.msra.mxu0 %v1754
    %1905 = vmatmul.bf16.gmra.mxu0 %v1461
    %v1906 = vpop.f32.mrf.mxu0
    %v1907 = vadd.f32 %v1894, %v1906
    %v1908 = vpop.f32.mrf.mxu0
    %1909 = vdwg.mxu0
    %1910 = vmatpush.bf16.msra.mxu0 %v1769
    %1911 = vmatpush.bf16.msra.mxu0 %v1768
    %1912 = vmatpush.bf16.msra.mxu0 %v1767
    %1913 = vmatpush.bf16.msra.mxu0 %v1766
    %1914 = vmatpush.bf16.msra.mxu0 %v1765
    %1915 = vmatpush.bf16.msra.mxu0 %v1764
    %1916 = vmatpush.bf16.msra.mxu0 %v1763
    %1917 = vmatpush.bf16.msra.mxu0 %v1762
    %1918 = vmatmul.bf16.gmra.mxu0 %v1462
    %v1919 = vpop.f32.mrf.mxu0
    %v1920 = vadd.f32 %v1907, %v1919
    %v1921 = vpop.f32.mrf.mxu0
    %1922 = vdwg.mxu0
    %1923 = vmatpush.bf16.msra.mxu0 %v1777
    %1924 = vmatpush.bf16.msra.mxu0 %v1776
    %1925 = vmatpush.bf16.msra.mxu0 %v1775
    %1926 = vmatpush.bf16.msra.mxu0 %v1774
    %1927 = vmatpush.bf16.msra.mxu0 %v1773
    %1928 = vmatpush.bf16.msra.mxu0 %v1772
    %1929 = vmatpush.bf16.msra.mxu0 %v1771
    %1930 = vmatpush.bf16.msra.mxu0 %v1770
    %1931 = vmatmul.bf16.gmra.mxu0 %v1463
    %v1932 = vpop.f32.mrf.mxu0
    %v1933 = vadd.f32 %v1920, %v1932
    %v1934 = vpop.f32.mrf.mxu0
    %1935 = vdwg.mxu0
    %1936 = vmatpush.bf16.msra.mxu0 %v1785
    %1937 = vmatpush.bf16.msra.mxu0 %v1784
    %1938 = vmatpush.bf16.msra.mxu0 %v1783
    %1939 = vmatpush.bf16.msra.mxu0 %v1782
    %1940 = vmatpush.bf16.msra.mxu0 %v1781
    %1941 = vmatpush.bf16.msra.mxu0 %v1780
    %1942 = vmatpush.bf16.msra.mxu0 %v1779
    %1943 = vmatpush.bf16.msra.mxu0 %v1778
    %1944 = vmatmul.bf16.gmra.mxu0 %v1464
    %v1945 = vpop.f32.mrf.mxu0
    %v1946 = vadd.f32 %v1933, %v1945
    %v1947 = vpop.f32.mrf.mxu0
    %1948 = vdwg.mxu0
    %1949 = vmatpush.bf16.msra.mxu0 %v1793
    %1950 = vmatpush.bf16.msra.mxu0 %v1792
    %1951 = vmatpush.bf16.msra.mxu0 %v1791
    %1952 = vmatpush.bf16.msra.mxu0 %v1790
    %1953 = vmatpush.bf16.msra.mxu0 %v1789
    %1954 = vmatpush.bf16.msra.mxu0 %v1788
    %1955 = vmatpush.bf16.msra.mxu0 %v1787
    %1956 = vmatpush.bf16.msra.mxu0 %v1786
    %1957 = vmatmul.bf16.gmra.mxu0 %v1465
    %v1958 = vpop.f32.mrf.mxu0
    %v1959 = vadd.f32 %v1946, %v1958
    %v1960 = vpop.f32.mrf.mxu0
    %1961 = vdwg.mxu0
    %v1962 = vmax.f32 %v1959, 0.0
    %v1963 = vpack.c.bf16 %v1962, %v1962
    %v1965 = vrot.slane %v1963, 3
    %v1968 = vsel %vm1313, %v1963, %v1965
    %1970 = vrot.lane.b32.xlu0 %v1968, 64
    %v1971 = vpop.permute.xlu0 %1970
    %vm1973 = vcmask 778752
    %1974 = vst.msk [vmem:[#allocation2] sm:$0x1] %vm1973, %v1971
    %v1975 = vld [vmem:[%s0 + $0x18] sm:$0xff]
    %v1976 = vld [vmem:[%s1] sm:$0xf]
    %v1977 = vld [vmem:[%s1 + $0x4] sm:$0xf]
    %v1978 = vld [vmem:[%s1 + $0x8] sm:$0xf]
    %v1979 = vld [vmem:[%s1 + $0xc] sm:$0xf]
    %v1980 = vld [vmem:[%s1 + $0x10] sm:$0xf]
    %v1981 = vld [vmem:[%s1 + $0x14] sm:$0xf]
    %v1982 = vld [vmem:[%s1 + $0x18] sm:$0xf]
    %v1983 = vld [vmem:[%s1 + $0x1c] sm:$0xf]
    %v1984 = vld [vmem:[%s1 + $0x20] sm:$0xf]
    %v1985 = vld [vmem:[%s1 + $0x24] sm:$0xf]
    %v1986 = vld [vmem:[%s1 + $0x28] sm:$0xf]
    %v1987 = vld [vmem:[%s1 + $0x2c] sm:$0xf]
    %v1988 = vld [vmem:[%s1 + $0x30] sm:$0xf]
    %v1989 = vld [vmem:[%s1 + $0x34] sm:$0xf]
    %v1990 = vld [vmem:[%s1 + $0x38] sm:$0xf]
    %v1991 = vld [vmem:[%s1 + $0x3c] sm:$0xf]
    %v1992 = vld [vmem:[%s1 + $0x40] sm:$0xf]
    %v1993 = vld [vmem:[%s1 + $0x44] sm:$0xf]
    %v1994 = vld [vmem:[%s1 + $0x48] sm:$0xf]
    %v1995 = vld [vmem:[%s1 + $0x4c] sm:$0xf]
    %v1996 = vld [vmem:[%s1 + $0x50] sm:$0xf]
    %v1997 = vld [vmem:[%s1 + $0x54] sm:$0xf]
    %v1998 = vld [vmem:[%s1 + $0x58] sm:$0xf]
    %v1999 = vld [vmem:[%s1 + $0x5c] sm:$0xf]
    %v2000 = vld [vmem:[%s1 + $0x60] sm:$0xf]
    %v2001 = vld [vmem:[%s1 + $0x64] sm:$0xf]
    %v2002 = vld [vmem:[%s1 + $0x68] sm:$0xf]
    %v2003 = vld [vmem:[%s1 + $0x6c] sm:$0xf]
    %v2004 = vld [vmem:[%s1 + $0x70] sm:$0xf]
    %v2005 = vld [vmem:[%s1 + $0x74] sm:$0xf]
    %v2006 = vld [vmem:[%s1 + $0x78] sm:$0xf]
    %v2007 = vld [vmem:[%s1 + $0x7c] sm:$0xf]
    %v2008 = vld [vmem:[%s1 + $0x80] sm:$0xf]
    %v2009 = vld [vmem:[%s1 + $0x84] sm:$0xf]
    %v2010 = vld [vmem:[%s1 + $0x88] sm:$0xf]
    %v2011 = vld [vmem:[%s1 + $0x8c] sm:$0xf]
    %v2012 = vld [vmem:[%s1 + $0x90] sm:$0xf]
    %v2013 = vld [vmem:[%s1 + $0x94] sm:$0xf]
    %v2014 = vld [vmem:[%s1 + $0x98] sm:$0xf]
    %v2015 = vld [vmem:[%s1 + $0x9c] sm:$0xf]
    %v2016 = vld [vmem:[%s1 + $0xa0] sm:$0xf]
    %v2017 = vld [vmem:[%s1 + $0xa4] sm:$0xf]
    %v2018 = vld [vmem:[%s1 + $0xa8] sm:$0xf]
    %v2019 = vld [vmem:[%s1 + $0xac] sm:$0xf]
    %v2020 = vld [vmem:[%s1 + $0xb0] sm:$0xf]
    %v2021 = vld [vmem:[%s1 + $0xb4] sm:$0xf]
    %v2022 = vld [vmem:[%s1 + $0xb8] sm:$0xf]
    %v2023 = vld [vmem:[%s1 + $0xbc] sm:$0xf]
    %v2024 = vld [vmem:[%s1 + $0xc0] sm:$0xf]
    %v2025 = vld [vmem:[%s1 + $0xc4] sm:$0xf]
    %v2026 = vld [vmem:[%s1 + $0xc8] sm:$0xf]
    %v2027 = vld [vmem:[%s1 + $0xcc] sm:$0xf]
    %v2028 = vld [vmem:[%s1 + $0xd0] sm:$0xf]
    %v2029 = vld [vmem:[%s1 + $0xd4] sm:$0xf]
    %v2030 = vld [vmem:[%s1 + $0xd8] sm:$0xf]
    %v2031 = vld [vmem:[%s1 + $0xdc] sm:$0xf]
    %v2032 = vld [vmem:[%s1 + $0xe0] sm:$0xf]
    %v2033 = vld [vmem:[%s1 + $0xe4] sm:$0xf]
    %v2034 = vld [vmem:[%s1 + $0xe8] sm:$0xf]
    %v2035 = vld [vmem:[%s1 + $0xec] sm:$0xf]
    %v2036 = vld [vmem:[%s1 + $0xf0] sm:$0xf]
    %v2037 = vld [vmem:[%s1 + $0xf4] sm:$0xf]
    %v2038 = vld [vmem:[%s1 + $0xf8] sm:$0xf]
    %v2039 = vld [vmem:[%s1 + $0xfc] sm:$0xf]
    %v2040 = vld [vmem:[%s1 + $0x100] sm:$0xf]
    %v2041 = vld [vmem:[%s1 + $0x104] sm:$0xf]
    %v2042 = vld [vmem:[%s1 + $0x108] sm:$0xf]
    %v2043 = vld [vmem:[%s1 + $0x10c] sm:$0xf]
    %v2044 = vld [vmem:[%s1 + $0x110] sm:$0xf]
    %v2045 = vld [vmem:[%s1 + $0x114] sm:$0xf]
    %v2046 = vld [vmem:[%s1 + $0x118] sm:$0xf]
    %v2047 = vld [vmem:[%s1 + $0x11c] sm:$0xf]
    %v2048 = vld [vmem:[%s1 + $0x120] sm:$0xf]
    %v2049 = vld [vmem:[%s1 + $0x124] sm:$0xf]
    %v2050 = vld [vmem:[%s1 + $0x128] sm:$0xf]
    %v2051 = vld [vmem:[%s1 + $0x12c] sm:$0xf]
    %v2052 = vld [vmem:[%s1 + $0x130] sm:$0xf]
    %v2053 = vld [vmem:[%s1 + $0x134] sm:$0xf]
    %v2054 = vld [vmem:[%s1 + $0x138] sm:$0xf]
    %v2055 = vld [vmem:[%s1 + $0x13c] sm:$0xf]
    %v2056 = vld [vmem:[%s1 + $0x140] sm:$0xf]
    %v2057 = vld [vmem:[%s1 + $0x144] sm:$0xf]
    %v2058 = vld [vmem:[%s1 + $0x148] sm:$0xf]
    %v2059 = vld [vmem:[%s1 + $0x14c] sm:$0xf]
    %v2060 = vld [vmem:[%s1 + $0x150] sm:$0xf]
    %v2061 = vld [vmem:[%s1 + $0x154] sm:$0xf]
    %v2062 = vld [vmem:[%s1 + $0x158] sm:$0xf]
    %v2063 = vld [vmem:[%s1 + $0x15c] sm:$0xf]
    %v2064 = vld [vmem:[%s1 + $0x160] sm:$0xf]
    %v2065 = vld [vmem:[%s1 + $0x164] sm:$0xf]
    %v2066 = vld [vmem:[%s1 + $0x168] sm:$0xf]
    %v2067 = vld [vmem:[%s1 + $0x16c] sm:$0xf]
    %v2068 = vld [vmem:[%s1 + $0x170] sm:$0xf]
    %v2069 = vld [vmem:[%s1 + $0x174] sm:$0xf]
    %v2070 = vld [vmem:[%s1 + $0x178] sm:$0xf]
    %v2071 = vld [vmem:[%s1 + $0x17c] sm:$0xf]
    %v2072 = vld [vmem:[%s1 + $0x180] sm:$0xf]
    %v2073 = vld [vmem:[%s1 + $0x184] sm:$0xf]
    %v2074 = vld [vmem:[%s1 + $0x188] sm:$0xf]
    %v2075 = vld [vmem:[%s1 + $0x18c] sm:$0xf]
    %v2076 = vld [vmem:[%s1 + $0x190] sm:$0xf]
    %v2077 = vld [vmem:[%s1 + $0x194] sm:$0xf]
    %v2078 = vld [vmem:[%s1 + $0x198] sm:$0xf]
    %v2079 = vld [vmem:[%s1 + $0x19c] sm:$0xf]
    %v2080 = vld [vmem:[%s1 + $0x1a0] sm:$0xf]
    %v2081 = vld [vmem:[%s1 + $0x1a4] sm:$0xf]
    %v2082 = vld [vmem:[%s1 + $0x1a8] sm:$0xf]
    %v2083 = vld [vmem:[%s1 + $0x1ac] sm:$0xf]
    %v2084 = vld [vmem:[%s1 + $0x1b0] sm:$0xf]
    %v2085 = vld [vmem:[%s1 + $0x1b4] sm:$0xf]
    %v2086 = vld [vmem:[%s1 + $0x1b8] sm:$0xf]
    %v2087 = vld [vmem:[%s1 + $0x1bc] sm:$0xf]
    %v2088 = vld [vmem:[%s1 + $0x1c0] sm:$0xf]
    %v2089 = vld [vmem:[%s1 + $0x1c4] sm:$0xf]
    %v2090 = vld [vmem:[%s1 + $0x1c8] sm:$0xf]
    %v2091 = vld [vmem:[%s1 + $0x1cc] sm:$0xf]
    %v2092 = vld [vmem:[%s1 + $0x1d0] sm:$0xf]
    %v2093 = vld [vmem:[%s1 + $0x1d4] sm:$0xf]
    %v2094 = vld [vmem:[%s1 + $0x1d8] sm:$0xf]
    %v2095 = vld [vmem:[%s1 + $0x1dc] sm:$0xf]
    %v2096 = vld [vmem:[%s1 + $0x1e0] sm:$0xf]
    %v2097 = vld [vmem:[%s1 + $0x1e4] sm:$0xf]
    %v2098 = vld [vmem:[%s1 + $0x1e8] sm:$0xf]
    %v2099 = vld [vmem:[%s1 + $0x1ec] sm:$0xf]
    %v2100 = vld [vmem:[%s1 + $0x1f0] sm:$0xf]
    %v2101 = vld [vmem:[%s1 + $0x1f4] sm:$0xf]
    %v2102 = vld [vmem:[%s1 + $0x1f8] sm:$0xf]
    %v2103 = vld [vmem:[%s1 + $0x1fc] sm:$0xf]
    %v2104 = vld [vmem:[%s2] sm:$0x1]
    %v2106 = vperm.slane %v2104, 0
    %2109 = vst [vmem:[#allocation1] ss:$9 sm:$0xff] %v1975
    %v2110 = vld [vmem:[#allocation1] sm:$0xff]
    %v2111 = vld [vmem:[#allocation1 + $0x9] sm:$0xff]
    %v2112 = vld [vmem:[#allocation1 + $0x12] sm:$0xff]
    %v2113 = vld [vmem:[#allocation1 + $0x1b] sm:$0xff]
    %v2114 = vld [vmem:[#allocation1 + $0x24] sm:$0xff]
    %v2115 = vld [vmem:[#allocation1 + $0x2d] sm:$0xff]
    %v2116 = vld [vmem:[#allocation1 + $0x36] sm:$0xff]
    %v2117 = vld [vmem:[#allocation1 + $0x3f] sm:$0xff]
    %v2254 = vunpack.c.l.b16 %v1976
    %v2255 = vunpack.c.l.b16 %v1977
    %v2256 = vunpack.c.l.b16 %v1978
    %v2257 = vunpack.c.l.b16 %v1979
    %v2258 = vunpack.c.l.b16 %v1980
    %v2259 = vunpack.c.l.b16 %v1981
    %v2260 = vunpack.c.l.b16 %v1982
    %v2261 = vunpack.c.l.b16 %v1983
    %v2262 = vunpack.c.l.b16 %v1984
    %v2263 = vunpack.c.l.b16 %v1985
    %v2264 = vunpack.c.l.b16 %v1986
    %v2265 = vunpack.c.l.b16 %v1987
    %v2266 = vunpack.c.l.b16 %v1988
    %v2267 = vunpack.c.l.b16 %v1989
    %v2268 = vunpack.c.l.b16 %v1990
    %v2269 = vunpack.c.l.b16 %v1991
    %v2270 = vunpack.c.l.b16 %v1992
    %v2271 = vunpack.c.l.b16 %v1993
    %v2272 = vunpack.c.l.b16 %v1994
    %v2273 = vunpack.c.l.b16 %v1995
    %v2274 = vunpack.c.l.b16 %v1996
    %v2275 = vunpack.c.l.b16 %v1997
    %v2276 = vunpack.c.l.b16 %v1998
    %v2277 = vunpack.c.l.b16 %v1999
    %v2278 = vunpack.c.l.b16 %v2000
    %v2279 = vunpack.c.l.b16 %v2001
    %v2280 = vunpack.c.l.b16 %v2002
    %v2281 = vunpack.c.l.b16 %v2003
    %v2282 = vunpack.c.l.b16 %v2004
    %v2283 = vunpack.c.l.b16 %v2005
    %v2284 = vunpack.c.l.b16 %v2006
    %v2285 = vunpack.c.l.b16 %v2007
    %v2286 = vunpack.c.l.b16 %v2008
    %v2287 = vunpack.c.l.b16 %v2009
    %v2288 = vunpack.c.l.b16 %v2010
    %v2289 = vunpack.c.l.b16 %v2011
    %v2290 = vunpack.c.l.b16 %v2012
    %v2291 = vunpack.c.l.b16 %v2013
    %v2292 = vunpack.c.l.b16 %v2014
    %v2293 = vunpack.c.l.b16 %v2015
    %v2294 = vunpack.c.l.b16 %v2016
    %v2295 = vunpack.c.l.b16 %v2017
    %v2296 = vunpack.c.l.b16 %v2018
    %v2297 = vunpack.c.l.b16 %v2019
    %v2298 = vunpack.c.l.b16 %v2020
    %v2299 = vunpack.c.l.b16 %v2021
    %v2300 = vunpack.c.l.b16 %v2022
    %v2301 = vunpack.c.l.b16 %v2023
    %v2302 = vunpack.c.l.b16 %v2024
    %v2303 = vunpack.c.l.b16 %v2025
    %v2304 = vunpack.c.l.b16 %v2026
    %v2305 = vunpack.c.l.b16 %v2027
    %v2306 = vunpack.c.l.b16 %v2028
    %v2307 = vunpack.c.l.b16 %v2029
    %v2308 = vunpack.c.l.b16 %v2030
    %v2309 = vunpack.c.l.b16 %v2031
    %v2310 = vunpack.c.l.b16 %v2032
    %v2311 = vunpack.c.l.b16 %v2033
    %v2312 = vunpack.c.l.b16 %v2034
    %v2313 = vunpack.c.l.b16 %v2035
    %v2314 = vunpack.c.l.b16 %v2036
    %v2315 = vunpack.c.l.b16 %v2037
    %v2316 = vunpack.c.l.b16 %v2038
    %v2317 = vunpack.c.l.b16 %v2039
    %v2318 = vunpack.c.l.b16 %v2040
    %v2319 = vunpack.c.l.b16 %v2041
    %v2320 = vunpack.c.l.b16 %v2042
    %v2321 = vunpack.c.l.b16 %v2043
    %v2322 = vunpack.c.l.b16 %v2044
    %v2323 = vunpack.c.l.b16 %v2045
    %v2324 = vunpack.c.l.b16 %v2046
    %v2325 = vunpack.c.l.b16 %v2047
    %v2326 = vunpack.c.l.b16 %v2048
    %v2327 = vunpack.c.l.b16 %v2049
    %v2328 = vunpack.c.l.b16 %v2050
    %v2329 = vunpack.c.l.b16 %v2051
    %v2330 = vunpack.c.l.b16 %v2052
    %v2331 = vunpack.c.l.b16 %v2053
    %v2332 = vunpack.c.l.b16 %v2054
    %v2333 = vunpack.c.l.b16 %v2055
    %v2334 = vunpack.c.l.b16 %v2056
    %v2335 = vunpack.c.l.b16 %v2057
    %v2336 = vunpack.c.l.b16 %v2058
    %v2337 = vunpack.c.l.b16 %v2059
    %v2338 = vunpack.c.l.b16 %v2060
    %v2339 = vunpack.c.l.b16 %v2061
    %v2340 = vunpack.c.l.b16 %v2062
    %v2341 = vunpack.c.l.b16 %v2063
    %v2342 = vunpack.c.l.b16 %v2064
    %v2343 = vunpack.c.l.b16 %v2065
    %v2344 = vunpack.c.l.b16 %v2066
    %v2345 = vunpack.c.l.b16 %v2067
    %v2346 = vunpack.c.l.b16 %v2068
    %v2347 = vunpack.c.l.b16 %v2069
    %v2348 = vunpack.c.l.b16 %v2070
    %v2349 = vunpack.c.l.b16 %v2071
    %v2350 = vunpack.c.l.b16 %v2072
    %v2351 = vunpack.c.l.b16 %v2073
    %v2352 = vunpack.c.l.b16 %v2074
    %v2353 = vunpack.c.l.b16 %v2075
    %v2354 = vunpack.c.l.b16 %v2076
    %v2355 = vunpack.c.l.b16 %v2077
    %v2356 = vunpack.c.l.b16 %v2078
    %v2357 = vunpack.c.l.b16 %v2079
    %v2358 = vunpack.c.l.b16 %v2080
    %v2359 = vunpack.c.l.b16 %v2081
    %v2360 = vunpack.c.l.b16 %v2082
    %v2361 = vunpack.c.l.b16 %v2083
    %v2362 = vunpack.c.l.b16 %v2084
    %v2363 = vunpack.c.l.b16 %v2085
    %v2364 = vunpack.c.l.b16 %v2086
    %v2365 = vunpack.c.l.b16 %v2087
    %v2366 = vunpack.c.l.b16 %v2088
    %v2367 = vunpack.c.l.b16 %v2089
    %v2368 = vunpack.c.l.b16 %v2090
    %v2369 = vunpack.c.l.b16 %v2091
    %v2370 = vunpack.c.l.b16 %v2092
    %v2371 = vunpack.c.l.b16 %v2093
    %v2372 = vunpack.c.l.b16 %v2094
    %v2373 = vunpack.c.l.b16 %v2095
    %v2374 = vunpack.c.l.b16 %v2096
    %v2375 = vunpack.c.l.b16 %v2097
    %v2376 = vunpack.c.l.b16 %v2098
    %v2377 = vunpack.c.l.b16 %v2099
    %v2378 = vunpack.c.l.b16 %v2100
    %v2379 = vunpack.c.l.b16 %v2101
    %v2380 = vunpack.c.l.b16 %v2102
    %v2381 = vunpack.c.l.b16 %v2103
    %v2382 = vpack.c.b16 %v2255, %v2254
    %v2383 = vpack.c.b16 %v2257, %v2256
    %v2384 = vpack.c.b16 %v2259, %v2258
    %v2385 = vpack.c.b16 %v2261, %v2260
    %v2386 = vpack.c.b16 %v2263, %v2262
    %v2387 = vpack.c.b16 %v2265, %v2264
    %v2388 = vpack.c.b16 %v2267, %v2266
    %v2389 = vpack.c.b16 %v2269, %v2268
    %v2390 = vpack.c.b16 %v2271, %v2270
    %v2391 = vpack.c.b16 %v2273, %v2272
    %v2392 = vpack.c.b16 %v2275, %v2274
    %v2393 = vpack.c.b16 %v2277, %v2276
    %v2394 = vpack.c.b16 %v2279, %v2278
    %v2395 = vpack.c.b16 %v2281, %v2280
    %v2396 = vpack.c.b16 %v2283, %v2282
    %v2397 = vpack.c.b16 %v2285, %v2284
    %v2398 = vpack.c.b16 %v2287, %v2286
    %v2399 = vpack.c.b16 %v2289, %v2288
    %v2400 = vpack.c.b16 %v2291, %v2290
    %v2401 = vpack.c.b16 %v2293, %v2292
    %v2402 = vpack.c.b16 %v2295, %v2294
    %v2403 = vpack.c.b16 %v2297, %v2296
    %v2404 = vpack.c.b16 %v2299, %v2298
    %v2405 = vpack.c.b16 %v2301, %v2300
    %v2406 = vpack.c.b16 %v2303, %v2302
    %v2407 = vpack.c.b16 %v2305, %v2304
    %v2408 = vpack.c.b16 %v2307, %v2306
    %v2409 = vpack.c.b16 %v2309, %v2308
    %v2410 = vpack.c.b16 %v2311, %v2310
    %v2411 = vpack.c.b16 %v2313, %v2312
    %v2412 = vpack.c.b16 %v2315, %v2314
    %v2413 = vpack.c.b16 %v2317, %v2316
    %v2414 = vpack.c.b16 %v2319, %v2318
    %v2415 = vpack.c.b16 %v2321, %v2320
    %v2416 = vpack.c.b16 %v2323, %v2322
    %v2417 = vpack.c.b16 %v2325, %v2324
    %v2418 = vpack.c.b16 %v2327, %v2326
    %v2419 = vpack.c.b16 %v2329, %v2328
    %v2420 = vpack.c.b16 %v2331, %v2330
    %v2421 = vpack.c.b16 %v2333, %v2332
    %v2422 = vpack.c.b16 %v2335, %v2334
    %v2423 = vpack.c.b16 %v2337, %v2336
    %v2424 = vpack.c.b16 %v2339, %v2338
    %v2425 = vpack.c.b16 %v2341, %v2340
    %v2426 = vpack.c.b16 %v2343, %v2342
    %v2427 = vpack.c.b16 %v2345, %v2344
    %v2428 = vpack.c.b16 %v2347, %v2346
    %v2429 = vpack.c.b16 %v2349, %v2348
    %v2430 = vpack.c.b16 %v2351, %v2350
    %v2431 = vpack.c.b16 %v2353, %v2352
    %v2432 = vpack.c.b16 %v2355, %v2354
    %v2433 = vpack.c.b16 %v2357, %v2356
    %v2434 = vpack.c.b16 %v2359, %v2358
    %v2435 = vpack.c.b16 %v2361, %v2360
    %v2436 = vpack.c.b16 %v2363, %v2362
    %v2437 = vpack.c.b16 %v2365, %v2364
    %v2438 = vpack.c.b16 %v2367, %v2366
    %v2439 = vpack.c.b16 %v2369, %v2368
    %v2440 = vpack.c.b16 %v2371, %v2370
    %v2441 = vpack.c.b16 %v2373, %v2372
    %v2442 = vpack.c.b16 %v2375, %v2374
    %v2443 = vpack.c.b16 %v2377, %v2376
    %v2444 = vpack.c.b16 %v2379, %v2378
    %v2445 = vpack.c.b16 %v2381, %v2380
    %2510 = vmatpush.bf16.msra.mxu0 %v2389
    %2511 = vmatpush.bf16.msra.mxu0 %v2388
    %2512 = vmatpush.bf16.msra.mxu0 %v2387
    %2513 = vmatpush.bf16.msra.mxu0 %v2386
    %2514 = vmatpush.bf16.msra.mxu0 %v2385
    %2515 = vmatpush.bf16.msra.mxu0 %v2384
    %2516 = vmatpush.bf16.msra.mxu0 %v2383
    %2517 = vmatpush.bf16.msra.mxu0 %v2382
    %2518 = vmatmul.bf16.gmra.mxu0 %v2110
    %v2519 = vpop.f32.mrf.mxu0
    %v2520 = vadd.f32 %v2106, %v2519
    %v2521 = vpop.f32.mrf.mxu0
    %2522 = vdwg.mxu0
    %2523 = vmatpush.bf16.msra.mxu0 %v2397
    %2524 = vmatpush.bf16.msra.mxu0 %v2396
    %2525 = vmatpush.bf16.msra.mxu0 %v2395
    %2526 = vmatpush.bf16.msra.mxu0 %v2394
    %2527 = vmatpush.bf16.msra.mxu0 %v2393
    %2528 = vmatpush.bf16.msra.mxu0 %v2392
    %2529 = vmatpush.bf16.msra.mxu0 %v2391
    %2530 = vmatpush.bf16.msra.mxu0 %v2390
    %2531 = vmatmul.bf16.gmra.mxu0 %v2111
    %v2532 = vpop.f32.mrf.mxu0
    %v2533 = vadd.f32 %v2520, %v2532
    %v2534 = vpop.f32.mrf.mxu0
    %2535 = vdwg.mxu0
    %2536 = vmatpush.bf16.msra.mxu0 %v2405
    %2537 = vmatpush.bf16.msra.mxu0 %v2404
    %2538 = vmatpush.bf16.msra.mxu0 %v2403
    %2539 = vmatpush.bf16.msra.mxu0 %v2402
    %2540 = vmatpush.bf16.msra.mxu0 %v2401
    %2541 = vmatpush.bf16.msra.mxu0 %v2400
    %2542 = vmatpush.bf16.msra.mxu0 %v2399
    %2543 = vmatpush.bf16.msra.mxu0 %v2398
    %2544 = vmatmul.bf16.gmra.mxu0 %v2112
    %v2545 = vpop.f32.mrf.mxu0
    %v2546 = vadd.f32 %v2533, %v2545
    %v2547 = vpop.f32.mrf.mxu0
    %2548 = vdwg.mxu0
    %2549 = vmatpush.bf16.msra.mxu0 %v2413
    %2550 = vmatpush.bf16.msra.mxu0 %v2412
    %2551 = vmatpush.bf16.msra.mxu0 %v2411
    %2552 = vmatpush.bf16.msra.mxu0 %v2410
    %2553 = vmatpush.bf16.msra.mxu0 %v2409
    %2554 = vmatpush.bf16.msra.mxu0 %v2408
    %2555 = vmatpush.bf16.msra.mxu0 %v2407
    %2556 = vmatpush.bf16.msra.mxu0 %v2406
    %2557 = vmatmul.bf16.gmra.mxu0 %v2113
    %v2558 = vpop.f32.mrf.mxu0
    %v2559 = vadd.f32 %v2546, %v2558
    %v2560 = vpop.f32.mrf.mxu0
    %2561 = vdwg.mxu0
    %2562 = vmatpush.bf16.msra.mxu0 %v2421
    %2563 = vmatpush.bf16.msra.mxu0 %v2420
    %2564 = vmatpush.bf16.msra.mxu0 %v2419
    %2565 = vmatpush.bf16.msra.mxu0 %v2418
    %2566 = vmatpush.bf16.msra.mxu0 %v2417
    %2567 = vmatpush.bf16.msra.mxu0 %v2416
    %2568 = vmatpush.bf16.msra.mxu0 %v2415
    %2569 = vmatpush.bf16.msra.mxu0 %v2414
    %2570 = vmatmul.bf16.gmra.mxu0 %v2114
    %v2571 = vpop.f32.mrf.mxu0
    %v2572 = vadd.f32 %v2559, %v2571
    %v2573 = vpop.f32.mrf.mxu0
    %2574 = vdwg.mxu0
    %2575 = vmatpush.bf16.msra.mxu0 %v2429
    %2576 = vmatpush.bf16.msra.mxu0 %v2428
    %2577 = vmatpush.bf16.msra.mxu0 %v2427
    %2578 = vmatpush.bf16.msra.mxu0 %v2426
    %2579 = vmatpush.bf16.msra.mxu0 %v2425
    %2580 = vmatpush.bf16.msra.mxu0 %v2424
    %2581 = vmatpush.bf16.msra.mxu0 %v2423
    %2582 = vmatpush.bf16.msra.mxu0 %v2422
    %2583 = vmatmul.bf16.gmra.mxu0 %v2115
    %v2584 = vpop.f32.mrf.mxu0
    %v2585 = vadd.f32 %v2572, %v2584
    %v2586 = vpop.f32.mrf.mxu0
    %2587 = vdwg.mxu0
    %2588 = vmatpush.bf16.msra.mxu0 %v2437
    %2589 = vmatpush.bf16.msra.mxu0 %v2436
    %2590 = vmatpush.bf16.msra.mxu0 %v2435
    %2591 = vmatpush.bf16.msra.mxu0 %v2434
    %2592 = vmatpush.bf16.msra.mxu0 %v2433
    %2593 = vmatpush.bf16.msra.mxu0 %v2432
    %2594 = vmatpush.bf16.msra.mxu0 %v2431
    %2595 = vmatpush.bf16.msra.mxu0 %v2430
    %2596 = vmatmul.bf16.gmra.mxu0 %v2116
    %v2597 = vpop.f32.mrf.mxu0
    %v2598 = vadd.f32 %v2585, %v2597
    %v2599 = vpop.f32.mrf.mxu0
    %2600 = vdwg.mxu0
    %2601 = vmatpush.bf16.msra.mxu0 %v2445
    %2602 = vmatpush.bf16.msra.mxu0 %v2444
    %2603 = vmatpush.bf16.msra.mxu0 %v2443
    %2604 = vmatpush.bf16.msra.mxu0 %v2442
    %2605 = vmatpush.bf16.msra.mxu0 %v2441
    %2606 = vmatpush.bf16.msra.mxu0 %v2440
    %2607 = vmatpush.bf16.msra.mxu0 %v2439
    %2608 = vmatpush.bf16.msra.mxu0 %v2438
    %2609 = vmatmul.bf16.gmra.mxu0 %v2117
    %v2610 = vpop.f32.mrf.mxu0
    %v2611 = vadd.f32 %v2598, %v2610
    %v2612 = vpop.f32.mrf.mxu0
    %2613 = vdwg.mxu0
    %v2614 = vmax.f32 %v2611, 0.0
    %v2615 = vpack.c.bf16 %v2614, %v2614
    %v2617 = vrot.slane %v2615, 3
    %v2620 = vsel %vm1313, %v2615, %v2617
    %2622 = vrot.lane.b32.xlu0 %v2620, 96
    %v2623 = vpop.permute.xlu0 %2622
    %vm2625 = vcmask 1041152
    %2626 = vst.msk [vmem:[#allocation2] sm:$0x1] %vm2625, %v2623
    %v2627 = vld [vmem:[#allocation2] sm:$0x1]
    %v2628 = vld [vmem:[%s3] sm:$0xff]
    %v2629 = vld [vmem:[%s3 + $0x8] sm:$0xff]
    %v2630 = vld [vmem:[%s3 + $0x10] sm:$0xff]
    %v2631 = vld [vmem:[%s3 + $0x18] sm:$0xff]
    %v2632 = vld [vmem:[%s3 + $0x20] sm:$0xff]
    %v2633 = vld [vmem:[%s3 + $0x28] sm:$0xff]
    %v2634 = vld [vmem:[%s3 + $0x30] sm:$0xff]
    %v2635 = vld [vmem:[%s3 + $0x38] sm:$0xff]
    %v2636 = vld [vmem:[%s3 + $0x40] sm:$0xff]
    %v2637 = vld [vmem:[%s3 + $0x48] sm:$0xff]
    %v2638 = vld [vmem:[%s3 + $0x50] sm:$0xff]
    %v2639 = vld [vmem:[%s3 + $0x58] sm:$0xff]
    %v2640 = vld [vmem:[%s3 + $0x60] sm:$0xff]
    %v2641 = vld [vmem:[%s3 + $0x68] sm:$0xff]
    %v2642 = vld [vmem:[%s3 + $0x70] sm:$0xff]
    %v2643 = vld [vmem:[%s3 + $0x78] sm:$0xff]
    %v2644 = vld [vmem:[%s4] sm:$0x3]
    %v2646 = vperm.slane %v2644, 0
    %v2647 = vperm.slane %v2644, 1
    %v2666 = vunpack.c.l.b16 %v2628
    %v2667 = vunpack.c.h.b16 %v2628
    %v2668 = vunpack.c.l.b16 %v2629
    %v2669 = vunpack.c.h.b16 %v2629
    %v2670 = vunpack.c.l.b16 %v2630
    %v2671 = vunpack.c.h.b16 %v2630
    %v2672 = vunpack.c.l.b16 %v2631
    %v2673 = vunpack.c.h.b16 %v2631
    %v2674 = vunpack.c.l.b16 %v2632
    %v2675 = vunpack.c.h.b16 %v2632
    %v2676 = vunpack.c.l.b16 %v2633
    %v2677 = vunpack.c.h.b16 %v2633
    %v2678 = vunpack.c.l.b16 %v2634
    %v2679 = vunpack.c.h.b16 %v2634
    %v2680 = vunpack.c.l.b16 %v2635
    %v2681 = vunpack.c.h.b16 %v2635
    %v2682 = vunpack.c.l.b16 %v2636
    %v2683 = vunpack.c.h.b16 %v2636
    %v2684 = vunpack.c.l.b16 %v2637
    %v2685 = vunpack.c.h.b16 %v2637
    %v2686 = vunpack.c.l.b16 %v2638
    %v2687 = vunpack.c.h.b16 %v2638
    %v2688 = vunpack.c.l.b16 %v2639
    %v2689 = vunpack.c.h.b16 %v2639
    %v2690 = vunpack.c.l.b16 %v2640
    %v2691 = vunpack.c.h.b16 %v2640
    %v2692 = vunpack.c.l.b16 %v2641
    %v2693 = vunpack.c.h.b16 %v2641
    %v2694 = vunpack.c.l.b16 %v2642
    %v2695 = vunpack.c.h.b16 %v2642
    %v2696 = vunpack.c.l.b16 %v2643
    %v2697 = vunpack.c.h.b16 %v2643
    %v2698 = vpack.c.b16 %v2668, %v2666
    %v2699 = vpack.c.b16 %v2669, %v2667
    %v2700 = vpack.c.b16 %v2672, %v2670
    %v2701 = vpack.c.b16 %v2673, %v2671
    %v2702 = vpack.c.b16 %v2676, %v2674
    %v2703 = vpack.c.b16 %v2677, %v2675
    %v2704 = vpack.c.b16 %v2680, %v2678
    %v2705 = vpack.c.b16 %v2681, %v2679
    %v2706 = vpack.c.b16 %v2684, %v2682
    %v2707 = vpack.c.b16 %v2685, %v2683
    %v2708 = vpack.c.b16 %v2688, %v2686
    %v2709 = vpack.c.b16 %v2689, %v2687
    %v2710 = vpack.c.b16 %v2692, %v2690
    %v2711 = vpack.c.b16 %v2693, %v2691
    %v2712 = vpack.c.b16 %v2696, %v2694
    %v2713 = vpack.c.b16 %v2697, %v2695
    %2730 = vmatpush.bf16.msra.mxu0 %v2712
    %2731 = vmatpush.bf16.msra.mxu0 %v2710
    %2732 = vmatpush.bf16.msra.mxu0 %v2708
    %2733 = vmatpush.bf16.msra.mxu0 %v2706
    %2734 = vmatpush.bf16.msra.mxu0 %v2704
    %2735 = vmatpush.bf16.msra.mxu0 %v2702
    %2736 = vmatpush.bf16.msra.mxu0 %v2700
    %2737 = vmatpush.bf16.msra.mxu0 %v2698
    %2738 = vmatmul.bf16.gmra.mxu0 %v2627
    %v2739 = vpop.f32.mrf.mxu0
    %v2740 = vadd.f32 %v2646, %v2739
    %v2741 = vpop.f32.mrf.mxu0
    %2742 = vdwg.mxu0
    %2743 = vmatpush.bf16.msra.mxu0 %v2713
    %2744 = vmatpush.bf16.msra.mxu0 %v2711
    %2745 = vmatpush.bf16.msra.mxu0 %v2709
    %2746 = vmatpush.bf16.msra.mxu0 %v2707
    %2747 = vmatpush.bf16.msra.mxu0 %v2705
    %2748 = vmatpush.bf16.msra.mxu0 %v2703
    %2749 = vmatpush.bf16.msra.mxu0 %v2701
    %2750 = vmatpush.bf16.msra.mxu0 %v2699
    %2751 = vmatmul.bf16.gmra.mxu0 %v2627
    %v2752 = vpop.f32.mrf.mxu0
    %v2753 = vadd.f32 %v2647, %v2752
    %v2754 = vpop.f32.mrf.mxu0
    %2755 = vdwg.mxu0
    %v2756 = vmax.f32 %v2740, 0.0
    %v2757 = vmax.f32 %v2753, 0.0
    %v2758 = vpack.c.bf16 %v2756, %v2756
    %v2759 = vpack.c.bf16 %v2757, %v2757
    %v2760 = vld [vmem:[%s5] sm:$0xf]
    %v2761 = vld [vmem:[%s5 + $0x4] sm:$0xf]
    %v2762 = vld [vmem:[%s5 + $0x8] sm:$0xf]
    %v2763 = vld [vmem:[%s5 + $0xc] sm:$0xf]
    %v2764 = vld [vmem:[%s5 + $0x10] sm:$0xf]
    %v2765 = vld [vmem:[%s5 + $0x14] sm:$0xf]
    %v2766 = vld [vmem:[%s5 + $0x18] sm:$0xf]
    %v2767 = vld [vmem:[%s5 + $0x1c] sm:$0xf]
    %v2768 = vld [vmem:[%s5 + $0x20] sm:$0xf]
    %v2769 = vld [vmem:[%s5 + $0x24] sm:$0xf]
    %v2770 = vld [vmem:[%s5 + $0x28] sm:$0xf]
    %v2771 = vld [vmem:[%s5 + $0x2c] sm:$0xf]
    %v2772 = vld [vmem:[%s5 + $0x30] sm:$0xf]
    %v2773 = vld [vmem:[%s5 + $0x34] sm:$0xf]
    %v2774 = vld [vmem:[%s5 + $0x38] sm:$0xf]
    %v2775 = vld [vmem:[%s5 + $0x3c] sm:$0xf]
    %v2776 = vld [vmem:[%s5 + $0x40] sm:$0xf]
    %v2777 = vld [vmem:[%s5 + $0x44] sm:$0xf]
    %v2778 = vld [vmem:[%s5 + $0x48] sm:$0xf]
    %v2779 = vld [vmem:[%s5 + $0x4c] sm:$0xf]
    %v2780 = vld [vmem:[%s5 + $0x50] sm:$0xf]
    %v2781 = vld [vmem:[%s5 + $0x54] sm:$0xf]
    %v2782 = vld [vmem:[%s5 + $0x58] sm:$0xf]
    %v2783 = vld [vmem:[%s5 + $0x5c] sm:$0xf]
    %v2784 = vld [vmem:[%s5 + $0x60] sm:$0xf]
    %v2785 = vld [vmem:[%s5 + $0x64] sm:$0xf]
    %v2786 = vld [vmem:[%s5 + $0x68] sm:$0xf]
    %v2787 = vld [vmem:[%s5 + $0x6c] sm:$0xf]
    %v2788 = vld [vmem:[%s5 + $0x70] sm:$0xf]
    %v2789 = vld [vmem:[%s5 + $0x74] sm:$0xf]
    %v2790 = vld [vmem:[%s5 + $0x78] sm:$0xf]
    %v2791 = vld [vmem:[%s5 + $0x7c] sm:$0xf]
    %v2792 = vld [vmem:[%s6] sm:$0x1]
    %v2794 = vperm.slane %v2792, 0
    %v2828 = vunpack.c.l.b16 %v2760
    %v2829 = vunpack.c.l.b16 %v2761
    %v2830 = vunpack.c.l.b16 %v2762
    %v2831 = vunpack.c.l.b16 %v2763
    %v2832 = vunpack.c.l.b16 %v2764
    %v2833 = vunpack.c.l.b16 %v2765
    %v2834 = vunpack.c.l.b16 %v2766
    %v2835 = vunpack.c.l.b16 %v2767
    %v2836 = vunpack.c.l.b16 %v2768
    %v2837 = vunpack.c.l.b16 %v2769
    %v2838 = vunpack.c.l.b16 %v2770
    %v2839 = vunpack.c.l.b16 %v2771
    %v2840 = vunpack.c.l.b16 %v2772
    %v2841 = vunpack.c.l.b16 %v2773
    %v2842 = vunpack.c.l.b16 %v2774
    %v2843 = vunpack.c.l.b16 %v2775
    %v2844 = vunpack.c.l.b16 %v2776
    %v2845 = vunpack.c.l.b16 %v2777
    %v2846 = vunpack.c.l.b16 %v2778
    %v2847 = vunpack.c.l.b16 %v2779
    %v2848 = vunpack.c.l.b16 %v2780
    %v2849 = vunpack.c.l.b16 %v2781
    %v2850 = vunpack.c.l.b16 %v2782
    %v2851 = vunpack.c.l.b16 %v2783
    %v2852 = vunpack.c.l.b16 %v2784
    %v2853 = vunpack.c.l.b16 %v2785
    %v2854 = vunpack.c.l.b16 %v2786
    %v2855 = vunpack.c.l.b16 %v2787
    %v2856 = vunpack.c.l.b16 %v2788
    %v2857 = vunpack.c.l.b16 %v2789
    %v2858 = vunpack.c.l.b16 %v2790
    %v2859 = vunpack.c.l.b16 %v2791
    %v2860 = vpack.c.b16 %v2829, %v2828
    %v2861 = vpack.c.b16 %v2831, %v2830
    %v2862 = vpack.c.b16 %v2833, %v2832
    %v2863 = vpack.c.b16 %v2835, %v2834
    %v2864 = vpack.c.b16 %v2837, %v2836
    %v2865 = vpack.c.b16 %v2839, %v2838
    %v2866 = vpack.c.b16 %v2841, %v2840
    %v2867 = vpack.c.b16 %v2843, %v2842
    %v2868 = vpack.c.b16 %v2845, %v2844
    %v2869 = vpack.c.b16 %v2847, %v2846
    %v2870 = vpack.c.b16 %v2849, %v2848
    %v2871 = vpack.c.b16 %v2851, %v2850
    %v2872 = vpack.c.b16 %v2853, %v2852
    %v2873 = vpack.c.b16 %v2855, %v2854
    %v2874 = vpack.c.b16 %v2857, %v2856
    %v2875 = vpack.c.b16 %v2859, %v2858
    %2892 = vmatpush.bf16.msra.mxu0 %v2867
    %2893 = vmatpush.bf16.msra.mxu0 %v2866
    %2894 = vmatpush.bf16.msra.mxu0 %v2865
    %2895 = vmatpush.bf16.msra.mxu0 %v2864
    %2896 = vmatpush.bf16.msra.mxu0 %v2863
    %2897 = vmatpush.bf16.msra.mxu0 %v2862
    %2898 = vmatpush.bf16.msra.mxu0 %v2861
    %2899 = vmatpush.bf16.msra.mxu0 %v2860
    %2900 = vmatmul.bf16.gmra.mxu0 %v2758
    %v2901 = vpop.f32.mrf.mxu0
    %v2902 = vadd.f32 %v2794, %v2901
    %v2903 = vpop.f32.mrf.mxu0
    %2904 = vdwg.mxu0
    %2905 = vmatpush.bf16.msra.mxu0 %v2875
    %2906 = vmatpush.bf16.msra.mxu0 %v2874
    %2907 = vmatpush.bf16.msra.mxu0 %v2873
    %2908 = vmatpush.bf16.msra.mxu0 %v2872
    %2909 = vmatpush.bf16.msra.mxu0 %v2871
    %2910 = vmatpush.bf16.msra.mxu0 %v2870
    %2911 = vmatpush.bf16.msra.mxu0 %v2869
    %2912 = vmatpush.bf16.msra.mxu0 %v2868
    %2913 = vmatmul.bf16.gmra.mxu0 %v2759
    %v2914 = vpop.f32.mrf.mxu0
    %v2915 = vadd.f32 %v2902, %v2914
    %v2916 = vpop.f32.mrf.mxu0
    %2917 = vdwg.mxu0
    %2918 = vst [vmem:[#allocation3] sm:$0x3] %v2915
    // Predicated region
    $region30: #{qnetwork_pixels_forward.3} parent=1 // pred_check
      _
    $region31: #{qnetwork_pixels_forward.3} parent=1 // pred_check_branch
      %2920 = sbr.rel (0) target = $region33
    $region32: #{qnetwork_pixels_forward.3} parent=1 // pred_region
      %2922 = vsyncadd [#allocation4], 0
      %s2924 = sshll.u32 [#allocation3], 4
      %s2925 = int_to_ptr.vmem [resolvable:$true] %s2924
      %s2926 = sshll.u32 %s7, 4
      %s2927 = int_to_ptr.hbm [resolvable:$true] %s2926
      %2929 = dma.vmem_to_hbm [thread:$0]  %s2925, 32, %s2927, [#allocation4]
    $region33: #{qnetwork_pixels_forward.3} parent=1 // pred_fallthru
      _
    // Predicated region
    $region34: #{qnetwork_pixels_forward.3} parent=1 // pred_check
      _
    $region35: #{qnetwork_pixels_forward.3} parent=1 // pred_check_branch
      %2931 = sbr.rel (0) target = $region37
    $region36: #{qnetwork_pixels_forward.3} parent=1 // pred_region
      %2933 = dma.done [#allocation4], 32
    $region37: #{qnetwork_pixels_forward.3} parent=1 // pred_fallthru
      _
    %2934 = vsyncpa [#allocation4], 1

</llo_original>
